<compile_context>
chip_gen: v7x
topology: tpu7x:2x2x1
jax: 0.10.0
libtpu: 0.0.40
codegen_flags: <defaults>
</compile_context>

<pallas_src>
import functools

import jax
import jax.numpy as jnp
from jax.experimental import pallas as pl
from jax.experimental.pallas import tpu as pltpu

LANE = 128


def _round_up(n, m):
    return (n + m - 1) // m * m


# -----------------------------------------------------------------------------
# Kernel
# -----------------------------------------------------------------------------
def d2rl_kernel(
    x_ref,                    # (TILE_B, K_PAD)   bf16  input, lane num_inputs == 1.0
    wx_ref,                   # (K_PAD, 8*H)      bf16  fused xu weights (+ bias row)
    w12h_ref, w22h_ref,       # (H, H)            bf16  hidden->hidden slabs
    w13h_ref, w23h_ref,
    w14h_ref, w24h_ref,
    wo_ref,                   # (2H, OUT_PAD)     bf16  fused heads [wo1 ; wo2]
    bo_ref,                   # (1, OUT_PAD)      f32
    out_ref,                  # (TILE_B, OUT_PAD) f32   packed [logits | value | 0]
):
    H = w12h_ref.shape[0]
    xu = x_ref[...]  # bf16

    # ---- ONE wide matmul for everything that consumes xu; biases ride the
    # ---- ones-lane so no broadcast add is needed.
    xw = jnp.dot(xu, wx_ref[...], preferred_element_type=jnp.float32)

    def xpart(i):  # static lane-aligned slice of the fused xu product (f32)
        return xw[:, i * H:(i + 1) * H]

    # layer 1 of both branches:  relu(xu @ W + b)   (kept bf16 between layers)
    h1 = jnp.maximum(xpart(0), 0.0).astype(jnp.bfloat16)
    h2 = jnp.maximum(xpart(1), 0.0).astype(jnp.bfloat16)

    def block(h, wh_ref, i):
        # relu([h, xu] @ W + b) == relu(h @ Wh + (xu @ Wx + b)) ; xu-part precomputed
        acc = jnp.dot(h, wh_ref[...], preferred_element_type=jnp.float32)
        return jnp.maximum(acc + xpart(i), 0.0).astype(jnp.bfloat16)

    # interleave branch 1 / branch 2 so the MXU has two independent chains in flight
    h1 = block(h1, w12h_ref, 2)
    h2 = block(h2, w22h_ref, 3)
    h1 = block(h1, w13h_ref, 4)
    h2 = block(h2, w23h_ref, 5)
    h1 = block(h1, w14h_ref, 6)
    h2 = block(h2, w24h_ref, 7)

    # fused heads: single K=2H matmul into the lane-dense packed output slab
    h12 = jnp.concatenate([h1, h2], axis=1)               # (TILE_B, 2H) bf16
    out = jnp.dot(h12, wo_ref[...], preferred_element_type=jnp.float32)
    out_ref[...] = (out + bo_ref[...]).astype(out_ref.dtype)


# -----------------------------------------------------------------------------
# Parameter construction (xavier-uniform weights, zero biases; stored [in, out])
# -----------------------------------------------------------------------------
def xavier_uniform(key, fan_in, fan_out):
    bound = jnp.sqrt(6.0 / (fan_in + fan_out))
    return jax.random.uniform(
        key, (fan_in, fan_out), dtype=jnp.float32, minval=-bound, maxval=bound
    )


def make_params(key, num_inputs, num_outputs, hidden_dim):
    in_dim = num_inputs + hidden_dim
    keys = jax.random.split(key, 10)

    def linear(k, fi, fo):
        return xavier_uniform(k, fi, fo), jnp.zeros((1, fo), jnp.float32)

    params = {}
    params["l1_1"] = linear(keys[0], num_inputs, hidden_dim)
    params["l1_2"] = linear(keys[1], in_dim, hidden_dim)
    params["l1_3"] = linear(keys[2], in_dim, hidden_dim)
    params["l1_4"] = linear(keys[3], in_dim, hidden_dim)
    params["out1"] = linear(keys[4], hidden_dim, num_outputs)
    params["l2_1"] = linear(keys[5], num_inputs, hidden_dim)
    params["l2_2"] = linear(keys[6], in_dim, hidden_dim)
    params["l2_3"] = linear(keys[7], in_dim, hidden_dim)
    params["l2_4"] = linear(keys[8], in_dim, hidden_dim)
    params["out2"] = linear(keys[9], hidden_dim, 1)
    return params


# -----------------------------------------------------------------------------
# Wrapper: weight packing (in XLA, outside the kernel) + pallas_call
# -----------------------------------------------------------------------------
@functools.partial(
    jax.jit,
    static_argnames=("num_outputs", "hidden_dim", "tile_b", "single_buffer_weights"),
)
def d2rl_forward(x, params, *, num_outputs, hidden_dim, tile_b=None,
                 single_buffer_weights=True):
    B, num_inputs = x.shape
    H = hidden_dim
    assert H % LANE == 0, "hidden_dim must be a multiple of 128"
    K_PAD = _round_up(num_inputs + 1, LANE)       # +1: spare lane carries the fused bias
    OUT_PAD = _round_up(num_outputs + 1, LANE)

    if tile_b is None:
        # >= 2 grid steps when possible (both v7x TensorCores busy) while growing
        # the tile up to 512 rows to amortize per-step overhead on v5e/v6e.
        tile_b = max(LANE, min(512, _round_up((B + 1) // 2, LANE)))
    Bp = _round_up(max(B, tile_b), tile_b)

    # ---- fused xu-weight slab: [W11 | W21 | Wx12 | Wx22 | Wx13 | Wx23 | Wx14 | Wx24]
    # torch cat order is [h, xu] -> rows [:H] act on h, rows [H:] act on xu.
    # All 8 biases are folded into row `num_inputs` (matched by the ones-lane in x).
    w11, b11 = params["l1_1"]
    w21, b21 = params["l2_1"]
    wx_slabs, bx_slabs, wh_slabs = [w11, w21], [b11, b21], []
    for i in (2, 3, 4):
        w1, b1 = params[f"l1_{i}"]
        w2, b2 = params[f"l2_{i}"]
        wh_slabs += [w1[:H, :], w2[:H, :]]
        wx_slabs += [w1[H:, :], w2[H:, :]]
        bx_slabs += [b1, b2]

    wx_fused = jnp.concatenate(wx_slabs, axis=1)               # (num_inputs, 8H)
    bx_fused = jnp.concatenate(bx_slabs, axis=1)               # (1, 8H)
    wx_fused = jnp.concatenate(
        [wx_fused, bx_fused,
         jnp.zeros((K_PAD - num_inputs - 1, 8 * H), jnp.float32)],
        axis=0,
    ).astype(jnp.bfloat16)                                     # (K_PAD, 8H)
    wh_bf16 = [w.astype(jnp.bfloat16) for w in wh_slabs]       # 6 x (H, H)

    # ---- heads fused into ONE (2H, OUT_PAD) slab: logits lanes [0:no], value lane no
    wo1, bo1 = params["out1"]
    wo2, bo2 = params["out2"]
    wo_fused = (jnp.zeros((2 * H, OUT_PAD), jnp.float32)
                .at[:H, :num_outputs].set(wo1)
                .at[H:, num_outputs:num_outputs + 1].set(wo2)
                ).astype(jnp.bfloat16)
    bo_fused = (jnp.zeros((1, OUT_PAD), jnp.float32)
                .at[:, :num_outputs].set(bo1)
                .at[:, num_outputs:num_outputs + 1].set(bo2))

    # ---- batch tiling: pad B, 128-lane features, ones-lane carries the bias ----
    x_pad = (jnp.zeros((Bp, K_PAD), jnp.bfloat16)
             .at[:B, :num_inputs].set(x.astype(jnp.bfloat16))
             .at[:B, num_inputs].set(1.0))

    const = lambda i: (0, 0)   # weights resident across all grid steps
    if single_buffer_weights:
        # constant index_map never re-DMAs; single buffer halves weight VMEM
        wspec = lambda shape: pl.BlockSpec(shape, const, pipeline_mode=pl.Buffered(1))
    else:
        wspec = lambda shape: pl.BlockSpec(shape, const)

    in_specs = (
        [pl.BlockSpec((tile_b, K_PAD), lambda i: (i, 0))]      # x: tiled by batch
        + [wspec((K_PAD, 8 * H))]                              # fused xu weights (+bias row)
        + [wspec((H, H))] * 6                                  # hidden->hidden slabs
        + [wspec((2 * H, OUT_PAD)),                            # fused head weights
           wspec((1, OUT_PAD))]                                # head bias
    )

    out = pl.pallas_call(
        d2rl_kernel,
        out_shape=jax.ShapeDtypeStruct((Bp, OUT_PAD), jnp.float32),
        grid=(Bp // tile_b,),
        in_specs=in_specs,
        out_specs=pl.BlockSpec((tile_b, OUT_PAD), lambda i: (i, 0)),
        compiler_params=pltpu.CompilerParams(
            dimension_semantics=("parallel",),      # shards batch across TCs on v7x
            vmem_limit_bytes=32 * 1024 * 1024,      # > v5e 16 MiB default, < v7x 64 MiB phys
        ),
    )(x_pad, wx_fused, *wh_bf16, wo_fused, bo_fused)

    logits = out[:B, :num_outputs]
    value = out[:B, num_outputs:num_outputs + 1]
    # match torch return order: (value, action_logits)
    return value, logits


# -----------------------------------------------------------------------------
# Pure-JAX reference (f32 math with bf16-quantized weights/input, mirroring the
# kernel's operand precision; only the kernel's intermediate bf16 casts differ)
# -----------------------------------------------------------------------------
def d2rl_reference(x, params):
    q = lambda a: a.astype(jnp.bfloat16).astype(jnp.float32)

    def dense(h, wb):
        w, b = wb
        return h @ q(w) + b

    xq = q(x)

    def branch(prefix, out_name):
        h = jax.nn.relu(dense(xq, params[f"{prefix}_1"]))
        for i in (2, 3, 4):
            h = jnp.concatenate([h, xq], axis=1)
            h = jax.nn.relu(dense(h, params[f"{prefix}_{i}"]))
        return dense(h, params[out_name])

    return branch("l2", "out2"), branch("l1", "out1")


# -----------------------------------------------------------------------------
# Main
# -----------------------------------------------------------------------------
if __name__ == "__main__":
    NUM_INPUTS = 32
    NUM_OUTPUTS = 8
    HIDDEN_DIM = 128     # small hidden size for the test (module default is 512)
    BATCH = 256          # auto tile_b=128 -> 2 grid steps (exercises the pipeline)

    key = jax.random.PRNGKey(0)
    kx, kp = jax.random.split(key)

    x = jax.random.normal(kx, (BATCH, NUM_INPUTS), dtype=jnp.float32)
    params = make_params(kp, NUM_INPUTS, NUM_OUTPUTS, HIDDEN_DIM)

    def run(single_buffer_weights):
        v, l = d2rl_forward(
            x, params, num_outputs=NUM_OUTPUTS, hidden_dim=HIDDEN_DIM,
            single_buffer_weights=single_buffer_weights)
        jax.block_until_ready((v, l))
        return v, l

    try:
        value, logits = run(True)
    except Exception:
        # pl.Buffered(1) not supported by this jax/libtpu -> default double-buffering
        value, logits = run(False)

    value_ref, logits_ref = d2rl_reference(x, params)
    assert value.shape == (BATCH, 1)
    assert logits.shape == (BATCH, NUM_OUTPUTS)
    assert jnp.allclose(value, value_ref, atol=2e-2, rtol=2e-2), float(
        jnp.max(jnp.abs(value - value_ref)))
    assert jnp.allclose(logits, logits_ref, atol=2e-2, rtol=2e-2), float(
        jnp.max(jnp.abs(logits - logits_ref)))

    print("KERNEL_OK")
</pallas_src>

<mosaic_0001>
module attributes {stable_mosaic.version = 11 : i64} {
  func.func @d2rl_kernel(%arg0: i32, %arg1: memref<128x128xbf16, #tpu.memory_space<vmem>>, %arg2: memref<128x1024xbf16, #tpu.memory_space<vmem>>, %arg3: memref<128x128xbf16, #tpu.memory_space<vmem>>, %arg4: memref<128x128xbf16, #tpu.memory_space<vmem>>, %arg5: memref<128x128xbf16, #tpu.memory_space<vmem>>, %arg6: memref<128x128xbf16, #tpu.memory_space<vmem>>, %arg7: memref<128x128xbf16, #tpu.memory_space<vmem>>, %arg8: memref<128x128xbf16, #tpu.memory_space<vmem>>, %arg9: memref<256x128xbf16, #tpu.memory_space<vmem>>, %arg10: memref<1x128xf32, #tpu.memory_space<vmem>>, %arg11: memref<128x128xf32, #tpu.memory_space<vmem>>) attributes {dimension_semantics = [#tpu.dimension_semantics<parallel>], iteration_bounds = array<i64: 2>, scalar_prefetch = 0 : i64, scratch_operands = 0 : i64, tpu.core_type = #tpu.core_type<tc>, window_params = [{transform_indices = @transform_0, window_bounds = array<i64: 128, 128>}, {pipeline_mode = #tpu.pipeline_mode<synchronous>, transform_indices = @transform_1, window_bounds = array<i64: 128, 1024>}, {pipeline_mode = #tpu.pipeline_mode<synchronous>, transform_indices = @transform_2, window_bounds = array<i64: 128, 128>}, {pipeline_mode = #tpu.pipeline_mode<synchronous>, transform_indices = @transform_3, window_bounds = array<i64: 128, 128>}, {pipeline_mode = #tpu.pipeline_mode<synchronous>, transform_indices = @transform_4, window_bounds = array<i64: 128, 128>}, {pipeline_mode = #tpu.pipeline_mode<synchronous>, transform_indices = @transform_5, window_bounds = array<i64: 128, 128>}, {pipeline_mode = #tpu.pipeline_mode<synchronous>, transform_indices = @transform_6, window_bounds = array<i64: 128, 128>}, {pipeline_mode = #tpu.pipeline_mode<synchronous>, transform_indices = @transform_7, window_bounds = array<i64: 128, 128>}, {pipeline_mode = #tpu.pipeline_mode<synchronous>, transform_indices = @transform_8, window_bounds = array<i64: 256, 128>}, {pipeline_mode = #tpu.pipeline_mode<synchronous>, transform_indices = @transform_9, window_bounds = array<i64: 1, 128>}, {transform_indices = @transform_10, window_bounds = array<i64: 128, 128>}]} {
    %c0 = arith.constant 0 : index
    %c0_0 = arith.constant 0 : index
    %0 = vector.load %arg1[%c0, %c0_0] : memref<128x128xbf16, #tpu.memory_space<vmem>>, vector<128x128xbf16>
    %c0_1 = arith.constant 0 : index
    %c0_2 = arith.constant 0 : index
    %1 = vector.load %arg2[%c0_1, %c0_2] : memref<128x1024xbf16, #tpu.memory_space<vmem>>, vector<128x1024xbf16>
    %cst = arith.constant dense<0.000000e+00> : vector<128x1024xf32>
    %2 = tpu.matmul %0, %1, %cst {dimension_numbers = #tpu.dot_dimension_numbers<[1], [0], [0], [1], [0, 0, 1, 1], [], []>} : vector<128x128xbf16>, vector<128x1024xbf16>, vector<128x1024xf32> -> vector<128x1024xf32>
    %3 = vector.extract_strided_slice %2 {offsets = [0, 0], sizes = [128, 128], strides = [1, 1]} : vector<128x1024xf32> to vector<128x128xf32>
    %cst_3 = arith.constant 0.000000e+00 : f32
    %4 = vector.broadcast %cst_3 : f32 to vector<128x128xf32>
    %5 = arith.maximumf %3, %4 : vector<128x128xf32>
    %6 = arith.truncf %5 : vector<128x128xf32> to vector<128x128xbf16>
    %7 = vector.extract_strided_slice %2 {offsets = [0, 128], sizes = [128, 128], strides = [1, 1]} : vector<128x1024xf32> to vector<128x128xf32>
    %cst_4 = arith.constant 0.000000e+00 : f32
    %8 = vector.broadcast %cst_4 : f32 to vector<128x128xf32>
    %9 = arith.maximumf %7, %8 : vector<128x128xf32>
    %10 = arith.truncf %9 : vector<128x128xf32> to vector<128x128xbf16>
    %c0_5 = arith.constant 0 : index
    %c0_6 = arith.constant 0 : index
    %11 = vector.load %arg3[%c0_5, %c0_6] : memref<128x128xbf16, #tpu.memory_space<vmem>>, vector<128x128xbf16>
    %cst_7 = arith.constant dense<0.000000e+00> : vector<128x128xf32>
    %12 = tpu.matmul %6, %11, %cst_7 {dimension_numbers = #tpu.dot_dimension_numbers<[1], [0], [0], [1], [0, 0, 1, 1], [], []>} : vector<128x128xbf16>, vector<128x128xbf16>, vector<128x128xf32> -> vector<128x128xf32>
    %13 = vector.extract_strided_slice %2 {offsets = [0, 256], sizes = [128, 128], strides = [1, 1]} : vector<128x1024xf32> to vector<128x128xf32>
    %14 = arith.addf %12, %13 : vector<128x128xf32>
    %cst_8 = arith.constant 0.000000e+00 : f32
    %15 = vector.broadcast %cst_8 : f32 to vector<128x128xf32>
    %16 = arith.maximumf %14, %15 : vector<128x128xf32>
    %17 = arith.truncf %16 : vector<128x128xf32> to vector<128x128xbf16>
    %c0_9 = arith.constant 0 : index
    %c0_10 = arith.constant 0 : index
    %18 = vector.load %arg4[%c0_9, %c0_10] : memref<128x128xbf16, #tpu.memory_space<vmem>>, vector<128x128xbf16>
    %cst_11 = arith.constant dense<0.000000e+00> : vector<128x128xf32>
    %19 = tpu.matmul %10, %18, %cst_11 {dimension_numbers = #tpu.dot_dimension_numbers<[1], [0], [0], [1], [0, 0, 1, 1], [], []>} : vector<128x128xbf16>, vector<128x128xbf16>, vector<128x128xf32> -> vector<128x128xf32>
    %20 = vector.extract_strided_slice %2 {offsets = [0, 384], sizes = [128, 128], strides = [1, 1]} : vector<128x1024xf32> to vector<128x128xf32>
    %21 = arith.addf %19, %20 : vector<128x128xf32>
    %cst_12 = arith.constant 0.000000e+00 : f32
    %22 = vector.broadcast %cst_12 : f32 to vector<128x128xf32>
    %23 = arith.maximumf %21, %22 : vector<128x128xf32>
    %24 = arith.truncf %23 : vector<128x128xf32> to vector<128x128xbf16>
    %c0_13 = arith.constant 0 : index
    %c0_14 = arith.constant 0 : index
    %25 = vector.load %arg5[%c0_13, %c0_14] : memref<128x128xbf16, #tpu.memory_space<vmem>>, vector<128x128xbf16>
    %cst_15 = arith.constant dense<0.000000e+00> : vector<128x128xf32>
    %26 = tpu.matmul %17, %25, %cst_15 {dimension_numbers = #tpu.dot_dimension_numbers<[1], [0], [0], [1], [0, 0, 1, 1], [], []>} : vector<128x128xbf16>, vector<128x128xbf16>, vector<128x128xf32> -> vector<128x128xf32>
    %27 = vector.extract_strided_slice %2 {offsets = [0, 512], sizes = [128, 128], strides = [1, 1]} : vector<128x1024xf32> to vector<128x128xf32>
    %28 = arith.addf %26, %27 : vector<128x128xf32>
    %cst_16 = arith.constant 0.000000e+00 : f32
    %29 = vector.broadcast %cst_16 : f32 to vector<128x128xf32>
    %30 = arith.maximumf %28, %29 : vector<128x128xf32>
    %31 = arith.truncf %30 : vector<128x128xf32> to vector<128x128xbf16>
    %c0_17 = arith.constant 0 : index
    %c0_18 = arith.constant 0 : index
    %32 = vector.load %arg6[%c0_17, %c0_18] : memref<128x128xbf16, #tpu.memory_space<vmem>>, vector<128x128xbf16>
    %cst_19 = arith.constant dense<0.000000e+00> : vector<128x128xf32>
    %33 = tpu.matmul %24, %32, %cst_19 {dimension_numbers = #tpu.dot_dimension_numbers<[1], [0], [0], [1], [0, 0, 1, 1], [], []>} : vector<128x128xbf16>, vector<128x128xbf16>, vector<128x128xf32> -> vector<128x128xf32>
    %34 = vector.extract_strided_slice %2 {offsets = [0, 640], sizes = [128, 128], strides = [1, 1]} : vector<128x1024xf32> to vector<128x128xf32>
    %35 = arith.addf %33, %34 : vector<128x128xf32>
    %cst_20 = arith.constant 0.000000e+00 : f32
    %36 = vector.broadcast %cst_20 : f32 to vector<128x128xf32>
    %37 = arith.maximumf %35, %36 : vector<128x128xf32>
    %38 = arith.truncf %37 : vector<128x128xf32> to vector<128x128xbf16>
    %c0_21 = arith.constant 0 : index
    %c0_22 = arith.constant 0 : index
    %39 = vector.load %arg7[%c0_21, %c0_22] : memref<128x128xbf16, #tpu.memory_space<vmem>>, vector<128x128xbf16>
    %cst_23 = arith.constant dense<0.000000e+00> : vector<128x128xf32>
    %40 = tpu.matmul %31, %39, %cst_23 {dimension_numbers = #tpu.dot_dimension_numbers<[1], [0], [0], [1], [0, 0, 1, 1], [], []>} : vector<128x128xbf16>, vector<128x128xbf16>, vector<128x128xf32> -> vector<128x128xf32>
    %41 = vector.extract_strided_slice %2 {offsets = [0, 768], sizes = [128, 128], strides = [1, 1]} : vector<128x1024xf32> to vector<128x128xf32>
    %42 = arith.addf %40, %41 : vector<128x128xf32>
    %cst_24 = arith.constant 0.000000e+00 : f32
    %43 = vector.broadcast %cst_24 : f32 to vector<128x128xf32>
    %44 = arith.maximumf %42, %43 : vector<128x128xf32>
    %45 = arith.truncf %44 : vector<128x128xf32> to vector<128x128xbf16>
    %c0_25 = arith.constant 0 : index
    %c0_26 = arith.constant 0 : index
    %46 = vector.load %arg8[%c0_25, %c0_26] : memref<128x128xbf16, #tpu.memory_space<vmem>>, vector<128x128xbf16>
    %cst_27 = arith.constant dense<0.000000e+00> : vector<128x128xf32>
    %47 = tpu.matmul %38, %46, %cst_27 {dimension_numbers = #tpu.dot_dimension_numbers<[1], [0], [0], [1], [0, 0, 1, 1], [], []>} : vector<128x128xbf16>, vector<128x128xbf16>, vector<128x128xf32> -> vector<128x128xf32>
    %48 = vector.extract_strided_slice %2 {offsets = [0, 896], sizes = [128, 128], strides = [1, 1]} : vector<128x1024xf32> to vector<128x128xf32>
    %49 = arith.addf %47, %48 : vector<128x128xf32>
    %cst_28 = arith.constant 0.000000e+00 : f32
    %50 = vector.broadcast %cst_28 : f32 to vector<128x128xf32>
    %51 = arith.maximumf %49, %50 : vector<128x128xf32>
    %52 = arith.truncf %51 : vector<128x128xf32> to vector<128x128xbf16>
    %53 = tpu.concatenate %45, %52 in 1 : vector<128x128xbf16>, vector<128x128xbf16> -> vector<128x256xbf16>
    %c0_29 = arith.constant 0 : index
    %c0_30 = arith.constant 0 : index
    %54 = vector.load %arg9[%c0_29, %c0_30] : memref<256x128xbf16, #tpu.memory_space<vmem>>, vector<256x128xbf16>
    %cst_31 = arith.constant dense<0.000000e+00> : vector<128x128xf32>
    %55 = tpu.matmul %53, %54, %cst_31 {dimension_numbers = #tpu.dot_dimension_numbers<[1], [0], [0], [1], [0, 0, 1, 1], [], []>} : vector<128x256xbf16>, vector<256x128xbf16>, vector<128x128xf32> -> vector<128x128xf32>
    %c0_32 = arith.constant 0 : index
    %c0_33 = arith.constant 0 : index
    %56 = vector.load %arg10[%c0_32, %c0_33] : memref<1x128xf32, #tpu.memory_space<vmem>>, vector<1x128xf32>
    %57 = vector.broadcast %56 : vector<1x128xf32> to vector<128x128xf32>
    %58 = arith.addf %55, %57 : vector<128x128xf32>
    %c0_34 = arith.constant 0 : index
    %c0_35 = arith.constant 0 : index
    %59 = vector.load %arg11[%c0_34, %c0_35] : memref<128x128xf32, #tpu.memory_space<vmem>>, vector<128x128xf32>
    tpu.vector_store %arg11[%c0_34, %c0_35], %58 {strides = array<i32>} : memref<128x128xf32, #tpu.memory_space<vmem>>, vector<128x128xf32>,
    return
  }
  func.func @transform_0(%arg0: i32) -> (i32, i32) {
    %c0_i32 = arith.constant 0 : i32
    %c0_i32_0 = arith.constant 0 : i32
    return %arg0, %c0_i32 : i32, i32
  }
  func.func @transform_1(%arg0: i32) -> (i32, i32) {
    %c0_i32 = arith.constant 0 : i32
    %c0_i32_0 = arith.constant 0 : i32
    %c0_i32_1 = arith.constant 0 : i32
    return %c0_i32, %c0_i32_0 : i32, i32
  }
  func.func @transform_2(%arg0: i32) -> (i32, i32) {
    %c0_i32 = arith.constant 0 : i32
    %c0_i32_0 = arith.constant 0 : i32
    %c0_i32_1 = arith.constant 0 : i32
    return %c0_i32, %c0_i32_0 : i32, i32
  }
  func.func @transform_3(%arg0: i32) -> (i32, i32) {
    %c0_i32 = arith.constant 0 : i32
    %c0_i32_0 = arith.constant 0 : i32
    %c0_i32_1 = arith.constant 0 : i32
    return %c0_i32, %c0_i32_0 : i32, i32
  }
  func.func @transform_4(%arg0: i32) -> (i32, i32) {
    %c0_i32 = arith.constant 0 : i32
    %c0_i32_0 = arith.constant 0 : i32
    %c0_i32_1 = arith.constant 0 : i32
    return %c0_i32, %c0_i32_0 : i32, i32
  }
  func.func @transform_5(%arg0: i32) -> (i32, i32) {
    %c0_i32 = arith.constant 0 : i32
    %c0_i32_0 = arith.constant 0 : i32
    %c0_i32_1 = arith.constant 0 : i32
    return %c0_i32, %c0_i32_0 : i32, i32
  }
  func.func @transform_6(%arg0: i32) -> (i32, i32) {
    %c0_i32 = arith.constant 0 : i32
    %c0_i32_0 = arith.constant 0 : i32
    %c0_i32_1 = arith.constant 0 : i32
    return %c0_i32, %c0_i32_0 : i32, i32
  }
  func.func @transform_7(%arg0: i32) -> (i32, i32) {
    %c0_i32 = arith.constant 0 : i32
    %c0_i32_0 = arith.constant 0 : i32
    %c0_i32_1 = arith.constant 0 : i32
    return %c0_i32, %c0_i32_0 : i32, i32
  }
  func.func @transform_8(%arg0: i32) -> (i32, i32) {
    %c0_i32 = arith.constant 0 : i32
    %c0_i32_0 = arith.constant 0 : i32
    %c0_i32_1 = arith.constant 0 : i32
    return %c0_i32, %c0_i32_0 : i32, i32
  }
  func.func @transform_9(%arg0: i32) -> (i32, i32) {
    %c0_i32 = arith.constant 0 : i32
    %c0_i32_0 = arith.constant 0 : i32
    %c0_i32_1 = arith.constant 0 : i32
    return %c0_i32, %c0_i32_0 : i32, i32
  }
  func.func @transform_10(%arg0: i32) -> (i32, i32) {
    %c0_i32 = arith.constant 0 : i32
    %c0_i32_0 = arith.constant 0 : i32
    return %arg0, %c0_i32 : i32, i32
  }
}

module attributes {stable_mosaic.version = 11 : i64} {
  func.func @d2rl_kernel(%arg0: i32, %arg1: memref<128x128xbf16, #tpu.memory_space<vmem>>, %arg2: memref<128x1024xbf16, #tpu.memory_space<vmem>>, %arg3: memref<128x128xbf16, #tpu.memory_space<vmem>>, %arg4: memref<128x128xbf16, #tpu.memory_space<vmem>>, %arg5: memref<128x128xbf16, #tpu.memory_space<vmem>>, %arg6: memref<128x128xbf16, #tpu.memory_space<vmem>>, %arg7: memref<128x128xbf16, #tpu.memory_space<vmem>>, %arg8: memref<128x128xbf16, #tpu.memory_space<vmem>>, %arg9: memref<256x128xbf16, #tpu.memory_space<vmem>>, %arg10: memref<1x128xf32, #tpu.memory_space<vmem>>, %arg11: memref<128x128xf32, #tpu.memory_space<vmem>>) attributes {dimension_semantics = [#tpu.dimension_semantics<parallel>], iteration_bounds = array<i64: 2>, scalar_prefetch = 0 : i64, scratch_operands = 0 : i64, tpu.core_type = #tpu.core_type<tc>, window_params = [{transform_indices = @transform_0, window_bounds = array<i64: 128, 128>}, {pipeline_mode = #tpu.pipeline_mode<synchronous>, transform_indices = @transform_1, window_bounds = array<i64: 128, 1024>}, {pipeline_mode = #tpu.pipeline_mode<synchronous>, transform_indices = @transform_2, window_bounds = array<i64: 128, 128>}, {pipeline_mode = #tpu.pipeline_mode<synchronous>, transform_indices = @transform_3, window_bounds = array<i64: 128, 128>}, {pipeline_mode = #tpu.pipeline_mode<synchronous>, transform_indices = @transform_4, window_bounds = array<i64: 128, 128>}, {pipeline_mode = #tpu.pipeline_mode<synchronous>, transform_indices = @transform_5, window_bounds = array<i64: 128, 128>}, {pipeline_mode = #tpu.pipeline_mode<synchronous>, transform_indices = @transform_6, window_bounds = array<i64: 128, 128>}, {pipeline_mode = #tpu.pipeline_mode<synchronous>, transform_indices = @transform_7, window_bounds = array<i64: 128, 128>}, {pipeline_mode = #tpu.pipeline_mode<synchronous>, transform_indices = @transform_8, window_bounds = array<i64: 256, 128>}, {pipeline_mode = #tpu.pipeline_mode<synchronous>, transform_indices = @transform_9, window_bounds = array<i64: 1, 128>}, {transform_indices = @transform_10, window_bounds = array<i64: 128, 128>}]} {
    %c0 = arith.constant 0 : index
    %c0_0 = arith.constant 0 : index
    %0 = vector.load %arg1[%c0, %c0_0] : memref<128x128xbf16, #tpu.memory_space<vmem>>, vector<128x128xbf16>
    %c0_1 = arith.constant 0 : index
    %c0_2 = arith.constant 0 : index
    %1 = vector.load %arg2[%c0_1, %c0_2] : memref<128x1024xbf16, #tpu.memory_space<vmem>>, vector<128x1024xbf16>
    %cst = arith.constant dense<0.000000e+00> : vector<128x1024xf32>
    %2 = tpu.matmul %0, %1, %cst {dimension_numbers = #tpu.dot_dimension_numbers<[1], [0], [0], [1], [0, 0, 1, 1], [], []>} : vector<128x128xbf16>, vector<128x1024xbf16>, vector<128x1024xf32> -> vector<128x1024xf32>
    %3 = vector.extract_strided_slice %2 {offsets = [0, 0], sizes = [128, 128], strides = [1, 1]} : vector<128x1024xf32> to vector<128x128xf32>
    %cst_3 = arith.constant 0.000000e+00 : f32
    %4 = vector.broadcast %cst_3 : f32 to vector<128x128xf32>
    %5 = arith.maximumf %3, %4 : vector<128x128xf32>
    %6 = arith.truncf %5 : vector<128x128xf32> to vector<128x128xbf16>
    %7 = vector.extract_strided_slice %2 {offsets = [0, 128], sizes = [128, 128], strides = [1, 1]} : vector<128x1024xf32> to vector<128x128xf32>
    %cst_4 = arith.constant 0.000000e+00 : f32
    %8 = vector.broadcast %cst_4 : f32 to vector<128x128xf32>
    %9 = arith.maximumf %7, %8 : vector<128x128xf32>
    %10 = arith.truncf %9 : vector<128x128xf32> to vector<128x128xbf16>
    %c0_5 = arith.constant 0 : index
    %c0_6 = arith.constant 0 : index
    %11 = vector.load %arg3[%c0_5, %c0_6] : memref<128x128xbf16, #tpu.memory_space<vmem>>, vector<128x128xbf16>
    %cst_7 = arith.constant dense<0.000000e+00> : vector<128x128xf32>
    %12 = tpu.matmul %6, %11, %cst_7 {dimension_numbers = #tpu.dot_dimension_numbers<[1], [0], [0], [1], [0, 0, 1, 1], [], []>} : vector<128x128xbf16>, vector<128x128xbf16>, vector<128x128xf32> -> vector<128x128xf32>
    %13 = vector.extract_strided_slice %2 {offsets = [0, 256], sizes = [128, 128], strides = [1, 1]} : vector<128x1024xf32> to vector<128x128xf32>
    %14 = arith.addf %12, %13 : vector<128x128xf32>
    %cst_8 = arith.constant 0.000000e+00 : f32
    %15 = vector.broadcast %cst_8 : f32 to vector<128x128xf32>
    %16 = arith.maximumf %14, %15 : vector<128x128xf32>
    %17 = arith.truncf %16 : vector<128x128xf32> to vector<128x128xbf16>
    %c0_9 = arith.constant 0 : index
    %c0_10 = arith.constant 0 : index
    %18 = vector.load %arg4[%c0_9, %c0_10] : memref<128x128xbf16, #tpu.memory_space<vmem>>, vector<128x128xbf16>
    %cst_11 = arith.constant dense<0.000000e+00> : vector<128x128xf32>
    %19 = tpu.matmul %10, %18, %cst_11 {dimension_numbers = #tpu.dot_dimension_numbers<[1], [0], [0], [1], [0, 0, 1, 1], [], []>} : vector<128x128xbf16>, vector<128x128xbf16>, vector<128x128xf32> -> vector<128x128xf32>
    %20 = vector.extract_strided_slice %2 {offsets = [0, 384], sizes = [128, 128], strides = [1, 1]} : vector<128x1024xf32> to vector<128x128xf32>
    %21 = arith.addf %19, %20 : vector<128x128xf32>
    %cst_12 = arith.constant 0.000000e+00 : f32
    %22 = vector.broadcast %cst_12 : f32 to vector<128x128xf32>
    %23 = arith.maximumf %21, %22 : vector<128x128xf32>
    %24 = arith.truncf %23 : vector<128x128xf32> to vector<128x128xbf16>
    %c0_13 = arith.constant 0 : index
    %c0_14 = arith.constant 0 : index
    %25 = vector.load %arg5[%c0_13, %c0_14] : memref<128x128xbf16, #tpu.memory_space<vmem>>, vector<128x128xbf16>
    %cst_15 = arith.constant dense<0.000000e+00> : vector<128x128xf32>
    %26 = tpu.matmul %17, %25, %cst_15 {dimension_numbers = #tpu.dot_dimension_numbers<[1], [0], [0], [1], [0, 0, 1, 1], [], []>} : vector<128x128xbf16>, vector<128x128xbf16>, vector<128x128xf32> -> vector<128x128xf32>
    %27 = vector.extract_strided_slice %2 {offsets = [0, 512], sizes = [128, 128], strides = [1, 1]} : vector<128x1024xf32> to vector<128x128xf32>
    %28 = arith.addf %26, %27 : vector<128x128xf32>
    %cst_16 = arith.constant 0.000000e+00 : f32
    %29 = vector.broadcast %cst_16 : f32 to vector<128x128xf32>
    %30 = arith.maximumf %28, %29 : vector<128x128xf32>
    %31 = arith.truncf %30 : vector<128x128xf32> to vector<128x128xbf16>
    %c0_17 = arith.constant 0 : index
    %c0_18 = arith.constant 0 : index
    %32 = vector.load %arg6[%c0_17, %c0_18] : memref<128x128xbf16, #tpu.memory_space<vmem>>, vector<128x128xbf16>
    %cst_19 = arith.constant dense<0.000000e+00> : vector<128x128xf32>
    %33 = tpu.matmul %24, %32, %cst_19 {dimension_numbers = #tpu.dot_dimension_numbers<[1], [0], [0], [1], [0, 0, 1, 1], [], []>} : vector<128x128xbf16>, vector<128x128xbf16>, vector<128x128xf32> -> vector<128x128xf32>
    %34 = vector.extract_strided_slice %2 {offsets = [0, 640], sizes = [128, 128], strides = [1, 1]} : vector<128x1024xf32> to vector<128x128xf32>
    %35 = arith.addf %33, %34 : vector<128x128xf32>
    %cst_20 = arith.constant 0.000000e+00 : f32
    %36 = vector.broadcast %cst_20 : f32 to vector<128x128xf32>
    %37 = arith.maximumf %35, %36 : vector<128x128xf32>
    %38 = arith.truncf %37 : vector<128x128xf32> to vector<128x128xbf16>
    %c0_21 = arith.constant 0 : index
    %c0_22 = arith.constant 0 : index
    %39 = vector.load %arg7[%c0_21, %c0_22] : memref<128x128xbf16, #tpu.memory_space<vmem>>, vector<128x128xbf16>
    %cst_23 = arith.constant dense<0.000000e+00> : vector<128x128xf32>
    %40 = tpu.matmul %31, %39, %cst_23 {dimension_numbers = #tpu.dot_dimension_numbers<[1], [0], [0], [1], [0, 0, 1, 1], [], []>} : vector<128x128xbf16>, vector<128x128xbf16>, vector<128x128xf32> -> vector<128x128xf32>
    %41 = vector.extract_strided_slice %2 {offsets = [0, 768], sizes = [128, 128], strides = [1, 1]} : vector<128x1024xf32> to vector<128x128xf32>
    %42 = arith.addf %40, %41 : vector<128x128xf32>
    %cst_24 = arith.constant 0.000000e+00 : f32
    %43 = vector.broadcast %cst_24 : f32 to vector<128x128xf32>
    %44 = arith.maximumf %42, %43 : vector<128x128xf32>
    %45 = arith.truncf %44 : vector<128x128xf32> to vector<128x128xbf16>
    %c0_25 = arith.constant 0 : index
    %c0_26 = arith.constant 0 : index
    %46 = vector.load %arg8[%c0_25, %c0_26] : memref<128x128xbf16, #tpu.memory_space<vmem>>, vector<128x128xbf16>
    %cst_27 = arith.constant dense<0.000000e+00> : vector<128x128xf32>
    %47 = tpu.matmul %38, %46, %cst_27 {dimension_numbers = #tpu.dot_dimension_numbers<[1], [0], [0], [1], [0, 0, 1, 1], [], []>} : vector<128x128xbf16>, vector<128x128xbf16>, vector<128x128xf32> -> vector<128x128xf32>
    %48 = vector.extract_strided_slice %2 {offsets = [0, 896], sizes = [128, 128], strides = [1, 1]} : vector<128x1024xf32> to vector<128x128xf32>
    %49 = arith.addf %47, %48 : vector<128x128xf32>
    %cst_28 = arith.constant 0.000000e+00 : f32
    %50 = vector.broadcast %cst_28 : f32 to vector<128x128xf32>
    %51 = arith.maximumf %49, %50 : vector<128x128xf32>
    %52 = arith.truncf %51 : vector<128x128xf32> to vector<128x128xbf16>
    %53 = tpu.concatenate %45, %52 in 1 : vector<128x128xbf16>, vector<128x128xbf16> -> vector<128x256xbf16>
    %c0_29 = arith.constant 0 : index
    %c0_30 = arith.constant 0 : index
    %54 = vector.load %arg9[%c0_29, %c0_30] : memref<256x128xbf16, #tpu.memory_space<vmem>>, vector<256x128xbf16>
    %cst_31 = arith.constant dense<0.000000e+00> : vector<128x128xf32>
    %55 = tpu.matmul %53, %54, %cst_31 {dimension_numbers = #tpu.dot_dimension_numbers<[1], [0], [0], [1], [0, 0, 1, 1], [], []>} : vector<128x256xbf16>, vector<256x128xbf16>, vector<128x128xf32> -> vector<128x128xf32>
    %c0_32 = arith.constant 0 : index
    %c0_33 = arith.constant 0 : index
    %56 = vector.load %arg10[%c0_32, %c0_33] : memref<1x128xf32, #tpu.memory_space<vmem>>, vector<1x128xf32>
    %57 = vector.broadcast %56 : vector<1x128xf32> to vector<128x128xf32>
    %58 = arith.addf %55, %57 : vector<128x128xf32>
    %c0_34 = arith.constant 0 : index
    %c0_35 = arith.constant 0 : index
    %59 = vector.load %arg11[%c0_34, %c0_35] : memref<128x128xf32, #tpu.memory_space<vmem>>, vector<128x128xf32>
    tpu.vector_store %arg11[%c0_34, %c0_35], %58 {strides = array<i32>} : memref<128x128xf32, #tpu.memory_space<vmem>>, vector<128x128xf32>,
    return
  }
  func.func @transform_0(%arg0: i32) -> (i32, i32) {
    %c0_i32 = arith.constant 0 : i32
    %c0_i32_0 = arith.constant 0 : i32
    return %arg0, %c0_i32 : i32, i32
  }
  func.func @transform_1(%arg0: i32) -> (i32, i32) {
    %c0_i32 = arith.constant 0 : i32
    %c0_i32_0 = arith.constant 0 : i32
    %c0_i32_1 = arith.constant 0 : i32
    return %c0_i32, %c0_i32_0 : i32, i32
  }
  func.func @transform_2(%arg0: i32) -> (i32, i32) {
    %c0_i32 = arith.constant 0 : i32
    %c0_i32_0 = arith.constant 0 : i32
    %c0_i32_1 = arith.constant 0 : i32
    return %c0_i32, %c0_i32_0 : i32, i32
  }
  func.func @transform_3(%arg0: i32) -> (i32, i32) {
    %c0_i32 = arith.constant 0 : i32
    %c0_i32_0 = arith.constant 0 : i32
    %c0_i32_1 = arith.constant 0 : i32
    return %c0_i32, %c0_i32_0 : i32, i32
  }
  func.func @transform_4(%arg0: i32) -> (i32, i32) {
    %c0_i32 = arith.constant 0 : i32
    %c0_i32_0 = arith.constant 0 : i32
    %c0_i32_1 = arith.constant 0 : i32
    return %c0_i32, %c0_i32_0 : i32, i32
  }
  func.func @transform_5(%arg0: i32) -> (i32, i32) {
    %c0_i32 = arith.constant 0 : i32
    %c0_i32_0 = arith.constant 0 : i32
    %c0_i32_1 = arith.constant 0 : i32
    return %c0_i32, %c0_i32_0 : i32, i32
  }
  func.func @transform_6(%arg0: i32) -> (i32, i32) {
    %c0_i32 = arith.constant 0 : i32
    %c0_i32_0 = arith.constant 0 : i32
    %c0_i32_1 = arith.constant 0 : i32
    return %c0_i32, %c0_i32_0 : i32, i32
  }
  func.func @transform_7(%arg0: i32) -> (i32, i32) {
    %c0_i32 = arith.constant 0 : i32
    %c0_i32_0 = arith.constant 0 : i32
    %c0_i32_1 = arith.constant 0 : i32
    return %c0_i32, %c0_i32_0 : i32, i32
  }
  func.func @transform_8(%arg0: i32) -> (i32, i32) {
    %c0_i32 = arith.constant 0 : i32
    %c0_i32_0 = arith.constant 0 : i32
    %c0_i32_1 = arith.constant 0 : i32
    return %c0_i32, %c0_i32_0 : i32, i32
  }
  func.func @transform_9(%arg0: i32) -> (i32, i32) {
    %c0_i32 = arith.constant 0 : i32
    %c0_i32_0 = arith.constant 0 : i32
    %c0_i32_1 = arith.constant 0 : i32
    return %c0_i32, %c0_i32_0 : i32, i32
  }
  func.func @transform_10(%arg0: i32) -> (i32, i32) {
    %c0_i32 = arith.constant 0 : i32
    %c0_i32_0 = arith.constant 0 : i32
    return %arg0, %c0_i32 : i32, i32
  }
}

</mosaic_0001>

<llo_original>
// kernel: d2rl_forward.1
$region0: #{d2rl_forward.1}
  #allocation0 [shape = 'u32[]', space=smem, size = 0x4, offset = 0x4, fixed_abs, tag = 'smem constant byte address 0x4 - core index']
  #allocation1 [shape = 'u32[144,128]{1,0:T(1,128)}', space=vmem, size = 0x12000, scoped, tag = 'internal scratch']
  %s0 = inlined_call_operand.vmem [shape: bf16[256,128], index: 0, kind: input, shape index: {}]
  %s1 = inlined_call_operand.vmem [shape: bf16[128,1024], index: 1, kind: input, shape index: {}]
  %s2 = inlined_call_operand.vmem [shape: bf16[128,128], index: 2, kind: input, shape index: {}]
  %s3 = inlined_call_operand.vmem [shape: bf16[128,128], index: 3, kind: input, shape index: {}]
  %s4 = inlined_call_operand.vmem [shape: bf16[128,128], index: 4, kind: input, shape index: {}]
  %s5 = inlined_call_operand.vmem [shape: bf16[128,128], index: 5, kind: input, shape index: {}]
  %s6 = inlined_call_operand.vmem [shape: bf16[128,128], index: 6, kind: input, shape index: {}]
  %s7 = inlined_call_operand.vmem [shape: bf16[128,128], index: 7, kind: input, shape index: {}]
  %s8 = inlined_call_operand.vmem [shape: bf16[256,128], index: 8, kind: input, shape index: {}]
  %s9 = inlined_call_operand.vmem [shape: f32[1,128], index: 9, kind: input, shape index: {}]
  %s10 = inlined_call_operand.vmem [shape: f32[256,128], index: 10, kind: output, shape index: {}]
  %s11 = sld [smem:[#allocation0]]
  $region73: #{d2rl_forward.1} parent=0
    _
  %s13 = ssub.s32 1, %s11
  %s14 = scalar_select 0, %s13, %s11
  loop: start=0, step=1, limit=4
  $region2: #{d2rl_forward.1} parent=0 // loop_pre_header
    _
  $region3: #{d2rl_forward.1} parent=0 // loop_header
    %s16 = sphi 0, %s20
    %p17 = scmp.ge.s32.totalorder %s16, 4
    %s26 = sphi 0, %s28
    %s29 = sphi 0, %s26
    %s30 = sphi 0, %s29
    %s46 = sphi 0, %s30
    %s50 = sphi 0, %s50
    %s52 = sphi 0, %s50
    %s53 = sphi 0, %s52
    %s67 = sphi 0, %s53
    %s71 = sphi 0, %s71
    %s73 = sphi 0, %s71
    %s74 = sphi 0, %s73
    %s88 = sphi 0, %s74
    %s92 = sphi 0, %s92
    %s94 = sphi 0, %s92
    %s95 = sphi 0, %s94
    %s109 = sphi 0, %s95
    %s113 = sphi 0, %s113
    %s115 = sphi 0, %s113
    %s116 = sphi 0, %s115
    %s130 = sphi 0, %s116
    %s134 = sphi 0, %s134
    %s136 = sphi 0, %s134
    %s137 = sphi 0, %s136
    %s151 = sphi 0, %s137
    %s155 = sphi 0, %s155
    %s157 = sphi 0, %s155
    %s158 = sphi 0, %s157
    %s172 = sphi 0, %s158
    %s176 = sphi 0, %s176
    %s178 = sphi 0, %s176
    %s179 = sphi 0, %s178
    %s193 = sphi 0, %s179
    %s197 = sphi 0, %s197
    %s199 = sphi 0, %s197
    %s200 = sphi 0, %s199
    %s214 = sphi 0, %s200
    %s218 = sphi 0, %s218
    %s220 = sphi 0, %s218
    %s221 = sphi 0, %s220
    %s235 = sphi 0, %s221
    %s241 = sphi 0, %s243
    %s244 = sphi 0, %s241
    %s245 = sphi 0, %s244
    %s261 = sphi 0, %s245
  $region4: #{d2rl_forward.1} parent=0 // loop_header_branch
    %19 = sbr.rel (%p17) target = $region8
  $region5: #{d2rl_forward.1} parent=0 // loop_body
    %s21 = ssub.s32 %s16, 1
    %s22 = ssub.s32 %s16, 2
    %s23 = sadd.s32 %s16, 1
    %s24 = ssub.s32 %s16, %s23
    %p25 = scmp.eq.s32.totalorder %s24, 0
    %s27 = sadd.s32 %s26, 1
    %s28 = scalar_select %p25, %s26, %s27
    %p31 = pneg %p25
    %p32 = scmp.eq.s32.totalorder %s16, 1
    %p33 = por %p31, %p32
    %p34 = scmp.ne.s32.totalorder %s26, %s29
    %p35 = scmp.eq.s32.totalorder %s16, 0
    %p36 = por %p34, %p35
    %p37 = scmp.ne.s32.totalorder %s26, %s29
    %p38 = scmp.eq.s32.totalorder %s21, 1
    %p39 = por %p37, %p38
    %p40 = scmp.ne.s32.totalorder %s29, %s30
    %p41 = scmp.eq.s32.totalorder %s21, 0
    %p42 = por %p40, %p41
    %p43 = scmp.ne.s32.totalorder %s29, %s30
    %p44 = scmp.eq.s32.totalorder %s22, 1
    %p45 = por %p43, %p44
    %p47 = scmp.ne.s32.totalorder %s30, %s46
    %p48 = scmp.eq.s32.totalorder %s22, 0
    %p49 = por %p47, %p48
    %s51 = sadd.s32 %s50, 1
    %p54 = scmp.eq.s32.totalorder %s16, 1
    %p55 = scmp.ne.s32.totalorder %s50, %s52
    %p56 = scmp.eq.s32.totalorder %s16, 0
    %p57 = por %p55, %p56
    %p58 = scmp.ne.s32.totalorder %s50, %s52
    %p59 = scmp.eq.s32.totalorder %s21, 1
    %p60 = por %p58, %p59
    %p61 = scmp.ne.s32.totalorder %s52, %s53
    %p62 = scmp.eq.s32.totalorder %s21, 0
    %p63 = por %p61, %p62
    %p64 = scmp.ne.s32.totalorder %s52, %s53
    %p65 = scmp.eq.s32.totalorder %s22, 1
    %p66 = por %p64, %p65
    %p68 = scmp.ne.s32.totalorder %s53, %s67
    %p69 = scmp.eq.s32.totalorder %s22, 0
    %p70 = por %p68, %p69
    %s72 = sadd.s32 %s71, 1
    %p75 = scmp.eq.s32.totalorder %s16, 1
    %p76 = scmp.ne.s32.totalorder %s71, %s73
    %p77 = scmp.eq.s32.totalorder %s16, 0
    %p78 = por %p76, %p77
    %p79 = scmp.ne.s32.totalorder %s71, %s73
    %p80 = scmp.eq.s32.totalorder %s21, 1
    %p81 = por %p79, %p80
    %p82 = scmp.ne.s32.totalorder %s73, %s74
    %p83 = scmp.eq.s32.totalorder %s21, 0
    %p84 = por %p82, %p83
    %p85 = scmp.ne.s32.totalorder %s73, %s74
    %p86 = scmp.eq.s32.totalorder %s22, 1
    %p87 = por %p85, %p86
    %p89 = scmp.ne.s32.totalorder %s74, %s88
    %p90 = scmp.eq.s32.totalorder %s22, 0
    %p91 = por %p89, %p90
    %s93 = sadd.s32 %s92, 1
    %p96 = scmp.eq.s32.totalorder %s16, 1
    %p97 = scmp.ne.s32.totalorder %s92, %s94
    %p98 = scmp.eq.s32.totalorder %s16, 0
    %p99 = por %p97, %p98
    %p100 = scmp.ne.s32.totalorder %s92, %s94
    %p101 = scmp.eq.s32.totalorder %s21, 1
    %p102 = por %p100, %p101
    %p103 = scmp.ne.s32.totalorder %s94, %s95
    %p104 = scmp.eq.s32.totalorder %s21, 0
    %p105 = por %p103, %p104
    %p106 = scmp.ne.s32.totalorder %s94, %s95
    %p107 = scmp.eq.s32.totalorder %s22, 1
    %p108 = por %p106, %p107
    %p110 = scmp.ne.s32.totalorder %s95, %s109
    %p111 = scmp.eq.s32.totalorder %s22, 0
    %p112 = por %p110, %p111
    %s114 = sadd.s32 %s113, 1
    %p117 = scmp.eq.s32.totalorder %s16, 1
    %p118 = scmp.ne.s32.totalorder %s113, %s115
    %p119 = scmp.eq.s32.totalorder %s16, 0
    %p120 = por %p118, %p119
    %p121 = scmp.ne.s32.totalorder %s113, %s115
    %p122 = scmp.eq.s32.totalorder %s21, 1
    %p123 = por %p121, %p122
    %p124 = scmp.ne.s32.totalorder %s115, %s116
    %p125 = scmp.eq.s32.totalorder %s21, 0
    %p126 = por %p124, %p125
    %p127 = scmp.ne.s32.totalorder %s115, %s116
    %p128 = scmp.eq.s32.totalorder %s22, 1
    %p129 = por %p127, %p128
    %p131 = scmp.ne.s32.totalorder %s116, %s130
    %p132 = scmp.eq.s32.totalorder %s22, 0
    %p133 = por %p131, %p132
    %s135 = sadd.s32 %s134, 1
    %p138 = scmp.eq.s32.totalorder %s16, 1
    %p139 = scmp.ne.s32.totalorder %s134, %s136
    %p140 = scmp.eq.s32.totalorder %s16, 0
    %p141 = por %p139, %p140
    %p142 = scmp.ne.s32.totalorder %s134, %s136
    %p143 = scmp.eq.s32.totalorder %s21, 1
    %p144 = por %p142, %p143
    %p145 = scmp.ne.s32.totalorder %s136, %s137
    %p146 = scmp.eq.s32.totalorder %s21, 0
    %p147 = por %p145, %p146
    %p148 = scmp.ne.s32.totalorder %s136, %s137
    %p149 = scmp.eq.s32.totalorder %s22, 1
    %p150 = por %p148, %p149
    %p152 = scmp.ne.s32.totalorder %s137, %s151
    %p153 = scmp.eq.s32.totalorder %s22, 0
    %p154 = por %p152, %p153
    %s156 = sadd.s32 %s155, 1
    %p159 = scmp.eq.s32.totalorder %s16, 1
    %p160 = scmp.ne.s32.totalorder %s155, %s157
    %p161 = scmp.eq.s32.totalorder %s16, 0
    %p162 = por %p160, %p161
    %p163 = scmp.ne.s32.totalorder %s155, %s157
    %p164 = scmp.eq.s32.totalorder %s21, 1
    %p165 = por %p163, %p164
    %p166 = scmp.ne.s32.totalorder %s157, %s158
    %p167 = scmp.eq.s32.totalorder %s21, 0
    %p168 = por %p166, %p167
    %p169 = scmp.ne.s32.totalorder %s157, %s158
    %p170 = scmp.eq.s32.totalorder %s22, 1
    %p171 = por %p169, %p170
    %p173 = scmp.ne.s32.totalorder %s158, %s172
    %p174 = scmp.eq.s32.totalorder %s22, 0
    %p175 = por %p173, %p174
    %s177 = sadd.s32 %s176, 1
    %p180 = scmp.eq.s32.totalorder %s16, 1
    %p181 = scmp.ne.s32.totalorder %s176, %s178
    %p182 = scmp.eq.s32.totalorder %s16, 0
    %p183 = por %p181, %p182
    %p184 = scmp.ne.s32.totalorder %s176, %s178
    %p185 = scmp.eq.s32.totalorder %s21, 1
    %p186 = por %p184, %p185
    %p187 = scmp.ne.s32.totalorder %s178, %s179
    %p188 = scmp.eq.s32.totalorder %s21, 0
    %p189 = por %p187, %p188
    %p190 = scmp.ne.s32.totalorder %s178, %s179
    %p191 = scmp.eq.s32.totalorder %s22, 1
    %p192 = por %p190, %p191
    %p194 = scmp.ne.s32.totalorder %s179, %s193
    %p195 = scmp.eq.s32.totalorder %s22, 0
    %p196 = por %p194, %p195
    %s198 = sadd.s32 %s197, 1
    %p201 = scmp.eq.s32.totalorder %s16, 1
    %p202 = scmp.ne.s32.totalorder %s197, %s199
    %p203 = scmp.eq.s32.totalorder %s16, 0
    %p204 = por %p202, %p203
    %p205 = scmp.ne.s32.totalorder %s197, %s199
    %p206 = scmp.eq.s32.totalorder %s21, 1
    %p207 = por %p205, %p206
    %p208 = scmp.ne.s32.totalorder %s199, %s200
    %p209 = scmp.eq.s32.totalorder %s21, 0
    %p210 = por %p208, %p209
    %p211 = scmp.ne.s32.totalorder %s199, %s200
    %p212 = scmp.eq.s32.totalorder %s22, 1
    %p213 = por %p211, %p212
    %p215 = scmp.ne.s32.totalorder %s200, %s214
    %p216 = scmp.eq.s32.totalorder %s22, 0
    %p217 = por %p215, %p216
    %s219 = sadd.s32 %s218, 1
    %p222 = scmp.eq.s32.totalorder %s16, 1
    %p223 = scmp.ne.s32.totalorder %s218, %s220
    %p224 = scmp.eq.s32.totalorder %s16, 0
    %p225 = por %p223, %p224
    %p226 = scmp.ne.s32.totalorder %s218, %s220
    %p227 = scmp.eq.s32.totalorder %s21, 1
    %p228 = por %p226, %p227
    %p229 = scmp.ne.s32.totalorder %s220, %s221
    %p230 = scmp.eq.s32.totalorder %s21, 0
    %p231 = por %p229, %p230
    %p232 = scmp.ne.s32.totalorder %s220, %s221
    %p233 = scmp.eq.s32.totalorder %s22, 1
    %p234 = por %p232, %p233
    %p236 = scmp.ne.s32.totalorder %s221, %s235
    %p237 = scmp.eq.s32.totalorder %s22, 0
    %p238 = por %p236, %p237
    %s239 = ssub.s32 %s16, %s23
    %p240 = scmp.eq.s32.totalorder %s239, 0
    %s242 = sadd.s32 %s241, 1
    %s243 = scalar_select %p240, %s241, %s242
    %p246 = pneg %p240
    %p247 = scmp.eq.s32.totalorder %s16, 1
    %p248 = por %p246, %p247
    %p249 = scmp.ne.s32.totalorder %s241, %s244
    %p250 = scmp.eq.s32.totalorder %s16, 0
    %p251 = por %p249, %p250
    %p252 = scmp.ne.s32.totalorder %s241, %s244
    %p253 = scmp.eq.s32.totalorder %s21, 1
    %p254 = por %p252, %p253
    %p255 = scmp.ne.s32.totalorder %s244, %s245
    %p256 = scmp.eq.s32.totalorder %s21, 0
    %p257 = por %p255, %p256
    %p258 = scmp.ne.s32.totalorder %s244, %s245
    %p259 = scmp.eq.s32.totalorder %s22, 1
    %p260 = por %p258, %p259
    %p262 = scmp.ne.s32.totalorder %s245, %s261
    %p263 = scmp.eq.s32.totalorder %s22, 0
    %p264 = por %p262, %p263
    %p265 = scmp.le.s32.totalorder 1, %s16
    %p266 = scmp.lt.s32.totalorder %s16, 3
    %p267 = pnand %p265, %p266
    %p268 = pneg %p267
    // Predicated region
    $region9: #{d2rl_forward.1} parent=5 // pred_check
      _
    $region10: #{d2rl_forward.1} parent=5 // pred_check_branch
      %270 = sbr.rel (%p267) target = $region12
    $region11: #{d2rl_forward.1} parent=5 // pred_region
      %s271 = ssub.s32 %s16, 1
      // Predicated region
      $region13: #{d2rl_forward.1} parent=11 // pred_check
        %p272 = pneg %p63
      $region14: #{d2rl_forward.1} parent=11 // pred_check_branch
        %274 = sbr.rel (%p272) target = $region16
      $region15: #{d2rl_forward.1} parent=11 // pred_region
        _
      $region16: #{d2rl_forward.1} parent=11 // pred_fallthru
        _
      // Predicated region
      $region17: #{d2rl_forward.1} parent=11 // pred_check
        %p275 = pneg %p84
      $region18: #{d2rl_forward.1} parent=11 // pred_check_branch
        %277 = sbr.rel (%p275) target = $region20
      $region19: #{d2rl_forward.1} parent=11 // pred_region
        _
      $region20: #{d2rl_forward.1} parent=11 // pred_fallthru
        _
      // Predicated region
      $region21: #{d2rl_forward.1} parent=11 // pred_check
        %p278 = pneg %p105
      $region22: #{d2rl_forward.1} parent=11 // pred_check_branch
        %280 = sbr.rel (%p278) target = $region24
      $region23: #{d2rl_forward.1} parent=11 // pred_region
        _
      $region24: #{d2rl_forward.1} parent=11 // pred_fallthru
        _
      // Predicated region
      $region25: #{d2rl_forward.1} parent=11 // pred_check
        %p281 = pneg %p126
      $region26: #{d2rl_forward.1} parent=11 // pred_check_branch
        %283 = sbr.rel (%p281) target = $region28
      $region27: #{d2rl_forward.1} parent=11 // pred_region
        _
      $region28: #{d2rl_forward.1} parent=11 // pred_fallthru
        _
      // Predicated region
      $region29: #{d2rl_forward.1} parent=11 // pred_check
        %p284 = pneg %p147
      $region30: #{d2rl_forward.1} parent=11 // pred_check_branch
        %286 = sbr.rel (%p284) target = $region32
      $region31: #{d2rl_forward.1} parent=11 // pred_region
        _
      $region32: #{d2rl_forward.1} parent=11 // pred_fallthru
        _
      // Predicated region
      $region33: #{d2rl_forward.1} parent=11 // pred_check
        %p287 = pneg %p168
      $region34: #{d2rl_forward.1} parent=11 // pred_check_branch
        %289 = sbr.rel (%p287) target = $region36
      $region35: #{d2rl_forward.1} parent=11 // pred_region
        _
      $region36: #{d2rl_forward.1} parent=11 // pred_fallthru
        _
      // Predicated region
      $region37: #{d2rl_forward.1} parent=11 // pred_check
        %p290 = pneg %p189
      $region38: #{d2rl_forward.1} parent=11 // pred_check_branch
        %292 = sbr.rel (%p290) target = $region40
      $region39: #{d2rl_forward.1} parent=11 // pred_region
        _
      $region40: #{d2rl_forward.1} parent=11 // pred_fallthru
        _
      // Predicated region
      $region41: #{d2rl_forward.1} parent=11 // pred_check
        %p293 = pneg %p210
      $region42: #{d2rl_forward.1} parent=11 // pred_check_branch
        %295 = sbr.rel (%p293) target = $region44
      $region43: #{d2rl_forward.1} parent=11 // pred_region
        _
      $region44: #{d2rl_forward.1} parent=11 // pred_fallthru
        _
      // Predicated region
      $region45: #{d2rl_forward.1} parent=11 // pred_check
        %p296 = pneg %p231
      $region46: #{d2rl_forward.1} parent=11 // pred_check_branch
        %298 = sbr.rel (%p296) target = $region48
      $region47: #{d2rl_forward.1} parent=11 // pred_region
        _
      $region48: #{d2rl_forward.1} parent=11 // pred_fallthru
        _
    $region12: #{d2rl_forward.1} parent=5 // pred_fallthru
      _
    %p299 = scmp.lt.s32.totalorder %s16, 2
    // Predicated region
    $region49: #{d2rl_forward.1} parent=5 // pred_check
      %p300 = pneg %p299
    $region50: #{d2rl_forward.1} parent=5 // pred_check_branch
      %302 = sbr.rel (%p300) target = $region52
    $region51: #{d2rl_forward.1} parent=5 // pred_region
      // Predicated region
      $region53: #{d2rl_forward.1} parent=51 // pred_check
        %p303 = pneg %p36
      $region54: #{d2rl_forward.1} parent=51 // pred_check_branch
        %305 = sbr.rel (%p303) target = $region56
      $region55: #{d2rl_forward.1} parent=51 // pred_region
        %s306 = smul.u32 16, %s16
        %p307 = scmp.lt.s32.totalorder %s306, 31
        %s308 = scalar_select %p307, %s306, 31
        %s309 = smul.addr %s308, 4
        %s310 = scalar_lea.vmem %s0, %s309
        %s311 = smul.u32 16, %s16
      $region56: #{d2rl_forward.1} parent=51 // pred_fallthru
        _
    $region52: #{d2rl_forward.1} parent=5 // pred_fallthru
      _
    %p312 = scmp.le.s32.totalorder 1, %s16
    %p313 = scmp.lt.s32.totalorder %s16, 3
    %p314 = pnand %p312, %p313
    %p315 = pneg %p314
    // Predicated region
    $region57: #{d2rl_forward.1} parent=5 // pred_check
      _
    $region58: #{d2rl_forward.1} parent=5 // pred_check_branch
      %317 = sbr.rel (%p314) target = $region60
    $region59: #{d2rl_forward.1} parent=5 // pred_region
      %s318 = ssub.s32 %s16, 1
      %s319 = smul.u32 16, %s21
      %p320 = scmp.lt.s32.totalorder %s319, 31
      %s321 = scalar_select %p320, %s319, 31
      %s322 = smul.addr %s321, 4
      %s323 = scalar_lea.vmem %s0, %s322
      %p324 = pneg %p42
      %p325 = pneg %p39
      %p326 = pneg %p63
      %p327 = pneg %p60
      %p328 = pneg %p84
      %p329 = pneg %p81
      %p330 = pneg %p105
      %p331 = pneg %p102
      %p332 = pneg %p126
      %p333 = pneg %p123
      %p334 = pneg %p147
      %p335 = pneg %p144
      %p336 = pneg %p168
      %p337 = pneg %p165
      %p338 = pneg %p189
      %p339 = pneg %p186
      %p340 = pneg %p210
      %p341 = pneg %p207
      %p342 = pneg %p231
      %p343 = pneg %p228
      %p344 = pneg %p257
      %p345 = pneg %p254
      %s346 = smul.u32 16, %s21
      %p347 = scmp.lt.s32.totalorder %s346, 31
      %s348 = scalar_select %p347, %s346, 31
      %s349 = smul.addr %s348, 8
      %s350 = scalar_lea.vmem %s10, %s349
      %s351 = smul.u32 16, %s21
      %p352 = scmp.lt.s32.totalorder %s351, 31
      %s353 = scalar_select %p352, %s351, 31
      %s354 = smul.addr %s353, 4
      %s355 = scalar_lea.vmem %s0, %s354
      %s356 = smul.u32 16, %s21
      %s357 = smul.u32 16, %s21
      %p358 = scmp.lt.s32.totalorder %s357, 31
      %s359 = scalar_select %p358, %s357, 31
      %s360 = smul.addr %s359, 8
      %s361 = scalar_lea.vmem %s10, %s360
      %s362 = smul.u32 16, %s21
      %v364 = vld [vmem:[%s355] sm:$0xf]
      %v365 = vld [vmem:[%s355 + $0x4] sm:$0xf]
      %v366 = vld [vmem:[%s355 + $0x8] sm:$0xf]
      %v367 = vld [vmem:[%s355 + $0xc] sm:$0xf]
      %v368 = vld [vmem:[%s355 + $0x10] sm:$0xf]
      %v369 = vld [vmem:[%s355 + $0x14] sm:$0xf]
      %v370 = vld [vmem:[%s355 + $0x18] sm:$0xf]
      %v371 = vld [vmem:[%s355 + $0x1c] sm:$0xf]
      %v372 = vld [vmem:[%s355 + $0x20] sm:$0xf]
      %v373 = vld [vmem:[%s355 + $0x24] sm:$0xf]
      %v374 = vld [vmem:[%s355 + $0x28] sm:$0xf]
      %v375 = vld [vmem:[%s355 + $0x2c] sm:$0xf]
      %v376 = vld [vmem:[%s355 + $0x30] sm:$0xf]
      %v377 = vld [vmem:[%s355 + $0x34] sm:$0xf]
      %v378 = vld [vmem:[%s355 + $0x38] sm:$0xf]
      %v379 = vld [vmem:[%s355 + $0x3c] sm:$0xf]
      %v380 = vld [vmem:[%s1] sm:$0xff]
      %v381 = vld [vmem:[%s1 + $0x8] sm:$0xff]
      %v382 = vld [vmem:[%s1 + $0x10] sm:$0xff]
      %v383 = vld [vmem:[%s1 + $0x18] sm:$0xff]
      %v384 = vld [vmem:[%s1 + $0x20] sm:$0xff]
      %v385 = vld [vmem:[%s1 + $0x28] sm:$0xff]
      %v386 = vld [vmem:[%s1 + $0x30] sm:$0xff]
      %v387 = vld [vmem:[%s1 + $0x38] sm:$0xff]
      %v388 = vld [vmem:[%s1 + $0x40] sm:$0xff]
      %v389 = vld [vmem:[%s1 + $0x48] sm:$0xff]
      %v390 = vld [vmem:[%s1 + $0x50] sm:$0xff]
      %v391 = vld [vmem:[%s1 + $0x58] sm:$0xff]
      %v392 = vld [vmem:[%s1 + $0x60] sm:$0xff]
      %v393 = vld [vmem:[%s1 + $0x68] sm:$0xff]
      %v394 = vld [vmem:[%s1 + $0x70] sm:$0xff]
      %v395 = vld [vmem:[%s1 + $0x78] sm:$0xff]
      %v396 = vld [vmem:[%s1 + $0x80] sm:$0xff]
      %v397 = vld [vmem:[%s1 + $0x88] sm:$0xff]
      %v398 = vld [vmem:[%s1 + $0x90] sm:$0xff]
      %v399 = vld [vmem:[%s1 + $0x98] sm:$0xff]
      %v400 = vld [vmem:[%s1 + $0xa0] sm:$0xff]
      %v401 = vld [vmem:[%s1 + $0xa8] sm:$0xff]
      %v402 = vld [vmem:[%s1 + $0xb0] sm:$0xff]
      %v403 = vld [vmem:[%s1 + $0xb8] sm:$0xff]
      %v404 = vld [vmem:[%s1 + $0xc0] sm:$0xff]
      %v405 = vld [vmem:[%s1 + $0xc8] sm:$0xff]
      %v406 = vld [vmem:[%s1 + $0xd0] sm:$0xff]
      %v407 = vld [vmem:[%s1 + $0xd8] sm:$0xff]
      %v408 = vld [vmem:[%s1 + $0xe0] sm:$0xff]
      %v409 = vld [vmem:[%s1 + $0xe8] sm:$0xff]
      %v410 = vld [vmem:[%s1 + $0xf0] sm:$0xff]
      %v411 = vld [vmem:[%s1 + $0xf8] sm:$0xff]
      %v412 = vld [vmem:[%s1 + $0x100] sm:$0xff]
      %v413 = vld [vmem:[%s1 + $0x108] sm:$0xff]
      %v414 = vld [vmem:[%s1 + $0x110] sm:$0xff]
      %v415 = vld [vmem:[%s1 + $0x118] sm:$0xff]
      %v416 = vld [vmem:[%s1 + $0x120] sm:$0xff]
      %v417 = vld [vmem:[%s1 + $0x128] sm:$0xff]
      %v418 = vld [vmem:[%s1 + $0x130] sm:$0xff]
      %v419 = vld [vmem:[%s1 + $0x138] sm:$0xff]
      %v420 = vld [vmem:[%s1 + $0x140] sm:$0xff]
      %v421 = vld [vmem:[%s1 + $0x148] sm:$0xff]
      %v422 = vld [vmem:[%s1 + $0x150] sm:$0xff]
      %v423 = vld [vmem:[%s1 + $0x158] sm:$0xff]
      %v424 = vld [vmem:[%s1 + $0x160] sm:$0xff]
      %v425 = vld [vmem:[%s1 + $0x168] sm:$0xff]
      %v426 = vld [vmem:[%s1 + $0x170] sm:$0xff]
      %v427 = vld [vmem:[%s1 + $0x178] sm:$0xff]
      %v428 = vld [vmem:[%s1 + $0x180] sm:$0xff]
      %v429 = vld [vmem:[%s1 + $0x188] sm:$0xff]
      %v430 = vld [vmem:[%s1 + $0x190] sm:$0xff]
      %v431 = vld [vmem:[%s1 + $0x198] sm:$0xff]
      %v432 = vld [vmem:[%s1 + $0x1a0] sm:$0xff]
      %v433 = vld [vmem:[%s1 + $0x1a8] sm:$0xff]
      %v434 = vld [vmem:[%s1 + $0x1b0] sm:$0xff]
      %v435 = vld [vmem:[%s1 + $0x1b8] sm:$0xff]
      %v436 = vld [vmem:[%s1 + $0x1c0] sm:$0xff]
      %v437 = vld [vmem:[%s1 + $0x1c8] sm:$0xff]
      %v438 = vld [vmem:[%s1 + $0x1d0] sm:$0xff]
      %v439 = vld [vmem:[%s1 + $0x1d8] sm:$0xff]
      %v440 = vld [vmem:[%s1 + $0x1e0] sm:$0xff]
      %v441 = vld [vmem:[%s1 + $0x1e8] sm:$0xff]
      %v442 = vld [vmem:[%s1 + $0x1f0] sm:$0xff]
      %v443 = vld [vmem:[%s1 + $0x1f8] sm:$0xff]
      %v460 = vunpack.c.l.b16 %v364
      %v461 = vunpack.c.l.b16 %v365
      %v462 = vunpack.c.l.b16 %v366
      %v463 = vunpack.c.l.b16 %v367
      %v464 = vunpack.c.l.b16 %v368
      %v465 = vunpack.c.l.b16 %v369
      %v466 = vunpack.c.l.b16 %v370
      %v467 = vunpack.c.l.b16 %v371
      %v468 = vunpack.c.l.b16 %v372
      %v469 = vunpack.c.l.b16 %v373
      %v470 = vunpack.c.l.b16 %v374
      %v471 = vunpack.c.l.b16 %v375
      %v472 = vunpack.c.l.b16 %v376
      %v473 = vunpack.c.l.b16 %v377
      %v474 = vunpack.c.l.b16 %v378
      %v475 = vunpack.c.l.b16 %v379
      %v476 = vpack.c.b16 %v461, %v460
      %v477 = vpack.c.b16 %v463, %v462
      %v478 = vpack.c.b16 %v465, %v464
      %v479 = vpack.c.b16 %v467, %v466
      %v480 = vpack.c.b16 %v469, %v468
      %v481 = vpack.c.b16 %v471, %v470
      %v482 = vpack.c.b16 %v473, %v472
      %v483 = vpack.c.b16 %v475, %v474
      %v556 = vunpack.c.l.b16 %v380
      %v557 = vunpack.c.h.b16 %v380
      %v558 = vunpack.c.l.b16 %v381
      %v559 = vunpack.c.h.b16 %v381
      %v560 = vunpack.c.l.b16 %v382
      %v561 = vunpack.c.h.b16 %v382
      %v562 = vunpack.c.l.b16 %v383
      %v563 = vunpack.c.h.b16 %v383
      %v564 = vunpack.c.l.b16 %v384
      %v565 = vunpack.c.h.b16 %v384
      %v566 = vunpack.c.l.b16 %v385
      %v567 = vunpack.c.h.b16 %v385
      %v568 = vunpack.c.l.b16 %v386
      %v569 = vunpack.c.h.b16 %v386
      %v570 = vunpack.c.l.b16 %v387
      %v571 = vunpack.c.h.b16 %v387
      %v572 = vunpack.c.l.b16 %v388
      %v573 = vunpack.c.h.b16 %v388
      %v574 = vunpack.c.l.b16 %v389
      %v575 = vunpack.c.h.b16 %v389
      %v576 = vunpack.c.l.b16 %v390
      %v577 = vunpack.c.h.b16 %v390
      %v578 = vunpack.c.l.b16 %v391
      %v579 = vunpack.c.h.b16 %v391
      %v580 = vunpack.c.l.b16 %v392
      %v581 = vunpack.c.h.b16 %v392
      %v582 = vunpack.c.l.b16 %v393
      %v583 = vunpack.c.h.b16 %v393
      %v584 = vunpack.c.l.b16 %v394
      %v585 = vunpack.c.h.b16 %v394
      %v586 = vunpack.c.l.b16 %v395
      %v587 = vunpack.c.h.b16 %v395
      %v588 = vunpack.c.l.b16 %v396
      %v589 = vunpack.c.h.b16 %v396
      %v590 = vunpack.c.l.b16 %v397
      %v591 = vunpack.c.h.b16 %v397
      %v592 = vunpack.c.l.b16 %v398
      %v593 = vunpack.c.h.b16 %v398
      %v594 = vunpack.c.l.b16 %v399
      %v595 = vunpack.c.h.b16 %v399
      %v596 = vunpack.c.l.b16 %v400
      %v597 = vunpack.c.h.b16 %v400
      %v598 = vunpack.c.l.b16 %v401
      %v599 = vunpack.c.h.b16 %v401
      %v600 = vunpack.c.l.b16 %v402
      %v601 = vunpack.c.h.b16 %v402
      %v602 = vunpack.c.l.b16 %v403
      %v603 = vunpack.c.h.b16 %v403
      %v604 = vunpack.c.l.b16 %v404
      %v605 = vunpack.c.h.b16 %v404
      %v606 = vunpack.c.l.b16 %v405
      %v607 = vunpack.c.h.b16 %v405
      %v608 = vunpack.c.l.b16 %v406
      %v609 = vunpack.c.h.b16 %v406
      %v610 = vunpack.c.l.b16 %v407
      %v611 = vunpack.c.h.b16 %v407
      %v612 = vunpack.c.l.b16 %v408
      %v613 = vunpack.c.h.b16 %v408
      %v614 = vunpack.c.l.b16 %v409
      %v615 = vunpack.c.h.b16 %v409
      %v616 = vunpack.c.l.b16 %v410
      %v617 = vunpack.c.h.b16 %v410
      %v618 = vunpack.c.l.b16 %v411
      %v619 = vunpack.c.h.b16 %v411
      %v620 = vunpack.c.l.b16 %v412
      %v621 = vunpack.c.h.b16 %v412
      %v622 = vunpack.c.l.b16 %v413
      %v623 = vunpack.c.h.b16 %v413
      %v624 = vunpack.c.l.b16 %v414
      %v625 = vunpack.c.h.b16 %v414
      %v626 = vunpack.c.l.b16 %v415
      %v627 = vunpack.c.h.b16 %v415
      %v628 = vunpack.c.l.b16 %v416
      %v629 = vunpack.c.h.b16 %v416
      %v630 = vunpack.c.l.b16 %v417
      %v631 = vunpack.c.h.b16 %v417
      %v632 = vunpack.c.l.b16 %v418
      %v633 = vunpack.c.h.b16 %v418
      %v634 = vunpack.c.l.b16 %v419
      %v635 = vunpack.c.h.b16 %v419
      %v636 = vunpack.c.l.b16 %v420
      %v637 = vunpack.c.h.b16 %v420
      %v638 = vunpack.c.l.b16 %v421
      %v639 = vunpack.c.h.b16 %v421
      %v640 = vunpack.c.l.b16 %v422
      %v641 = vunpack.c.h.b16 %v422
      %v642 = vunpack.c.l.b16 %v423
      %v643 = vunpack.c.h.b16 %v423
      %v644 = vunpack.c.l.b16 %v424
      %v645 = vunpack.c.h.b16 %v424
      %v646 = vunpack.c.l.b16 %v425
      %v647 = vunpack.c.h.b16 %v425
      %v648 = vunpack.c.l.b16 %v426
      %v649 = vunpack.c.h.b16 %v426
      %v650 = vunpack.c.l.b16 %v427
      %v651 = vunpack.c.h.b16 %v427
      %v652 = vunpack.c.l.b16 %v428
      %v653 = vunpack.c.h.b16 %v428
      %v654 = vunpack.c.l.b16 %v429
      %v655 = vunpack.c.h.b16 %v429
      %v656 = vunpack.c.l.b16 %v430
      %v657 = vunpack.c.h.b16 %v430
      %v658 = vunpack.c.l.b16 %v431
      %v659 = vunpack.c.h.b16 %v431
      %v660 = vunpack.c.l.b16 %v432
      %v661 = vunpack.c.h.b16 %v432
      %v662 = vunpack.c.l.b16 %v433
      %v663 = vunpack.c.h.b16 %v433
      %v664 = vunpack.c.l.b16 %v434
      %v665 = vunpack.c.h.b16 %v434
      %v666 = vunpack.c.l.b16 %v435
      %v667 = vunpack.c.h.b16 %v435
      %v668 = vunpack.c.l.b16 %v436
      %v669 = vunpack.c.h.b16 %v436
      %v670 = vunpack.c.l.b16 %v437
      %v671 = vunpack.c.h.b16 %v437
      %v672 = vunpack.c.l.b16 %v438
      %v673 = vunpack.c.h.b16 %v438
      %v674 = vunpack.c.l.b16 %v439
      %v675 = vunpack.c.h.b16 %v439
      %v676 = vunpack.c.l.b16 %v440
      %v677 = vunpack.c.h.b16 %v440
      %v678 = vunpack.c.l.b16 %v441
      %v679 = vunpack.c.h.b16 %v441
      %v680 = vunpack.c.l.b16 %v442
      %v681 = vunpack.c.h.b16 %v442
      %v682 = vunpack.c.l.b16 %v443
      %v683 = vunpack.c.h.b16 %v443
      %v684 = vpack.c.b16 %v564, %v556
      %v685 = vpack.c.b16 %v565, %v557
      %v686 = vpack.c.b16 %v566, %v558
      %v687 = vpack.c.b16 %v567, %v559
      %v688 = vpack.c.b16 %v568, %v560
      %v689 = vpack.c.b16 %v569, %v561
      %v690 = vpack.c.b16 %v570, %v562
      %v691 = vpack.c.b16 %v571, %v563
      %v692 = vpack.c.b16 %v580, %v572
      %v693 = vpack.c.b16 %v581, %v573
      %v694 = vpack.c.b16 %v582, %v574
      %v695 = vpack.c.b16 %v583, %v575
      %v696 = vpack.c.b16 %v584, %v576
      %v697 = vpack.c.b16 %v585, %v577
      %v698 = vpack.c.b16 %v586, %v578
      %v699 = vpack.c.b16 %v587, %v579
      %v700 = vpack.c.b16 %v596, %v588
      %v701 = vpack.c.b16 %v597, %v589
      %v702 = vpack.c.b16 %v598, %v590
      %v703 = vpack.c.b16 %v599, %v591
      %v704 = vpack.c.b16 %v600, %v592
      %v705 = vpack.c.b16 %v601, %v593
      %v706 = vpack.c.b16 %v602, %v594
      %v707 = vpack.c.b16 %v603, %v595
      %v708 = vpack.c.b16 %v612, %v604
      %v709 = vpack.c.b16 %v613, %v605
      %v710 = vpack.c.b16 %v614, %v606
      %v711 = vpack.c.b16 %v615, %v607
      %v712 = vpack.c.b16 %v616, %v608
      %v713 = vpack.c.b16 %v617, %v609
      %v714 = vpack.c.b16 %v618, %v610
      %v715 = vpack.c.b16 %v619, %v611
      %v716 = vpack.c.b16 %v628, %v620
      %v717 = vpack.c.b16 %v629, %v621
      %v718 = vpack.c.b16 %v630, %v622
      %v719 = vpack.c.b16 %v631, %v623
      %v720 = vpack.c.b16 %v632, %v624
      %v721 = vpack.c.b16 %v633, %v625
      %v722 = vpack.c.b16 %v634, %v626
      %v723 = vpack.c.b16 %v635, %v627
      %v724 = vpack.c.b16 %v644, %v636
      %v725 = vpack.c.b16 %v645, %v637
      %v726 = vpack.c.b16 %v646, %v638
      %v727 = vpack.c.b16 %v647, %v639
      %v728 = vpack.c.b16 %v648, %v640
      %v729 = vpack.c.b16 %v649, %v641
      %v730 = vpack.c.b16 %v650, %v642
      %v731 = vpack.c.b16 %v651, %v643
      %v732 = vpack.c.b16 %v660, %v652
      %v733 = vpack.c.b16 %v661, %v653
      %v734 = vpack.c.b16 %v662, %v654
      %v735 = vpack.c.b16 %v663, %v655
      %v736 = vpack.c.b16 %v664, %v656
      %v737 = vpack.c.b16 %v665, %v657
      %v738 = vpack.c.b16 %v666, %v658
      %v739 = vpack.c.b16 %v667, %v659
      %v740 = vpack.c.b16 %v676, %v668
      %v741 = vpack.c.b16 %v677, %v669
      %v742 = vpack.c.b16 %v678, %v670
      %v743 = vpack.c.b16 %v679, %v671
      %v744 = vpack.c.b16 %v680, %v672
      %v745 = vpack.c.b16 %v681, %v673
      %v746 = vpack.c.b16 %v682, %v674
      %v747 = vpack.c.b16 %v683, %v675
      %812 = vmatprep.subr.bf16.mxu0 %v685
      %813 = vmatpush1.bf16.msra.mxu0 %v684
      %814 = vmatprep.subr.bf16.mxu0 %v693
      %815 = vmatpush1.bf16.msra.mxu0 %v692
      %816 = vmatprep.subr.bf16.mxu0 %v701
      %817 = vmatpush1.bf16.msra.mxu0 %v700
      %818 = vmatprep.subr.bf16.mxu0 %v709
      %819 = vmatpush1.bf16.msra.mxu0 %v708
      %820 = vmatprep.subr.bf16.mxu0 %v717
      %821 = vmatpush1.bf16.msra.mxu0 %v716
      %822 = vmatprep.subr.bf16.mxu0 %v725
      %823 = vmatpush1.bf16.msra.mxu0 %v724
      %824 = vmatprep.subr.bf16.mxu0 %v733
      %825 = vmatpush1.bf16.msra.mxu0 %v732
      %826 = vmatprep.subr.bf16.mxu0 %v741
      %827 = vmatpush1.bf16.msra.mxu0 %v740
      %828 = vmatprep.subr.bf16.mxu0 0
      %829 = vmatpush1.bf16.msra.mxu0 0
      %830 = vmatprep.subr.bf16.mxu0 0
      %831 = vmatpush1.bf16.msra.mxu0 0
      %832 = vmatprep.subr.bf16.mxu0 0
      %833 = vmatpush1.bf16.msra.mxu0 0
      %834 = vmatprep.subr.bf16.mxu0 0
      %835 = vmatpush1.bf16.msra.mxu0 0
      %836 = vmatprep.subr.bf16.mxu0 0
      %837 = vmatpush1.bf16.msra.mxu0 0
      %838 = vmatprep.subr.bf16.mxu0 0
      %839 = vmatpush1.bf16.msra.mxu0 0
      %840 = vmatprep.subr.bf16.mxu0 0
      %841 = vmatpush1.bf16.msra.mxu0 0
      %842 = vmatprep.subr.bf16.mxu0 0
      %843 = vmatpush1.bf16.msra.mxu0 0
      %844 = vmatprep.mubr.bf16.mxu0 0
      %845 = vmatmul.mubr.bf16.gmra.mrb[0].mxu0 %v476
      %v846 = vpop.f32.mrb[0].mxu0
      %v847 = vadd.f32 0.0, %v846
      %v848 = vpop.f32.mrb[0].mxu0
      %v849 = vadd.f32 0.0, %v848
      %v850 = vpop.f32.mrb[0].mxu0
      %v851 = vadd.f32 0.0, %v850
      %v852 = vpop.f32.mrb[0].mxu0
      %v853 = vadd.f32 0.0, %v852
      %854 = vmatprep.mubr.bf16.mxu0 0
      %855 = vmatmul.mubr.bf16.gmra.mrb[0].mxu0 %v477
      %v856 = vpop.f32.mrb[0].mxu0
      %v857 = vadd.f32 0.0, %v856
      %v858 = vpop.f32.mrb[0].mxu0
      %v859 = vadd.f32 0.0, %v858
      %v860 = vpop.f32.mrb[0].mxu0
      %v861 = vadd.f32 0.0, %v860
      %v862 = vpop.f32.mrb[0].mxu0
      %v863 = vadd.f32 0.0, %v862
      %864 = vmatprep.mubr.bf16.mxu0 0
      %865 = vmatmul.mubr.bf16.gmra.mrb[0].mxu0 %v478
      %v866 = vpop.f32.mrb[0].mxu0
      %v867 = vadd.f32 0.0, %v866
      %v868 = vpop.f32.mrb[0].mxu0
      %v869 = vadd.f32 0.0, %v868
      %v870 = vpop.f32.mrb[0].mxu0
      %v871 = vadd.f32 0.0, %v870
      %v872 = vpop.f32.mrb[0].mxu0
      %v873 = vadd.f32 0.0, %v872
      %874 = vmatprep.mubr.bf16.mxu0 0
      %875 = vmatmul.mubr.bf16.gmra.mrb[0].mxu0 %v479
      %v876 = vpop.f32.mrb[0].mxu0
      %v877 = vadd.f32 0.0, %v876
      %v878 = vpop.f32.mrb[0].mxu0
      %v879 = vadd.f32 0.0, %v878
      %v880 = vpop.f32.mrb[0].mxu0
      %v881 = vadd.f32 0.0, %v880
      %v882 = vpop.f32.mrb[0].mxu0
      %v883 = vadd.f32 0.0, %v882
      %884 = vmatprep.mubr.bf16.mxu0 0
      %885 = vmatmul.mubr.bf16.gmra.mrb[0].mxu0 %v480
      %v886 = vpop.f32.mrb[0].mxu0
      %v887 = vadd.f32 0.0, %v886
      %v888 = vpop.f32.mrb[0].mxu0
      %v889 = vadd.f32 0.0, %v888
      %v890 = vpop.f32.mrb[0].mxu0
      %v891 = vadd.f32 0.0, %v890
      %v892 = vpop.f32.mrb[0].mxu0
      %v893 = vadd.f32 0.0, %v892
      %894 = vmatprep.mubr.bf16.mxu0 0
      %895 = vmatmul.mubr.bf16.gmra.mrb[0].mxu0 %v481
      %v896 = vpop.f32.mrb[0].mxu0
      %v897 = vadd.f32 0.0, %v896
      %v898 = vpop.f32.mrb[0].mxu0
      %v899 = vadd.f32 0.0, %v898
      %v900 = vpop.f32.mrb[0].mxu0
      %v901 = vadd.f32 0.0, %v900
      %v902 = vpop.f32.mrb[0].mxu0
      %v903 = vadd.f32 0.0, %v902
      %904 = vmatprep.mubr.bf16.mxu0 0
      %905 = vmatmul.mubr.bf16.gmra.mrb[0].mxu0 %v482
      %v906 = vpop.f32.mrb[0].mxu0
      %v907 = vadd.f32 0.0, %v906
      %v908 = vpop.f32.mrb[0].mxu0
      %v909 = vadd.f32 0.0, %v908
      %v910 = vpop.f32.mrb[0].mxu0
      %v911 = vadd.f32 0.0, %v910
      %v912 = vpop.f32.mrb[0].mxu0
      %v913 = vadd.f32 0.0, %v912
      %914 = vmatprep.mubr.bf16.mxu0 0
      %915 = vmatmul.mubr.bf16.gmra.mrb[0].mxu0 %v483
      %v916 = vpop.f32.mrb[0].mxu0
      %v917 = vadd.f32 0.0, %v916
      %v918 = vpop.f32.mrb[0].mxu0
      %v919 = vadd.f32 0.0, %v918
      %v920 = vpop.f32.mrb[0].mxu0
      %v921 = vadd.f32 0.0, %v920
      %v922 = vpop.f32.mrb[0].mxu0
      %v923 = vadd.f32 0.0, %v922
      %924 = vdwg.mxu0
      %925 = vmatprep.subr.bf16.mxu0 %v687
      %926 = vmatpush1.bf16.msra.mxu0 %v686
      %927 = vmatprep.subr.bf16.mxu0 %v695
      %928 = vmatpush1.bf16.msra.mxu0 %v694
      %929 = vmatprep.subr.bf16.mxu0 %v703
      %930 = vmatpush1.bf16.msra.mxu0 %v702
      %931 = vmatprep.subr.bf16.mxu0 %v711
      %932 = vmatpush1.bf16.msra.mxu0 %v710
      %933 = vmatprep.subr.bf16.mxu0 %v719
      %934 = vmatpush1.bf16.msra.mxu0 %v718
      %935 = vmatprep.subr.bf16.mxu0 %v727
      %936 = vmatpush1.bf16.msra.mxu0 %v726
      %937 = vmatprep.subr.bf16.mxu0 %v735
      %938 = vmatpush1.bf16.msra.mxu0 %v734
      %939 = vmatprep.subr.bf16.mxu0 %v743
      %940 = vmatpush1.bf16.msra.mxu0 %v742
      %941 = vmatprep.subr.bf16.mxu0 0
      %942 = vmatpush1.bf16.msra.mxu0 0
      %943 = vmatprep.subr.bf16.mxu0 0
      %944 = vmatpush1.bf16.msra.mxu0 0
      %945 = vmatprep.subr.bf16.mxu0 0
      %946 = vmatpush1.bf16.msra.mxu0 0
      %947 = vmatprep.subr.bf16.mxu0 0
      %948 = vmatpush1.bf16.msra.mxu0 0
      %949 = vmatprep.subr.bf16.mxu0 0
      %950 = vmatpush1.bf16.msra.mxu0 0
      %951 = vmatprep.subr.bf16.mxu0 0
      %952 = vmatpush1.bf16.msra.mxu0 0
      %953 = vmatprep.subr.bf16.mxu0 0
      %954 = vmatpush1.bf16.msra.mxu0 0
      %955 = vmatprep.subr.bf16.mxu0 0
      %956 = vmatpush1.bf16.msra.mxu0 0
      %957 = vmatprep.mubr.bf16.mxu0 0
      %958 = vmatmul.mubr.bf16.gmra.mrb[0].mxu0 %v476
      %v959 = vpop.f32.mrb[0].mxu0
      %v960 = vadd.f32 0.0, %v959
      %v961 = vpop.f32.mrb[0].mxu0
      %v962 = vadd.f32 0.0, %v961
      %v963 = vpop.f32.mrb[0].mxu0
      %v964 = vadd.f32 0.0, %v963
      %v965 = vpop.f32.mrb[0].mxu0
      %v966 = vadd.f32 0.0, %v965
      %967 = vmatprep.mubr.bf16.mxu0 0
      %968 = vmatmul.mubr.bf16.gmra.mrb[0].mxu0 %v477
      %v969 = vpop.f32.mrb[0].mxu0
      %v970 = vadd.f32 0.0, %v969
      %v971 = vpop.f32.mrb[0].mxu0
      %v972 = vadd.f32 0.0, %v971
      %v973 = vpop.f32.mrb[0].mxu0
      %v974 = vadd.f32 0.0, %v973
      %v975 = vpop.f32.mrb[0].mxu0
      %v976 = vadd.f32 0.0, %v975
      %977 = vmatprep.mubr.bf16.mxu0 0
      %978 = vmatmul.mubr.bf16.gmra.mrb[0].mxu0 %v478
      %v979 = vpop.f32.mrb[0].mxu0
      %v980 = vadd.f32 0.0, %v979
      %v981 = vpop.f32.mrb[0].mxu0
      %v982 = vadd.f32 0.0, %v981
      %v983 = vpop.f32.mrb[0].mxu0
      %v984 = vadd.f32 0.0, %v983
      %v985 = vpop.f32.mrb[0].mxu0
      %v986 = vadd.f32 0.0, %v985
      %987 = vmatprep.mubr.bf16.mxu0 0
      %988 = vmatmul.mubr.bf16.gmra.mrb[0].mxu0 %v479
      %v989 = vpop.f32.mrb[0].mxu0
      %v990 = vadd.f32 0.0, %v989
      %v991 = vpop.f32.mrb[0].mxu0
      %v992 = vadd.f32 0.0, %v991
      %v993 = vpop.f32.mrb[0].mxu0
      %v994 = vadd.f32 0.0, %v993
      %v995 = vpop.f32.mrb[0].mxu0
      %v996 = vadd.f32 0.0, %v995
      %997 = vmatprep.mubr.bf16.mxu0 0
      %998 = vmatmul.mubr.bf16.gmra.mrb[0].mxu0 %v480
      %v999 = vpop.f32.mrb[0].mxu0
      %v1000 = vadd.f32 0.0, %v999
      %v1001 = vpop.f32.mrb[0].mxu0
      %v1002 = vadd.f32 0.0, %v1001
      %v1003 = vpop.f32.mrb[0].mxu0
      %v1004 = vadd.f32 0.0, %v1003
      %v1005 = vpop.f32.mrb[0].mxu0
      %v1006 = vadd.f32 0.0, %v1005
      %1007 = vmatprep.mubr.bf16.mxu0 0
      %1008 = vmatmul.mubr.bf16.gmra.mrb[0].mxu0 %v481
      %v1009 = vpop.f32.mrb[0].mxu0
      %v1010 = vadd.f32 0.0, %v1009
      %v1011 = vpop.f32.mrb[0].mxu0
      %v1012 = vadd.f32 0.0, %v1011
      %v1013 = vpop.f32.mrb[0].mxu0
      %v1014 = vadd.f32 0.0, %v1013
      %v1015 = vpop.f32.mrb[0].mxu0
      %v1016 = vadd.f32 0.0, %v1015
      %1017 = vmatprep.mubr.bf16.mxu0 0
      %1018 = vmatmul.mubr.bf16.gmra.mrb[0].mxu0 %v482
      %v1019 = vpop.f32.mrb[0].mxu0
      %v1020 = vadd.f32 0.0, %v1019
      %v1021 = vpop.f32.mrb[0].mxu0
      %v1022 = vadd.f32 0.0, %v1021
      %v1023 = vpop.f32.mrb[0].mxu0
      %v1024 = vadd.f32 0.0, %v1023
      %v1025 = vpop.f32.mrb[0].mxu0
      %v1026 = vadd.f32 0.0, %v1025
      %1027 = vmatprep.mubr.bf16.mxu0 0
      %1028 = vmatmul.mubr.bf16.gmra.mrb[0].mxu0 %v483
      %v1029 = vpop.f32.mrb[0].mxu0
      %v1030 = vadd.f32 0.0, %v1029
      %v1031 = vpop.f32.mrb[0].mxu0
      %v1032 = vadd.f32 0.0, %v1031
      %v1033 = vpop.f32.mrb[0].mxu0
      %v1034 = vadd.f32 0.0, %v1033
      %v1035 = vpop.f32.mrb[0].mxu0
      %v1036 = vadd.f32 0.0, %v1035
      %1037 = vdwg.mxu0
      %1038 = vmatprep.subr.bf16.mxu0 %v689
      %1039 = vmatpush1.bf16.msra.mxu0 %v688
      %1040 = vmatprep.subr.bf16.mxu0 %v697
      %1041 = vmatpush1.bf16.msra.mxu0 %v696
      %1042 = vmatprep.subr.bf16.mxu0 %v705
      %1043 = vmatpush1.bf16.msra.mxu0 %v704
      %1044 = vmatprep.subr.bf16.mxu0 %v713
      %1045 = vmatpush1.bf16.msra.mxu0 %v712
      %1046 = vmatprep.subr.bf16.mxu0 %v721
      %1047 = vmatpush1.bf16.msra.mxu0 %v720
      %1048 = vmatprep.subr.bf16.mxu0 %v729
      %1049 = vmatpush1.bf16.msra.mxu0 %v728
      %1050 = vmatprep.subr.bf16.mxu0 %v737
      %1051 = vmatpush1.bf16.msra.mxu0 %v736
      %1052 = vmatprep.subr.bf16.mxu0 %v745
      %1053 = vmatpush1.bf16.msra.mxu0 %v744
      %1054 = vmatprep.subr.bf16.mxu0 0
      %1055 = vmatpush1.bf16.msra.mxu0 0
      %1056 = vmatprep.subr.bf16.mxu0 0
      %1057 = vmatpush1.bf16.msra.mxu0 0
      %1058 = vmatprep.subr.bf16.mxu0 0
      %1059 = vmatpush1.bf16.msra.mxu0 0
      %1060 = vmatprep.subr.bf16.mxu0 0
      %1061 = vmatpush1.bf16.msra.mxu0 0
      %1062 = vmatprep.subr.bf16.mxu0 0
      %1063 = vmatpush1.bf16.msra.mxu0 0
      %1064 = vmatprep.subr.bf16.mxu0 0
      %1065 = vmatpush1.bf16.msra.mxu0 0
      %1066 = vmatprep.subr.bf16.mxu0 0
      %1067 = vmatpush1.bf16.msra.mxu0 0
      %1068 = vmatprep.subr.bf16.mxu0 0
      %1069 = vmatpush1.bf16.msra.mxu0 0
      %1070 = vmatprep.mubr.bf16.mxu0 0
      %1071 = vmatmul.mubr.bf16.gmra.mrb[0].mxu0 %v476
      %v1072 = vpop.f32.mrb[0].mxu0
      %v1073 = vadd.f32 0.0, %v1072
      %v1074 = vpop.f32.mrb[0].mxu0
      %v1075 = vadd.f32 0.0, %v1074
      %v1076 = vpop.f32.mrb[0].mxu0
      %v1077 = vadd.f32 0.0, %v1076
      %v1078 = vpop.f32.mrb[0].mxu0
      %v1079 = vadd.f32 0.0, %v1078
      %1080 = vmatprep.mubr.bf16.mxu0 0
      %1081 = vmatmul.mubr.bf16.gmra.mrb[0].mxu0 %v477
      %v1082 = vpop.f32.mrb[0].mxu0
      %v1083 = vadd.f32 0.0, %v1082
      %v1084 = vpop.f32.mrb[0].mxu0
      %v1085 = vadd.f32 0.0, %v1084
      %v1086 = vpop.f32.mrb[0].mxu0
      %v1087 = vadd.f32 0.0, %v1086
      %v1088 = vpop.f32.mrb[0].mxu0
      %v1089 = vadd.f32 0.0, %v1088
      %1090 = vmatprep.mubr.bf16.mxu0 0
      %1091 = vmatmul.mubr.bf16.gmra.mrb[0].mxu0 %v478
      %v1092 = vpop.f32.mrb[0].mxu0
      %v1093 = vadd.f32 0.0, %v1092
      %v1094 = vpop.f32.mrb[0].mxu0
      %v1095 = vadd.f32 0.0, %v1094
      %v1096 = vpop.f32.mrb[0].mxu0
      %v1097 = vadd.f32 0.0, %v1096
      %v1098 = vpop.f32.mrb[0].mxu0
      %v1099 = vadd.f32 0.0, %v1098
      %1100 = vmatprep.mubr.bf16.mxu0 0
      %1101 = vmatmul.mubr.bf16.gmra.mrb[0].mxu0 %v479
      %v1102 = vpop.f32.mrb[0].mxu0
      %v1103 = vadd.f32 0.0, %v1102
      %v1104 = vpop.f32.mrb[0].mxu0
      %v1105 = vadd.f32 0.0, %v1104
      %v1106 = vpop.f32.mrb[0].mxu0
      %v1107 = vadd.f32 0.0, %v1106
      %v1108 = vpop.f32.mrb[0].mxu0
      %v1109 = vadd.f32 0.0, %v1108
      %1110 = vmatprep.mubr.bf16.mxu0 0
      %1111 = vmatmul.mubr.bf16.gmra.mrb[0].mxu0 %v480
      %v1112 = vpop.f32.mrb[0].mxu0
      %v1113 = vadd.f32 0.0, %v1112
      %v1114 = vpop.f32.mrb[0].mxu0
      %v1115 = vadd.f32 0.0, %v1114
      %v1116 = vpop.f32.mrb[0].mxu0
      %v1117 = vadd.f32 0.0, %v1116
      %v1118 = vpop.f32.mrb[0].mxu0
      %v1119 = vadd.f32 0.0, %v1118
      %1120 = vmatprep.mubr.bf16.mxu0 0
      %1121 = vmatmul.mubr.bf16.gmra.mrb[0].mxu0 %v481
      %v1122 = vpop.f32.mrb[0].mxu0
      %v1123 = vadd.f32 0.0, %v1122
      %v1124 = vpop.f32.mrb[0].mxu0
      %v1125 = vadd.f32 0.0, %v1124
      %v1126 = vpop.f32.mrb[0].mxu0
      %v1127 = vadd.f32 0.0, %v1126
      %v1128 = vpop.f32.mrb[0].mxu0
      %v1129 = vadd.f32 0.0, %v1128
      %1130 = vmatprep.mubr.bf16.mxu0 0
      %1131 = vmatmul.mubr.bf16.gmra.mrb[0].mxu0 %v482
      %v1132 = vpop.f32.mrb[0].mxu0
      %v1133 = vadd.f32 0.0, %v1132
      %v1134 = vpop.f32.mrb[0].mxu0
      %v1135 = vadd.f32 0.0, %v1134
      %v1136 = vpop.f32.mrb[0].mxu0
      %v1137 = vadd.f32 0.0, %v1136
      %v1138 = vpop.f32.mrb[0].mxu0
      %v1139 = vadd.f32 0.0, %v1138
      %1140 = vmatprep.mubr.bf16.mxu0 0
      %1141 = vmatmul.mubr.bf16.gmra.mrb[0].mxu0 %v483
      %v1142 = vpop.f32.mrb[0].mxu0
      %v1143 = vadd.f32 0.0, %v1142
      %v1144 = vpop.f32.mrb[0].mxu0
      %v1145 = vadd.f32 0.0, %v1144
      %v1146 = vpop.f32.mrb[0].mxu0
      %v1147 = vadd.f32 0.0, %v1146
      %v1148 = vpop.f32.mrb[0].mxu0
      %v1149 = vadd.f32 0.0, %v1148
      %1150 = vdwg.mxu0
      %1151 = vmatprep.subr.bf16.mxu0 %v691
      %1152 = vmatpush1.bf16.msra.mxu0 %v690
      %1153 = vmatprep.subr.bf16.mxu0 %v699
      %1154 = vmatpush1.bf16.msra.mxu0 %v698
      %1155 = vmatprep.subr.bf16.mxu0 %v707
      %1156 = vmatpush1.bf16.msra.mxu0 %v706
      %1157 = vmatprep.subr.bf16.mxu0 %v715
      %1158 = vmatpush1.bf16.msra.mxu0 %v714
      %1159 = vmatprep.subr.bf16.mxu0 %v723
      %1160 = vmatpush1.bf16.msra.mxu0 %v722
      %1161 = vmatprep.subr.bf16.mxu0 %v731
      %1162 = vmatpush1.bf16.msra.mxu0 %v730
      %1163 = vmatprep.subr.bf16.mxu0 %v739
      %1164 = vmatpush1.bf16.msra.mxu0 %v738
      %1165 = vmatprep.subr.bf16.mxu0 %v747
      %1166 = vmatpush1.bf16.msra.mxu0 %v746
      %1167 = vmatprep.subr.bf16.mxu0 0
      %1168 = vmatpush1.bf16.msra.mxu0 0
      %1169 = vmatprep.subr.bf16.mxu0 0
      %1170 = vmatpush1.bf16.msra.mxu0 0
      %1171 = vmatprep.subr.bf16.mxu0 0
      %1172 = vmatpush1.bf16.msra.mxu0 0
      %1173 = vmatprep.subr.bf16.mxu0 0
      %1174 = vmatpush1.bf16.msra.mxu0 0
      %1175 = vmatprep.subr.bf16.mxu0 0
      %1176 = vmatpush1.bf16.msra.mxu0 0
      %1177 = vmatprep.subr.bf16.mxu0 0
      %1178 = vmatpush1.bf16.msra.mxu0 0
      %1179 = vmatprep.subr.bf16.mxu0 0
      %1180 = vmatpush1.bf16.msra.mxu0 0
      %1181 = vmatprep.subr.bf16.mxu0 0
      %1182 = vmatpush1.bf16.msra.mxu0 0
      %1183 = vmatprep.mubr.bf16.mxu0 0
      %1184 = vmatmul.mubr.bf16.gmra.mrb[0].mxu0 %v476
      %v1185 = vpop.f32.mrb[0].mxu0
      %v1186 = vadd.f32 0.0, %v1185
      %v1187 = vpop.f32.mrb[0].mxu0
      %v1188 = vadd.f32 0.0, %v1187
      %v1189 = vpop.f32.mrb[0].mxu0
      %v1190 = vadd.f32 0.0, %v1189
      %v1191 = vpop.f32.mrb[0].mxu0
      %v1192 = vadd.f32 0.0, %v1191
      %1193 = vmatprep.mubr.bf16.mxu0 0
      %1194 = vmatmul.mubr.bf16.gmra.mrb[0].mxu0 %v477
      %v1195 = vpop.f32.mrb[0].mxu0
      %v1196 = vadd.f32 0.0, %v1195
      %v1197 = vpop.f32.mrb[0].mxu0
      %v1198 = vadd.f32 0.0, %v1197
      %v1199 = vpop.f32.mrb[0].mxu0
      %v1200 = vadd.f32 0.0, %v1199
      %v1201 = vpop.f32.mrb[0].mxu0
      %v1202 = vadd.f32 0.0, %v1201
      %1203 = vmatprep.mubr.bf16.mxu0 0
      %1204 = vmatmul.mubr.bf16.gmra.mrb[0].mxu0 %v478
      %v1205 = vpop.f32.mrb[0].mxu0
      %v1206 = vadd.f32 0.0, %v1205
      %v1207 = vpop.f32.mrb[0].mxu0
      %v1208 = vadd.f32 0.0, %v1207
      %v1209 = vpop.f32.mrb[0].mxu0
      %v1210 = vadd.f32 0.0, %v1209
      %v1211 = vpop.f32.mrb[0].mxu0
      %v1212 = vadd.f32 0.0, %v1211
      %1213 = vmatprep.mubr.bf16.mxu0 0
      %1214 = vmatmul.mubr.bf16.gmra.mrb[0].mxu0 %v479
      %v1215 = vpop.f32.mrb[0].mxu0
      %v1216 = vadd.f32 0.0, %v1215
      %v1217 = vpop.f32.mrb[0].mxu0
      %v1218 = vadd.f32 0.0, %v1217
      %v1219 = vpop.f32.mrb[0].mxu0
      %v1220 = vadd.f32 0.0, %v1219
      %v1221 = vpop.f32.mrb[0].mxu0
      %v1222 = vadd.f32 0.0, %v1221
      %1223 = vmatprep.mubr.bf16.mxu0 0
      %1224 = vmatmul.mubr.bf16.gmra.mrb[0].mxu0 %v480
      %v1225 = vpop.f32.mrb[0].mxu0
      %v1226 = vadd.f32 0.0, %v1225
      %v1227 = vpop.f32.mrb[0].mxu0
      %v1228 = vadd.f32 0.0, %v1227
      %v1229 = vpop.f32.mrb[0].mxu0
      %v1230 = vadd.f32 0.0, %v1229
      %v1231 = vpop.f32.mrb[0].mxu0
      %v1232 = vadd.f32 0.0, %v1231
      %1233 = vmatprep.mubr.bf16.mxu0 0
      %1234 = vmatmul.mubr.bf16.gmra.mrb[0].mxu0 %v481
      %v1235 = vpop.f32.mrb[0].mxu0
      %v1236 = vadd.f32 0.0, %v1235
      %v1237 = vpop.f32.mrb[0].mxu0
      %v1238 = vadd.f32 0.0, %v1237
      %v1239 = vpop.f32.mrb[0].mxu0
      %v1240 = vadd.f32 0.0, %v1239
      %v1241 = vpop.f32.mrb[0].mxu0
      %v1242 = vadd.f32 0.0, %v1241
      %1243 = vmatprep.mubr.bf16.mxu0 0
      %1244 = vmatmul.mubr.bf16.gmra.mrb[0].mxu0 %v482
      %v1245 = vpop.f32.mrb[0].mxu0
      %v1246 = vadd.f32 0.0, %v1245
      %v1247 = vpop.f32.mrb[0].mxu0
      %v1248 = vadd.f32 0.0, %v1247
      %v1249 = vpop.f32.mrb[0].mxu0
      %v1250 = vadd.f32 0.0, %v1249
      %v1251 = vpop.f32.mrb[0].mxu0
      %v1252 = vadd.f32 0.0, %v1251
      %1253 = vmatprep.mubr.bf16.mxu0 0
      %1254 = vmatmul.mubr.bf16.gmra.mrb[0].mxu0 %v483
      %v1255 = vpop.f32.mrb[0].mxu0
      %v1256 = vadd.f32 0.0, %v1255
      %v1257 = vpop.f32.mrb[0].mxu0
      %v1258 = vadd.f32 0.0, %v1257
      %v1259 = vpop.f32.mrb[0].mxu0
      %v1260 = vadd.f32 0.0, %v1259
      %v1261 = vpop.f32.mrb[0].mxu0
      %v1262 = vadd.f32 0.0, %v1261
      %1263 = vdwg.mxu0
      %v1264 = vmax.f32 %v847, 0.0
      %v1265 = vmax.f32 %v851, 0.0
      %v1266 = vmax.f32 %v857, 0.0
      %v1267 = vmax.f32 %v861, 0.0
      %v1268 = vmax.f32 %v867, 0.0
      %v1269 = vmax.f32 %v871, 0.0
      %v1270 = vmax.f32 %v877, 0.0
      %v1271 = vmax.f32 %v881, 0.0
      %v1272 = vmax.f32 %v887, 0.0
      %v1273 = vmax.f32 %v891, 0.0
      %v1274 = vmax.f32 %v897, 0.0
      %v1275 = vmax.f32 %v901, 0.0
      %v1276 = vmax.f32 %v907, 0.0
      %v1277 = vmax.f32 %v911, 0.0
      %v1278 = vmax.f32 %v917, 0.0
      %v1279 = vmax.f32 %v921, 0.0
      %v1280 = vpack.c.bf16 %v1265, %v1264
      %v1281 = vpack.c.bf16 %v1267, %v1266
      %v1282 = vpack.c.bf16 %v1269, %v1268
      %v1283 = vpack.c.bf16 %v1271, %v1270
      %v1284 = vpack.c.bf16 %v1273, %v1272
      %v1285 = vpack.c.bf16 %v1275, %v1274
      %v1286 = vpack.c.bf16 %v1277, %v1276
      %v1287 = vpack.c.bf16 %v1279, %v1278
      %v1288 = vmax.f32 %v849, 0.0
      %v1289 = vmax.f32 %v853, 0.0
      %v1290 = vmax.f32 %v859, 0.0
      %v1291 = vmax.f32 %v863, 0.0
      %v1292 = vmax.f32 %v869, 0.0
      %v1293 = vmax.f32 %v873, 0.0
      %v1294 = vmax.f32 %v879, 0.0
      %v1295 = vmax.f32 %v883, 0.0
      %v1296 = vmax.f32 %v889, 0.0
      %v1297 = vmax.f32 %v893, 0.0
      %v1298 = vmax.f32 %v899, 0.0
      %v1299 = vmax.f32 %v903, 0.0
      %v1300 = vmax.f32 %v909, 0.0
      %v1301 = vmax.f32 %v913, 0.0
      %v1302 = vmax.f32 %v919, 0.0
      %v1303 = vmax.f32 %v923, 0.0
      %v1304 = vpack.c.bf16 %v1289, %v1288
      %v1305 = vpack.c.bf16 %v1291, %v1290
      %v1306 = vpack.c.bf16 %v1293, %v1292
      %v1307 = vpack.c.bf16 %v1295, %v1294
      %v1308 = vpack.c.bf16 %v1297, %v1296
      %v1309 = vpack.c.bf16 %v1299, %v1298
      %v1310 = vpack.c.bf16 %v1301, %v1300
      %v1311 = vpack.c.bf16 %v1303, %v1302
      %v1312 = vld [vmem:[%s2] sm:$0xf]
      %v1313 = vld [vmem:[%s2 + $0x4] sm:$0xf]
      %v1314 = vld [vmem:[%s2 + $0x8] sm:$0xf]
      %v1315 = vld [vmem:[%s2 + $0xc] sm:$0xf]
      %v1316 = vld [vmem:[%s2 + $0x10] sm:$0xf]
      %v1317 = vld [vmem:[%s2 + $0x14] sm:$0xf]
      %v1318 = vld [vmem:[%s2 + $0x18] sm:$0xf]
      %v1319 = vld [vmem:[%s2 + $0x1c] sm:$0xf]
      %v1320 = vld [vmem:[%s2 + $0x20] sm:$0xf]
      %v1321 = vld [vmem:[%s2 + $0x24] sm:$0xf]
      %v1322 = vld [vmem:[%s2 + $0x28] sm:$0xf]
      %v1323 = vld [vmem:[%s2 + $0x2c] sm:$0xf]
      %v1324 = vld [vmem:[%s2 + $0x30] sm:$0xf]
      %v1325 = vld [vmem:[%s2 + $0x34] sm:$0xf]
      %v1326 = vld [vmem:[%s2 + $0x38] sm:$0xf]
      %v1327 = vld [vmem:[%s2 + $0x3c] sm:$0xf]
      %v1344 = vunpack.c.l.b16 %v1312
      %v1345 = vunpack.c.l.b16 %v1313
      %v1346 = vunpack.c.l.b16 %v1314
      %v1347 = vunpack.c.l.b16 %v1315
      %v1348 = vunpack.c.l.b16 %v1316
      %v1349 = vunpack.c.l.b16 %v1317
      %v1350 = vunpack.c.l.b16 %v1318
      %v1351 = vunpack.c.l.b16 %v1319
      %v1352 = vunpack.c.l.b16 %v1320
      %v1353 = vunpack.c.l.b16 %v1321
      %v1354 = vunpack.c.l.b16 %v1322
      %v1355 = vunpack.c.l.b16 %v1323
      %v1356 = vunpack.c.l.b16 %v1324
      %v1357 = vunpack.c.l.b16 %v1325
      %v1358 = vunpack.c.l.b16 %v1326
      %v1359 = vunpack.c.l.b16 %v1327
      %v1360 = vpack.c.b16 %v1345, %v1344
      %v1361 = vpack.c.b16 %v1347, %v1346
      %v1362 = vpack.c.b16 %v1349, %v1348
      %v1363 = vpack.c.b16 %v1351, %v1350
      %v1364 = vpack.c.b16 %v1353, %v1352
      %v1365 = vpack.c.b16 %v1355, %v1354
      %v1366 = vpack.c.b16 %v1357, %v1356
      %v1367 = vpack.c.b16 %v1359, %v1358
      %1376 = vmatprep.subr.bf16.mxu0 0
      %1377 = vmatpush1.bf16.msra.mxu0 %v1360
      %1378 = vmatprep.subr.bf16.mxu0 0
      %1379 = vmatpush1.bf16.msra.mxu0 %v1361
      %1380 = vmatprep.subr.bf16.mxu0 0
      %1381 = vmatpush1.bf16.msra.mxu0 %v1362
      %1382 = vmatprep.subr.bf16.mxu0 0
      %1383 = vmatpush1.bf16.msra.mxu0 %v1363
      %1384 = vmatprep.subr.bf16.mxu0 0
      %1385 = vmatpush1.bf16.msra.mxu0 %v1364
      %1386 = vmatprep.subr.bf16.mxu0 0
      %1387 = vmatpush1.bf16.msra.mxu0 %v1365
      %1388 = vmatprep.subr.bf16.mxu0 0
      %1389 = vmatpush1.bf16.msra.mxu0 %v1366
      %1390 = vmatprep.subr.bf16.mxu0 0
      %1391 = vmatpush1.bf16.msra.mxu0 %v1367
      %1392 = vmatprep.subr.bf16.mxu0 0
      %1393 = vmatpush1.bf16.msra.mxu0 0
      %1394 = vmatprep.subr.bf16.mxu0 0
      %1395 = vmatpush1.bf16.msra.mxu0 0
      %1396 = vmatprep.subr.bf16.mxu0 0
      %1397 = vmatpush1.bf16.msra.mxu0 0
      %1398 = vmatprep.subr.bf16.mxu0 0
      %1399 = vmatpush1.bf16.msra.mxu0 0
      %1400 = vmatprep.subr.bf16.mxu0 0
      %1401 = vmatpush1.bf16.msra.mxu0 0
      %1402 = vmatprep.subr.bf16.mxu0 0
      %1403 = vmatpush1.bf16.msra.mxu0 0
      %1404 = vmatprep.subr.bf16.mxu0 0
      %1405 = vmatpush1.bf16.msra.mxu0 0
      %1406 = vmatprep.subr.bf16.mxu0 0
      %1407 = vmatpush1.bf16.msra.mxu0 0
      %1408 = vmatprep.mubr.bf16.mxu0 0
      %1409 = vmatmul.mubr.bf16.gmra.mrb[0].mxu0 %v1280
      %v1410 = vpop.f32.mrb[0].mxu0
      %v1411 = vadd.f32 %v960, %v1410
      %v1412 = vpop.f32.mrb[0].mxu0
      %v1413 = vpop.f32.mrb[0].mxu0
      %v1414 = vadd.f32 %v964, %v1413
      %v1415 = vpop.f32.mrb[0].mxu0
      %1416 = vmatprep.mubr.bf16.mxu0 0
      %1417 = vmatmul.mubr.bf16.gmra.mrb[0].mxu0 %v1281
      %v1418 = vpop.f32.mrb[0].mxu0
      %v1419 = vadd.f32 %v970, %v1418
      %v1420 = vpop.f32.mrb[0].mxu0
      %v1421 = vpop.f32.mrb[0].mxu0
      %v1422 = vadd.f32 %v974, %v1421
      %v1423 = vpop.f32.mrb[0].mxu0
      %1424 = vmatprep.mubr.bf16.mxu0 0
      %1425 = vmatmul.mubr.bf16.gmra.mrb[0].mxu0 %v1282
      %v1426 = vpop.f32.mrb[0].mxu0
      %v1427 = vadd.f32 %v980, %v1426
      %v1428 = vpop.f32.mrb[0].mxu0
      %v1429 = vpop.f32.mrb[0].mxu0
      %v1430 = vadd.f32 %v984, %v1429
      %v1431 = vpop.f32.mrb[0].mxu0
      %1432 = vmatprep.mubr.bf16.mxu0 0
      %1433 = vmatmul.mubr.bf16.gmra.mrb[0].mxu0 %v1283
      %v1434 = vpop.f32.mrb[0].mxu0
      %v1435 = vadd.f32 %v990, %v1434
      %v1436 = vpop.f32.mrb[0].mxu0
      %v1437 = vpop.f32.mrb[0].mxu0
      %v1438 = vadd.f32 %v994, %v1437
      %v1439 = vpop.f32.mrb[0].mxu0
      %1440 = vmatprep.mubr.bf16.mxu0 0
      %1441 = vmatmul.mubr.bf16.gmra.mrb[0].mxu0 %v1284
      %v1442 = vpop.f32.mrb[0].mxu0
      %v1443 = vadd.f32 %v1000, %v1442
      %v1444 = vpop.f32.mrb[0].mxu0
      %v1445 = vpop.f32.mrb[0].mxu0
      %v1446 = vadd.f32 %v1004, %v1445
      %v1447 = vpop.f32.mrb[0].mxu0
      %1448 = vmatprep.mubr.bf16.mxu0 0
      %1449 = vmatmul.mubr.bf16.gmra.mrb[0].mxu0 %v1285
      %v1450 = vpop.f32.mrb[0].mxu0
      %v1451 = vadd.f32 %v1010, %v1450
      %v1452 = vpop.f32.mrb[0].mxu0
      %v1453 = vpop.f32.mrb[0].mxu0
      %v1454 = vadd.f32 %v1014, %v1453
      %v1455 = vpop.f32.mrb[0].mxu0
      %1456 = vmatprep.mubr.bf16.mxu0 0
      %1457 = vmatmul.mubr.bf16.gmra.mrb[0].mxu0 %v1286
      %v1458 = vpop.f32.mrb[0].mxu0
      %v1459 = vadd.f32 %v1020, %v1458
      %v1460 = vpop.f32.mrb[0].mxu0
      %v1461 = vpop.f32.mrb[0].mxu0
      %v1462 = vadd.f32 %v1024, %v1461
      %v1463 = vpop.f32.mrb[0].mxu0
      %1464 = vmatprep.mubr.bf16.mxu0 0
      %1465 = vmatmul.mubr.bf16.gmra.mrb[0].mxu0 %v1287
      %v1466 = vpop.f32.mrb[0].mxu0
      %v1467 = vadd.f32 %v1030, %v1466
      %v1468 = vpop.f32.mrb[0].mxu0
      %v1469 = vpop.f32.mrb[0].mxu0
      %v1470 = vadd.f32 %v1034, %v1469
      %v1471 = vpop.f32.mrb[0].mxu0
      %1472 = vdwg.mxu0
      %v1473 = vmax.f32 %v1411, 0.0
      %v1474 = vmax.f32 %v1414, 0.0
      %v1475 = vmax.f32 %v1419, 0.0
      %v1476 = vmax.f32 %v1422, 0.0
      %v1477 = vmax.f32 %v1427, 0.0
      %v1478 = vmax.f32 %v1430, 0.0
      %v1479 = vmax.f32 %v1435, 0.0
      %v1480 = vmax.f32 %v1438, 0.0
      %v1481 = vmax.f32 %v1443, 0.0
      %v1482 = vmax.f32 %v1446, 0.0
      %v1483 = vmax.f32 %v1451, 0.0
      %v1484 = vmax.f32 %v1454, 0.0
      %v1485 = vmax.f32 %v1459, 0.0
      %v1486 = vmax.f32 %v1462, 0.0
      %v1487 = vmax.f32 %v1467, 0.0
      %v1488 = vmax.f32 %v1470, 0.0
      %v1489 = vpack.c.bf16 %v1474, %v1473
      %v1490 = vpack.c.bf16 %v1476, %v1475
      %v1491 = vpack.c.bf16 %v1478, %v1477
      %v1492 = vpack.c.bf16 %v1480, %v1479
      %v1493 = vpack.c.bf16 %v1482, %v1481
      %v1494 = vpack.c.bf16 %v1484, %v1483
      %v1495 = vpack.c.bf16 %v1486, %v1485
      %v1496 = vpack.c.bf16 %v1488, %v1487
      %v1497 = vld [vmem:[%s3] sm:$0xf]
      %v1498 = vld [vmem:[%s3 + $0x4] sm:$0xf]
      %v1499 = vld [vmem:[%s3 + $0x8] sm:$0xf]
      %v1500 = vld [vmem:[%s3 + $0xc] sm:$0xf]
      %v1501 = vld [vmem:[%s3 + $0x10] sm:$0xf]
      %v1502 = vld [vmem:[%s3 + $0x14] sm:$0xf]
      %v1503 = vld [vmem:[%s3 + $0x18] sm:$0xf]
      %v1504 = vld [vmem:[%s3 + $0x1c] sm:$0xf]
      %v1505 = vld [vmem:[%s3 + $0x20] sm:$0xf]
      %v1506 = vld [vmem:[%s3 + $0x24] sm:$0xf]
      %v1507 = vld [vmem:[%s3 + $0x28] sm:$0xf]
      %v1508 = vld [vmem:[%s3 + $0x2c] sm:$0xf]
      %v1509 = vld [vmem:[%s3 + $0x30] sm:$0xf]
      %v1510 = vld [vmem:[%s3 + $0x34] sm:$0xf]
      %v1511 = vld [vmem:[%s3 + $0x38] sm:$0xf]
      %v1512 = vld [vmem:[%s3 + $0x3c] sm:$0xf]
      %v1529 = vunpack.c.l.b16 %v1497
      %v1530 = vunpack.c.l.b16 %v1498
      %v1531 = vunpack.c.l.b16 %v1499
      %v1532 = vunpack.c.l.b16 %v1500
      %v1533 = vunpack.c.l.b16 %v1501
      %v1534 = vunpack.c.l.b16 %v1502
      %v1535 = vunpack.c.l.b16 %v1503
      %v1536 = vunpack.c.l.b16 %v1504
      %v1537 = vunpack.c.l.b16 %v1505
      %v1538 = vunpack.c.l.b16 %v1506
      %v1539 = vunpack.c.l.b16 %v1507
      %v1540 = vunpack.c.l.b16 %v1508
      %v1541 = vunpack.c.l.b16 %v1509
      %v1542 = vunpack.c.l.b16 %v1510
      %v1543 = vunpack.c.l.b16 %v1511
      %v1544 = vunpack.c.l.b16 %v1512
      %v1545 = vpack.c.b16 %v1530, %v1529
      %v1546 = vpack.c.b16 %v1532, %v1531
      %v1547 = vpack.c.b16 %v1534, %v1533
      %v1548 = vpack.c.b16 %v1536, %v1535
      %v1549 = vpack.c.b16 %v1538, %v1537
      %v1550 = vpack.c.b16 %v1540, %v1539
      %v1551 = vpack.c.b16 %v1542, %v1541
      %v1552 = vpack.c.b16 %v1544, %v1543
      %1561 = vmatprep.subr.bf16.mxu0 0
      %1562 = vmatpush1.bf16.msra.mxu0 %v1545
      %1563 = vmatprep.subr.bf16.mxu0 0
      %1564 = vmatpush1.bf16.msra.mxu0 %v1546
      %1565 = vmatprep.subr.bf16.mxu0 0
      %1566 = vmatpush1.bf16.msra.mxu0 %v1547
      %1567 = vmatprep.subr.bf16.mxu0 0
      %1568 = vmatpush1.bf16.msra.mxu0 %v1548
      %1569 = vmatprep.subr.bf16.mxu0 0
      %1570 = vmatpush1.bf16.msra.mxu0 %v1549
      %1571 = vmatprep.subr.bf16.mxu0 0
      %1572 = vmatpush1.bf16.msra.mxu0 %v1550
      %1573 = vmatprep.subr.bf16.mxu0 0
      %1574 = vmatpush1.bf16.msra.mxu0 %v1551
      %1575 = vmatprep.subr.bf16.mxu0 0
      %1576 = vmatpush1.bf16.msra.mxu0 %v1552
      %1577 = vmatprep.subr.bf16.mxu0 0
      %1578 = vmatpush1.bf16.msra.mxu0 0
      %1579 = vmatprep.subr.bf16.mxu0 0
      %1580 = vmatpush1.bf16.msra.mxu0 0
      %1581 = vmatprep.subr.bf16.mxu0 0
      %1582 = vmatpush1.bf16.msra.mxu0 0
      %1583 = vmatprep.subr.bf16.mxu0 0
      %1584 = vmatpush1.bf16.msra.mxu0 0
      %1585 = vmatprep.subr.bf16.mxu0 0
      %1586 = vmatpush1.bf16.msra.mxu0 0
      %1587 = vmatprep.subr.bf16.mxu0 0
      %1588 = vmatpush1.bf16.msra.mxu0 0
      %1589 = vmatprep.subr.bf16.mxu0 0
      %1590 = vmatpush1.bf16.msra.mxu0 0
      %1591 = vmatprep.subr.bf16.mxu0 0
      %1592 = vmatpush1.bf16.msra.mxu0 0
      %1593 = vmatprep.mubr.bf16.mxu0 0
      %1594 = vmatmul.mubr.bf16.gmra.mrb[0].mxu0 %v1304
      %v1595 = vpop.f32.mrb[0].mxu0
      %v1596 = vadd.f32 %v962, %v1595
      %v1597 = vpop.f32.mrb[0].mxu0
      %v1598 = vpop.f32.mrb[0].mxu0
      %v1599 = vadd.f32 %v966, %v1598
      %v1600 = vpop.f32.mrb[0].mxu0
      %1601 = vmatprep.mubr.bf16.mxu0 0
      %1602 = vmatmul.mubr.bf16.gmra.mrb[0].mxu0 %v1305
      %v1603 = vpop.f32.mrb[0].mxu0
      %v1604 = vadd.f32 %v972, %v1603
      %v1605 = vpop.f32.mrb[0].mxu0
      %v1606 = vpop.f32.mrb[0].mxu0
      %v1607 = vadd.f32 %v976, %v1606
      %v1608 = vpop.f32.mrb[0].mxu0
      %1609 = vmatprep.mubr.bf16.mxu0 0
      %1610 = vmatmul.mubr.bf16.gmra.mrb[0].mxu0 %v1306
      %v1611 = vpop.f32.mrb[0].mxu0
      %v1612 = vadd.f32 %v982, %v1611
      %v1613 = vpop.f32.mrb[0].mxu0
      %v1614 = vpop.f32.mrb[0].mxu0
      %v1615 = vadd.f32 %v986, %v1614
      %v1616 = vpop.f32.mrb[0].mxu0
      %1617 = vmatprep.mubr.bf16.mxu0 0
      %1618 = vmatmul.mubr.bf16.gmra.mrb[0].mxu0 %v1307
      %v1619 = vpop.f32.mrb[0].mxu0
      %v1620 = vadd.f32 %v992, %v1619
      %v1621 = vpop.f32.mrb[0].mxu0
      %v1622 = vpop.f32.mrb[0].mxu0
      %v1623 = vadd.f32 %v996, %v1622
      %v1624 = vpop.f32.mrb[0].mxu0
      %1625 = vmatprep.mubr.bf16.mxu0 0
      %1626 = vmatmul.mubr.bf16.gmra.mrb[0].mxu0 %v1308
      %v1627 = vpop.f32.mrb[0].mxu0
      %v1628 = vadd.f32 %v1002, %v1627
      %v1629 = vpop.f32.mrb[0].mxu0
      %v1630 = vpop.f32.mrb[0].mxu0
      %v1631 = vadd.f32 %v1006, %v1630
      %v1632 = vpop.f32.mrb[0].mxu0
      %1633 = vmatprep.mubr.bf16.mxu0 0
      %1634 = vmatmul.mubr.bf16.gmra.mrb[0].mxu0 %v1309
      %v1635 = vpop.f32.mrb[0].mxu0
      %v1636 = vadd.f32 %v1012, %v1635
      %v1637 = vpop.f32.mrb[0].mxu0
      %v1638 = vpop.f32.mrb[0].mxu0
      %v1639 = vadd.f32 %v1016, %v1638
      %v1640 = vpop.f32.mrb[0].mxu0
      %1641 = vmatprep.mubr.bf16.mxu0 0
      %1642 = vmatmul.mubr.bf16.gmra.mrb[0].mxu0 %v1310
      %v1643 = vpop.f32.mrb[0].mxu0
      %v1644 = vadd.f32 %v1022, %v1643
      %v1645 = vpop.f32.mrb[0].mxu0
      %v1646 = vpop.f32.mrb[0].mxu0
      %v1647 = vadd.f32 %v1026, %v1646
      %v1648 = vpop.f32.mrb[0].mxu0
      %1649 = vmatprep.mubr.bf16.mxu0 0
      %1650 = vmatmul.mubr.bf16.gmra.mrb[0].mxu0 %v1311
      %v1651 = vpop.f32.mrb[0].mxu0
      %v1652 = vadd.f32 %v1032, %v1651
      %v1653 = vpop.f32.mrb[0].mxu0
      %v1654 = vpop.f32.mrb[0].mxu0
      %v1655 = vadd.f32 %v1036, %v1654
      %v1656 = vpop.f32.mrb[0].mxu0
      %1657 = vdwg.mxu0
      %v1658 = vmax.f32 %v1596, 0.0
      %v1659 = vmax.f32 %v1599, 0.0
      %v1660 = vmax.f32 %v1604, 0.0
      %v1661 = vmax.f32 %v1607, 0.0
      %v1662 = vmax.f32 %v1612, 0.0
      %v1663 = vmax.f32 %v1615, 0.0
      %v1664 = vmax.f32 %v1620, 0.0
      %v1665 = vmax.f32 %v1623, 0.0
      %v1666 = vmax.f32 %v1628, 0.0
      %v1667 = vmax.f32 %v1631, 0.0
      %v1668 = vmax.f32 %v1636, 0.0
      %v1669 = vmax.f32 %v1639, 0.0
      %v1670 = vmax.f32 %v1644, 0.0
      %v1671 = vmax.f32 %v1647, 0.0
      %v1672 = vmax.f32 %v1652, 0.0
      %v1673 = vmax.f32 %v1655, 0.0
      %v1674 = vpack.c.bf16 %v1659, %v1658
      %v1675 = vpack.c.bf16 %v1661, %v1660
      %v1676 = vpack.c.bf16 %v1663, %v1662
      %v1677 = vpack.c.bf16 %v1665, %v1664
      %v1678 = vpack.c.bf16 %v1667, %v1666
      %v1679 = vpack.c.bf16 %v1669, %v1668
      %v1680 = vpack.c.bf16 %v1671, %v1670
      %v1681 = vpack.c.bf16 %v1673, %v1672
      %v1682 = vld [vmem:[%s4] sm:$0xf]
      %v1683 = vld [vmem:[%s4 + $0x4] sm:$0xf]
      %v1684 = vld [vmem:[%s4 + $0x8] sm:$0xf]
      %v1685 = vld [vmem:[%s4 + $0xc] sm:$0xf]
      %v1686 = vld [vmem:[%s4 + $0x10] sm:$0xf]
      %v1687 = vld [vmem:[%s4 + $0x14] sm:$0xf]
      %v1688 = vld [vmem:[%s4 + $0x18] sm:$0xf]
      %v1689 = vld [vmem:[%s4 + $0x1c] sm:$0xf]
      %v1690 = vld [vmem:[%s4 + $0x20] sm:$0xf]
      %v1691 = vld [vmem:[%s4 + $0x24] sm:$0xf]
      %v1692 = vld [vmem:[%s4 + $0x28] sm:$0xf]
      %v1693 = vld [vmem:[%s4 + $0x2c] sm:$0xf]
      %v1694 = vld [vmem:[%s4 + $0x30] sm:$0xf]
      %v1695 = vld [vmem:[%s4 + $0x34] sm:$0xf]
      %v1696 = vld [vmem:[%s4 + $0x38] sm:$0xf]
      %v1697 = vld [vmem:[%s4 + $0x3c] sm:$0xf]
      %v1714 = vunpack.c.l.b16 %v1682
      %v1715 = vunpack.c.l.b16 %v1683
      %v1716 = vunpack.c.l.b16 %v1684
      %v1717 = vunpack.c.l.b16 %v1685
      %v1718 = vunpack.c.l.b16 %v1686
      %v1719 = vunpack.c.l.b16 %v1687
      %v1720 = vunpack.c.l.b16 %v1688
      %v1721 = vunpack.c.l.b16 %v1689
      %v1722 = vunpack.c.l.b16 %v1690
      %v1723 = vunpack.c.l.b16 %v1691
      %v1724 = vunpack.c.l.b16 %v1692
      %v1725 = vunpack.c.l.b16 %v1693
      %v1726 = vunpack.c.l.b16 %v1694
      %v1727 = vunpack.c.l.b16 %v1695
      %v1728 = vunpack.c.l.b16 %v1696
      %v1729 = vunpack.c.l.b16 %v1697
      %v1730 = vpack.c.b16 %v1715, %v1714
      %v1731 = vpack.c.b16 %v1717, %v1716
      %v1732 = vpack.c.b16 %v1719, %v1718
      %v1733 = vpack.c.b16 %v1721, %v1720
      %v1734 = vpack.c.b16 %v1723, %v1722
      %v1735 = vpack.c.b16 %v1725, %v1724
      %v1736 = vpack.c.b16 %v1727, %v1726
      %v1737 = vpack.c.b16 %v1729, %v1728
      %1746 = vmatprep.subr.bf16.mxu0 0
      %1747 = vmatpush1.bf16.msra.mxu0 %v1730
      %1748 = vmatprep.subr.bf16.mxu0 0
      %1749 = vmatpush1.bf16.msra.mxu0 %v1731
      %1750 = vmatprep.subr.bf16.mxu0 0
      %1751 = vmatpush1.bf16.msra.mxu0 %v1732
      %1752 = vmatprep.subr.bf16.mxu0 0
      %1753 = vmatpush1.bf16.msra.mxu0 %v1733
      %1754 = vmatprep.subr.bf16.mxu0 0
      %1755 = vmatpush1.bf16.msra.mxu0 %v1734
      %1756 = vmatprep.subr.bf16.mxu0 0
      %1757 = vmatpush1.bf16.msra.mxu0 %v1735
      %1758 = vmatprep.subr.bf16.mxu0 0
      %1759 = vmatpush1.bf16.msra.mxu0 %v1736
      %1760 = vmatprep.subr.bf16.mxu0 0
      %1761 = vmatpush1.bf16.msra.mxu0 %v1737
      %1762 = vmatprep.subr.bf16.mxu0 0
      %1763 = vmatpush1.bf16.msra.mxu0 0
      %1764 = vmatprep.subr.bf16.mxu0 0
      %1765 = vmatpush1.bf16.msra.mxu0 0
      %1766 = vmatprep.subr.bf16.mxu0 0
      %1767 = vmatpush1.bf16.msra.mxu0 0
      %1768 = vmatprep.subr.bf16.mxu0 0
      %1769 = vmatpush1.bf16.msra.mxu0 0
      %1770 = vmatprep.subr.bf16.mxu0 0
      %1771 = vmatpush1.bf16.msra.mxu0 0
      %1772 = vmatprep.subr.bf16.mxu0 0
      %1773 = vmatpush1.bf16.msra.mxu0 0
      %1774 = vmatprep.subr.bf16.mxu0 0
      %1775 = vmatpush1.bf16.msra.mxu0 0
      %1776 = vmatprep.subr.bf16.mxu0 0
      %1777 = vmatpush1.bf16.msra.mxu0 0
      %1778 = vmatprep.mubr.bf16.mxu0 0
      %1779 = vmatmul.mubr.bf16.gmra.mrb[0].mxu0 %v1489
      %v1780 = vpop.f32.mrb[0].mxu0
      %v1781 = vadd.f32 %v1073, %v1780
      %v1782 = vpop.f32.mrb[0].mxu0
      %v1783 = vpop.f32.mrb[0].mxu0
      %v1784 = vadd.f32 %v1077, %v1783
      %v1785 = vpop.f32.mrb[0].mxu0
      %1786 = vmatprep.mubr.bf16.mxu0 0
      %1787 = vmatmul.mubr.bf16.gmra.mrb[0].mxu0 %v1490
      %v1788 = vpop.f32.mrb[0].mxu0
      %v1789 = vadd.f32 %v1083, %v1788
      %v1790 = vpop.f32.mrb[0].mxu0
      %v1791 = vpop.f32.mrb[0].mxu0
      %v1792 = vadd.f32 %v1087, %v1791
      %v1793 = vpop.f32.mrb[0].mxu0
      %1794 = vmatprep.mubr.bf16.mxu0 0
      %1795 = vmatmul.mubr.bf16.gmra.mrb[0].mxu0 %v1491
      %v1796 = vpop.f32.mrb[0].mxu0
      %v1797 = vadd.f32 %v1093, %v1796
      %v1798 = vpop.f32.mrb[0].mxu0
      %v1799 = vpop.f32.mrb[0].mxu0
      %v1800 = vadd.f32 %v1097, %v1799
      %v1801 = vpop.f32.mrb[0].mxu0
      %1802 = vmatprep.mubr.bf16.mxu0 0
      %1803 = vmatmul.mubr.bf16.gmra.mrb[0].mxu0 %v1492
      %v1804 = vpop.f32.mrb[0].mxu0
      %v1805 = vadd.f32 %v1103, %v1804
      %v1806 = vpop.f32.mrb[0].mxu0
      %v1807 = vpop.f32.mrb[0].mxu0
      %v1808 = vadd.f32 %v1107, %v1807
      %v1809 = vpop.f32.mrb[0].mxu0
      %1810 = vmatprep.mubr.bf16.mxu0 0
      %1811 = vmatmul.mubr.bf16.gmra.mrb[0].mxu0 %v1493
      %v1812 = vpop.f32.mrb[0].mxu0
      %v1813 = vadd.f32 %v1113, %v1812
      %v1814 = vpop.f32.mrb[0].mxu0
      %v1815 = vpop.f32.mrb[0].mxu0
      %v1816 = vadd.f32 %v1117, %v1815
      %v1817 = vpop.f32.mrb[0].mxu0
      %1818 = vmatprep.mubr.bf16.mxu0 0
      %1819 = vmatmul.mubr.bf16.gmra.mrb[0].mxu0 %v1494
      %v1820 = vpop.f32.mrb[0].mxu0
      %v1821 = vadd.f32 %v1123, %v1820
      %v1822 = vpop.f32.mrb[0].mxu0
      %v1823 = vpop.f32.mrb[0].mxu0
      %v1824 = vadd.f32 %v1127, %v1823
      %v1825 = vpop.f32.mrb[0].mxu0
      %1826 = vmatprep.mubr.bf16.mxu0 0
      %1827 = vmatmul.mubr.bf16.gmra.mrb[0].mxu0 %v1495
      %v1828 = vpop.f32.mrb[0].mxu0
      %v1829 = vadd.f32 %v1133, %v1828
      %v1830 = vpop.f32.mrb[0].mxu0
      %v1831 = vpop.f32.mrb[0].mxu0
      %v1832 = vadd.f32 %v1137, %v1831
      %v1833 = vpop.f32.mrb[0].mxu0
      %1834 = vmatprep.mubr.bf16.mxu0 0
      %1835 = vmatmul.mubr.bf16.gmra.mrb[0].mxu0 %v1496
      %v1836 = vpop.f32.mrb[0].mxu0
      %v1837 = vadd.f32 %v1143, %v1836
      %v1838 = vpop.f32.mrb[0].mxu0
      %v1839 = vpop.f32.mrb[0].mxu0
      %v1840 = vadd.f32 %v1147, %v1839
      %v1841 = vpop.f32.mrb[0].mxu0
      %1842 = vdwg.mxu0
      %v1843 = vmax.f32 %v1781, 0.0
      %v1844 = vmax.f32 %v1784, 0.0
      %v1845 = vmax.f32 %v1789, 0.0
      %v1846 = vmax.f32 %v1792, 0.0
      %v1847 = vmax.f32 %v1797, 0.0
      %v1848 = vmax.f32 %v1800, 0.0
      %v1849 = vmax.f32 %v1805, 0.0
      %v1850 = vmax.f32 %v1808, 0.0
      %v1851 = vmax.f32 %v1813, 0.0
      %v1852 = vmax.f32 %v1816, 0.0
      %v1853 = vmax.f32 %v1821, 0.0
      %v1854 = vmax.f32 %v1824, 0.0
      %v1855 = vmax.f32 %v1829, 0.0
      %v1856 = vmax.f32 %v1832, 0.0
      %v1857 = vmax.f32 %v1837, 0.0
      %v1858 = vmax.f32 %v1840, 0.0
      %v1859 = vpack.c.bf16 %v1844, %v1843
      %v1860 = vpack.c.bf16 %v1846, %v1845
      %v1861 = vpack.c.bf16 %v1848, %v1847
      %v1862 = vpack.c.bf16 %v1850, %v1849
      %v1863 = vpack.c.bf16 %v1852, %v1851
      %v1864 = vpack.c.bf16 %v1854, %v1853
      %v1865 = vpack.c.bf16 %v1856, %v1855
      %v1866 = vpack.c.bf16 %v1858, %v1857
      %v1867 = vld [vmem:[%s5] sm:$0xf]
      %v1868 = vld [vmem:[%s5 + $0x4] sm:$0xf]
      %v1869 = vld [vmem:[%s5 + $0x8] sm:$0xf]
      %v1870 = vld [vmem:[%s5 + $0xc] sm:$0xf]
      %v1871 = vld [vmem:[%s5 + $0x10] sm:$0xf]
      %v1872 = vld [vmem:[%s5 + $0x14] sm:$0xf]
      %v1873 = vld [vmem:[%s5 + $0x18] sm:$0xf]
      %v1874 = vld [vmem:[%s5 + $0x1c] sm:$0xf]
      %v1875 = vld [vmem:[%s5 + $0x20] sm:$0xf]
      %v1876 = vld [vmem:[%s5 + $0x24] sm:$0xf]
      %v1877 = vld [vmem:[%s5 + $0x28] sm:$0xf]
      %v1878 = vld [vmem:[%s5 + $0x2c] sm:$0xf]
      %v1879 = vld [vmem:[%s5 + $0x30] sm:$0xf]
      %v1880 = vld [vmem:[%s5 + $0x34] sm:$0xf]
      %v1881 = vld [vmem:[%s5 + $0x38] sm:$0xf]
      %v1882 = vld [vmem:[%s5 + $0x3c] sm:$0xf]
      %v1899 = vunpack.c.l.b16 %v1867
      %v1900 = vunpack.c.l.b16 %v1868
      %v1901 = vunpack.c.l.b16 %v1869
      %v1902 = vunpack.c.l.b16 %v1870
      %v1903 = vunpack.c.l.b16 %v1871
      %v1904 = vunpack.c.l.b16 %v1872
      %v1905 = vunpack.c.l.b16 %v1873
      %v1906 = vunpack.c.l.b16 %v1874
      %v1907 = vunpack.c.l.b16 %v1875
      %v1908 = vunpack.c.l.b16 %v1876
      %v1909 = vunpack.c.l.b16 %v1877
      %v1910 = vunpack.c.l.b16 %v1878
      %v1911 = vunpack.c.l.b16 %v1879
      %v1912 = vunpack.c.l.b16 %v1880
      %v1913 = vunpack.c.l.b16 %v1881
      %v1914 = vunpack.c.l.b16 %v1882
      %v1915 = vpack.c.b16 %v1900, %v1899
      %v1916 = vpack.c.b16 %v1902, %v1901
      %v1917 = vpack.c.b16 %v1904, %v1903
      %v1918 = vpack.c.b16 %v1906, %v1905
      %v1919 = vpack.c.b16 %v1908, %v1907
      %v1920 = vpack.c.b16 %v1910, %v1909
      %v1921 = vpack.c.b16 %v1912, %v1911
      %v1922 = vpack.c.b16 %v1914, %v1913
      %1931 = vmatprep.subr.bf16.mxu0 0
      %1932 = vmatpush1.bf16.msra.mxu0 %v1915
      %1933 = vmatprep.subr.bf16.mxu0 0
      %1934 = vmatpush1.bf16.msra.mxu0 %v1916
      %1935 = vmatprep.subr.bf16.mxu0 0
      %1936 = vmatpush1.bf16.msra.mxu0 %v1917
      %1937 = vmatprep.subr.bf16.mxu0 0
      %1938 = vmatpush1.bf16.msra.mxu0 %v1918
      %1939 = vmatprep.subr.bf16.mxu0 0
      %1940 = vmatpush1.bf16.msra.mxu0 %v1919
      %1941 = vmatprep.subr.bf16.mxu0 0
      %1942 = vmatpush1.bf16.msra.mxu0 %v1920
      %1943 = vmatprep.subr.bf16.mxu0 0
      %1944 = vmatpush1.bf16.msra.mxu0 %v1921
      %1945 = vmatprep.subr.bf16.mxu0 0
      %1946 = vmatpush1.bf16.msra.mxu0 %v1922
      %1947 = vmatprep.subr.bf16.mxu0 0
      %1948 = vmatpush1.bf16.msra.mxu0 0
      %1949 = vmatprep.subr.bf16.mxu0 0
      %1950 = vmatpush1.bf16.msra.mxu0 0
      %1951 = vmatprep.subr.bf16.mxu0 0
      %1952 = vmatpush1.bf16.msra.mxu0 0
      %1953 = vmatprep.subr.bf16.mxu0 0
      %1954 = vmatpush1.bf16.msra.mxu0 0
      %1955 = vmatprep.subr.bf16.mxu0 0
      %1956 = vmatpush1.bf16.msra.mxu0 0
      %1957 = vmatprep.subr.bf16.mxu0 0
      %1958 = vmatpush1.bf16.msra.mxu0 0
      %1959 = vmatprep.subr.bf16.mxu0 0
      %1960 = vmatpush1.bf16.msra.mxu0 0
      %1961 = vmatprep.subr.bf16.mxu0 0
      %1962 = vmatpush1.bf16.msra.mxu0 0
      %1963 = vmatprep.mubr.bf16.mxu0 0
      %1964 = vmatmul.mubr.bf16.gmra.mrb[0].mxu0 %v1674
      %v1965 = vpop.f32.mrb[0].mxu0
      %v1966 = vadd.f32 %v1075, %v1965
      %v1967 = vpop.f32.mrb[0].mxu0
      %v1968 = vpop.f32.mrb[0].mxu0
      %v1969 = vadd.f32 %v1079, %v1968
      %v1970 = vpop.f32.mrb[0].mxu0
      %1971 = vmatprep.mubr.bf16.mxu0 0
      %1972 = vmatmul.mubr.bf16.gmra.mrb[0].mxu0 %v1675
      %v1973 = vpop.f32.mrb[0].mxu0
      %v1974 = vadd.f32 %v1085, %v1973
      %v1975 = vpop.f32.mrb[0].mxu0
      %v1976 = vpop.f32.mrb[0].mxu0
      %v1977 = vadd.f32 %v1089, %v1976
      %v1978 = vpop.f32.mrb[0].mxu0
      %1979 = vmatprep.mubr.bf16.mxu0 0
      %1980 = vmatmul.mubr.bf16.gmra.mrb[0].mxu0 %v1676
      %v1981 = vpop.f32.mrb[0].mxu0
      %v1982 = vadd.f32 %v1095, %v1981
      %v1983 = vpop.f32.mrb[0].mxu0
      %v1984 = vpop.f32.mrb[0].mxu0
      %v1985 = vadd.f32 %v1099, %v1984
      %v1986 = vpop.f32.mrb[0].mxu0
      %1987 = vmatprep.mubr.bf16.mxu0 0
      %1988 = vmatmul.mubr.bf16.gmra.mrb[0].mxu0 %v1677
      %v1989 = vpop.f32.mrb[0].mxu0
      %v1990 = vadd.f32 %v1105, %v1989
      %v1991 = vpop.f32.mrb[0].mxu0
      %v1992 = vpop.f32.mrb[0].mxu0
      %v1993 = vadd.f32 %v1109, %v1992
      %v1994 = vpop.f32.mrb[0].mxu0
      %1995 = vmatprep.mubr.bf16.mxu0 0
      %1996 = vmatmul.mubr.bf16.gmra.mrb[0].mxu0 %v1678
      %v1997 = vpop.f32.mrb[0].mxu0
      %v1998 = vadd.f32 %v1115, %v1997
      %v1999 = vpop.f32.mrb[0].mxu0
      %v2000 = vpop.f32.mrb[0].mxu0
      %v2001 = vadd.f32 %v1119, %v2000
      %v2002 = vpop.f32.mrb[0].mxu0
      %2003 = vmatprep.mubr.bf16.mxu0 0
      %2004 = vmatmul.mubr.bf16.gmra.mrb[0].mxu0 %v1679
      %v2005 = vpop.f32.mrb[0].mxu0
      %v2006 = vadd.f32 %v1125, %v2005
      %v2007 = vpop.f32.mrb[0].mxu0
      %v2008 = vpop.f32.mrb[0].mxu0
      %v2009 = vadd.f32 %v1129, %v2008
      %v2010 = vpop.f32.mrb[0].mxu0
      %2011 = vmatprep.mubr.bf16.mxu0 0
      %2012 = vmatmul.mubr.bf16.gmra.mrb[0].mxu0 %v1680
      %v2013 = vpop.f32.mrb[0].mxu0
      %v2014 = vadd.f32 %v1135, %v2013
      %v2015 = vpop.f32.mrb[0].mxu0
      %v2016 = vpop.f32.mrb[0].mxu0
      %v2017 = vadd.f32 %v1139, %v2016
      %v2018 = vpop.f32.mrb[0].mxu0
      %2019 = vmatprep.mubr.bf16.mxu0 0
      %2020 = vmatmul.mubr.bf16.gmra.mrb[0].mxu0 %v1681
      %v2021 = vpop.f32.mrb[0].mxu0
      %v2022 = vadd.f32 %v1145, %v2021
      %v2023 = vpop.f32.mrb[0].mxu0
      %v2024 = vpop.f32.mrb[0].mxu0
      %v2025 = vadd.f32 %v1149, %v2024
      %v2026 = vpop.f32.mrb[0].mxu0
      %2027 = vdwg.mxu0
      %v2028 = vmax.f32 %v1966, 0.0
      %v2029 = vmax.f32 %v1969, 0.0
      %v2030 = vmax.f32 %v1974, 0.0
      %v2031 = vmax.f32 %v1977, 0.0
      %v2032 = vmax.f32 %v1982, 0.0
      %v2033 = vmax.f32 %v1985, 0.0
      %v2034 = vmax.f32 %v1990, 0.0
      %v2035 = vmax.f32 %v1993, 0.0
      %v2036 = vmax.f32 %v1998, 0.0
      %v2037 = vmax.f32 %v2001, 0.0
      %v2038 = vmax.f32 %v2006, 0.0
      %v2039 = vmax.f32 %v2009, 0.0
      %v2040 = vmax.f32 %v2014, 0.0
      %v2041 = vmax.f32 %v2017, 0.0
      %v2042 = vmax.f32 %v2022, 0.0
      %v2043 = vmax.f32 %v2025, 0.0
      %v2044 = vpack.c.bf16 %v2029, %v2028
      %v2045 = vpack.c.bf16 %v2031, %v2030
      %v2046 = vpack.c.bf16 %v2033, %v2032
      %v2047 = vpack.c.bf16 %v2035, %v2034
      %v2048 = vpack.c.bf16 %v2037, %v2036
      %v2049 = vpack.c.bf16 %v2039, %v2038
      %v2050 = vpack.c.bf16 %v2041, %v2040
      %v2051 = vpack.c.bf16 %v2043, %v2042
      %v2052 = vld [vmem:[%s6] sm:$0xf]
      %v2053 = vld [vmem:[%s6 + $0x4] sm:$0xf]
      %v2054 = vld [vmem:[%s6 + $0x8] sm:$0xf]
      %v2055 = vld [vmem:[%s6 + $0xc] sm:$0xf]
      %v2056 = vld [vmem:[%s6 + $0x10] sm:$0xf]
      %v2057 = vld [vmem:[%s6 + $0x14] sm:$0xf]
      %v2058 = vld [vmem:[%s6 + $0x18] sm:$0xf]
      %v2059 = vld [vmem:[%s6 + $0x1c] sm:$0xf]
      %v2060 = vld [vmem:[%s6 + $0x20] sm:$0xf]
      %v2061 = vld [vmem:[%s6 + $0x24] sm:$0xf]
      %v2062 = vld [vmem:[%s6 + $0x28] sm:$0xf]
      %v2063 = vld [vmem:[%s6 + $0x2c] sm:$0xf]
      %v2064 = vld [vmem:[%s6 + $0x30] sm:$0xf]
      %v2065 = vld [vmem:[%s6 + $0x34] sm:$0xf]
      %v2066 = vld [vmem:[%s6 + $0x38] sm:$0xf]
      %v2067 = vld [vmem:[%s6 + $0x3c] sm:$0xf]
      %v2084 = vunpack.c.l.b16 %v2052
      %v2085 = vunpack.c.l.b16 %v2053
      %v2086 = vunpack.c.l.b16 %v2054
      %v2087 = vunpack.c.l.b16 %v2055
      %v2088 = vunpack.c.l.b16 %v2056
      %v2089 = vunpack.c.l.b16 %v2057
      %v2090 = vunpack.c.l.b16 %v2058
      %v2091 = vunpack.c.l.b16 %v2059
      %v2092 = vunpack.c.l.b16 %v2060
      %v2093 = vunpack.c.l.b16 %v2061
      %v2094 = vunpack.c.l.b16 %v2062
      %v2095 = vunpack.c.l.b16 %v2063
      %v2096 = vunpack.c.l.b16 %v2064
      %v2097 = vunpack.c.l.b16 %v2065
      %v2098 = vunpack.c.l.b16 %v2066
      %v2099 = vunpack.c.l.b16 %v2067
      %v2100 = vpack.c.b16 %v2085, %v2084
      %v2101 = vpack.c.b16 %v2087, %v2086
      %v2102 = vpack.c.b16 %v2089, %v2088
      %v2103 = vpack.c.b16 %v2091, %v2090
      %v2104 = vpack.c.b16 %v2093, %v2092
      %v2105 = vpack.c.b16 %v2095, %v2094
      %v2106 = vpack.c.b16 %v2097, %v2096
      %v2107 = vpack.c.b16 %v2099, %v2098
      %2116 = vmatprep.subr.bf16.mxu0 0
      %2117 = vmatpush1.bf16.msra.mxu0 %v2100
      %2118 = vmatprep.subr.bf16.mxu0 0
      %2119 = vmatpush1.bf16.msra.mxu0 %v2101
      %2120 = vmatprep.subr.bf16.mxu0 0
      %2121 = vmatpush1.bf16.msra.mxu0 %v2102
      %2122 = vmatprep.subr.bf16.mxu0 0
      %2123 = vmatpush1.bf16.msra.mxu0 %v2103
      %2124 = vmatprep.subr.bf16.mxu0 0
      %2125 = vmatpush1.bf16.msra.mxu0 %v2104
      %2126 = vmatprep.subr.bf16.mxu0 0
      %2127 = vmatpush1.bf16.msra.mxu0 %v2105
      %2128 = vmatprep.subr.bf16.mxu0 0
      %2129 = vmatpush1.bf16.msra.mxu0 %v2106
      %2130 = vmatprep.subr.bf16.mxu0 0
      %2131 = vmatpush1.bf16.msra.mxu0 %v2107
      %2132 = vmatprep.subr.bf16.mxu0 0
      %2133 = vmatpush1.bf16.msra.mxu0 0
      %2134 = vmatprep.subr.bf16.mxu0 0
      %2135 = vmatpush1.bf16.msra.mxu0 0
      %2136 = vmatprep.subr.bf16.mxu0 0
      %2137 = vmatpush1.bf16.msra.mxu0 0
      %2138 = vmatprep.subr.bf16.mxu0 0
      %2139 = vmatpush1.bf16.msra.mxu0 0
      %2140 = vmatprep.subr.bf16.mxu0 0
      %2141 = vmatpush1.bf16.msra.mxu0 0
      %2142 = vmatprep.subr.bf16.mxu0 0
      %2143 = vmatpush1.bf16.msra.mxu0 0
      %2144 = vmatprep.subr.bf16.mxu0 0
      %2145 = vmatpush1.bf16.msra.mxu0 0
      %2146 = vmatprep.subr.bf16.mxu0 0
      %2147 = vmatpush1.bf16.msra.mxu0 0
      %2148 = vmatprep.mubr.bf16.mxu0 0
      %2149 = vmatmul.mubr.bf16.gmra.mrb[0].mxu0 %v1859
      %v2150 = vpop.f32.mrb[0].mxu0
      %v2151 = vadd.f32 %v1186, %v2150
      %v2152 = vpop.f32.mrb[0].mxu0
      %v2153 = vpop.f32.mrb[0].mxu0
      %v2154 = vadd.f32 %v1190, %v2153
      %v2155 = vpop.f32.mrb[0].mxu0
      %2156 = vmatprep.mubr.bf16.mxu0 0
      %2157 = vmatmul.mubr.bf16.gmra.mrb[0].mxu0 %v1860
      %v2158 = vpop.f32.mrb[0].mxu0
      %v2159 = vadd.f32 %v1196, %v2158
      %v2160 = vpop.f32.mrb[0].mxu0
      %v2161 = vpop.f32.mrb[0].mxu0
      %v2162 = vadd.f32 %v1200, %v2161
      %v2163 = vpop.f32.mrb[0].mxu0
      %2164 = vmatprep.mubr.bf16.mxu0 0
      %2165 = vmatmul.mubr.bf16.gmra.mrb[0].mxu0 %v1861
      %v2166 = vpop.f32.mrb[0].mxu0
      %v2167 = vadd.f32 %v1206, %v2166
      %v2168 = vpop.f32.mrb[0].mxu0
      %v2169 = vpop.f32.mrb[0].mxu0
      %v2170 = vadd.f32 %v1210, %v2169
      %v2171 = vpop.f32.mrb[0].mxu0
      %2172 = vmatprep.mubr.bf16.mxu0 0
      %2173 = vmatmul.mubr.bf16.gmra.mrb[0].mxu0 %v1862
      %v2174 = vpop.f32.mrb[0].mxu0
      %v2175 = vadd.f32 %v1216, %v2174
      %v2176 = vpop.f32.mrb[0].mxu0
      %v2177 = vpop.f32.mrb[0].mxu0
      %v2178 = vadd.f32 %v1220, %v2177
      %v2179 = vpop.f32.mrb[0].mxu0
      %2180 = vmatprep.mubr.bf16.mxu0 0
      %2181 = vmatmul.mubr.bf16.gmra.mrb[0].mxu0 %v1863
      %v2182 = vpop.f32.mrb[0].mxu0
      %v2183 = vadd.f32 %v1226, %v2182
      %v2184 = vpop.f32.mrb[0].mxu0
      %v2185 = vpop.f32.mrb[0].mxu0
      %v2186 = vadd.f32 %v1230, %v2185
      %v2187 = vpop.f32.mrb[0].mxu0
      %2188 = vmatprep.mubr.bf16.mxu0 0
      %2189 = vmatmul.mubr.bf16.gmra.mrb[0].mxu0 %v1864
      %v2190 = vpop.f32.mrb[0].mxu0
      %v2191 = vadd.f32 %v1236, %v2190
      %v2192 = vpop.f32.mrb[0].mxu0
      %v2193 = vpop.f32.mrb[0].mxu0
      %v2194 = vadd.f32 %v1240, %v2193
      %v2195 = vpop.f32.mrb[0].mxu0
      %2196 = vmatprep.mubr.bf16.mxu0 0
      %2197 = vmatmul.mubr.bf16.gmra.mrb[0].mxu0 %v1865
      %v2198 = vpop.f32.mrb[0].mxu0
      %v2199 = vadd.f32 %v1246, %v2198
      %v2200 = vpop.f32.mrb[0].mxu0
      %v2201 = vpop.f32.mrb[0].mxu0
      %v2202 = vadd.f32 %v1250, %v2201
      %v2203 = vpop.f32.mrb[0].mxu0
      %2204 = vmatprep.mubr.bf16.mxu0 0
      %2205 = vmatmul.mubr.bf16.gmra.mrb[0].mxu0 %v1866
      %v2206 = vpop.f32.mrb[0].mxu0
      %v2207 = vadd.f32 %v1256, %v2206
      %v2208 = vpop.f32.mrb[0].mxu0
      %v2209 = vpop.f32.mrb[0].mxu0
      %v2210 = vadd.f32 %v1260, %v2209
      %v2211 = vpop.f32.mrb[0].mxu0
      %2212 = vdwg.mxu0
      %v2213 = vmax.f32 %v2151, 0.0
      %v2214 = vmax.f32 %v2154, 0.0
      %v2215 = vmax.f32 %v2159, 0.0
      %v2216 = vmax.f32 %v2162, 0.0
      %v2217 = vmax.f32 %v2167, 0.0
      %v2218 = vmax.f32 %v2170, 0.0
      %v2219 = vmax.f32 %v2175, 0.0
      %v2220 = vmax.f32 %v2178, 0.0
      %v2221 = vmax.f32 %v2183, 0.0
      %v2222 = vmax.f32 %v2186, 0.0
      %v2223 = vmax.f32 %v2191, 0.0
      %v2224 = vmax.f32 %v2194, 0.0
      %v2225 = vmax.f32 %v2199, 0.0
      %v2226 = vmax.f32 %v2202, 0.0
      %v2227 = vmax.f32 %v2207, 0.0
      %v2228 = vmax.f32 %v2210, 0.0
      %v2229 = vpack.c.bf16 %v2214, %v2213
      %v2230 = vpack.c.bf16 %v2216, %v2215
      %v2231 = vpack.c.bf16 %v2218, %v2217
      %v2232 = vpack.c.bf16 %v2220, %v2219
      %v2233 = vpack.c.bf16 %v2222, %v2221
      %v2234 = vpack.c.bf16 %v2224, %v2223
      %v2235 = vpack.c.bf16 %v2226, %v2225
      %v2236 = vpack.c.bf16 %v2228, %v2227
      %v2237 = vld [vmem:[%s7] sm:$0xf]
      %v2238 = vld [vmem:[%s7 + $0x4] sm:$0xf]
      %v2239 = vld [vmem:[%s7 + $0x8] sm:$0xf]
      %v2240 = vld [vmem:[%s7 + $0xc] sm:$0xf]
      %v2241 = vld [vmem:[%s7 + $0x10] sm:$0xf]
      %v2242 = vld [vmem:[%s7 + $0x14] sm:$0xf]
      %v2243 = vld [vmem:[%s7 + $0x18] sm:$0xf]
      %v2244 = vld [vmem:[%s7 + $0x1c] sm:$0xf]
      %v2245 = vld [vmem:[%s7 + $0x20] sm:$0xf]
      %v2246 = vld [vmem:[%s7 + $0x24] sm:$0xf]
      %v2247 = vld [vmem:[%s7 + $0x28] sm:$0xf]
      %v2248 = vld [vmem:[%s7 + $0x2c] sm:$0xf]
      %v2249 = vld [vmem:[%s7 + $0x30] sm:$0xf]
      %v2250 = vld [vmem:[%s7 + $0x34] sm:$0xf]
      %v2251 = vld [vmem:[%s7 + $0x38] sm:$0xf]
      %v2252 = vld [vmem:[%s7 + $0x3c] sm:$0xf]
      %v2269 = vunpack.c.l.b16 %v2237
      %v2270 = vunpack.c.l.b16 %v2238
      %v2271 = vunpack.c.l.b16 %v2239
      %v2272 = vunpack.c.l.b16 %v2240
      %v2273 = vunpack.c.l.b16 %v2241
      %v2274 = vunpack.c.l.b16 %v2242
      %v2275 = vunpack.c.l.b16 %v2243
      %v2276 = vunpack.c.l.b16 %v2244
      %v2277 = vunpack.c.l.b16 %v2245
      %v2278 = vunpack.c.l.b16 %v2246
      %v2279 = vunpack.c.l.b16 %v2247
      %v2280 = vunpack.c.l.b16 %v2248
      %v2281 = vunpack.c.l.b16 %v2249
      %v2282 = vunpack.c.l.b16 %v2250
      %v2283 = vunpack.c.l.b16 %v2251
      %v2284 = vunpack.c.l.b16 %v2252
      %v2285 = vpack.c.b16 %v2270, %v2269
      %v2286 = vpack.c.b16 %v2272, %v2271
      %v2287 = vpack.c.b16 %v2274, %v2273
      %v2288 = vpack.c.b16 %v2276, %v2275
      %v2289 = vpack.c.b16 %v2278, %v2277
      %v2290 = vpack.c.b16 %v2280, %v2279
      %v2291 = vpack.c.b16 %v2282, %v2281
      %v2292 = vpack.c.b16 %v2284, %v2283
      %2301 = vmatprep.subr.bf16.mxu0 0
      %2302 = vmatpush1.bf16.msra.mxu0 %v2285
      %2303 = vmatprep.subr.bf16.mxu0 0
      %2304 = vmatpush1.bf16.msra.mxu0 %v2286
      %2305 = vmatprep.subr.bf16.mxu0 0
      %2306 = vmatpush1.bf16.msra.mxu0 %v2287
      %2307 = vmatprep.subr.bf16.mxu0 0
      %2308 = vmatpush1.bf16.msra.mxu0 %v2288
      %2309 = vmatprep.subr.bf16.mxu0 0
      %2310 = vmatpush1.bf16.msra.mxu0 %v2289
      %2311 = vmatprep.subr.bf16.mxu0 0
      %2312 = vmatpush1.bf16.msra.mxu0 %v2290
      %2313 = vmatprep.subr.bf16.mxu0 0
      %2314 = vmatpush1.bf16.msra.mxu0 %v2291
      %2315 = vmatprep.subr.bf16.mxu0 0
      %2316 = vmatpush1.bf16.msra.mxu0 %v2292
      %2317 = vmatprep.subr.bf16.mxu0 0
      %2318 = vmatpush1.bf16.msra.mxu0 0
      %2319 = vmatprep.subr.bf16.mxu0 0
      %2320 = vmatpush1.bf16.msra.mxu0 0
      %2321 = vmatprep.subr.bf16.mxu0 0
      %2322 = vmatpush1.bf16.msra.mxu0 0
      %2323 = vmatprep.subr.bf16.mxu0 0
      %2324 = vmatpush1.bf16.msra.mxu0 0
      %2325 = vmatprep.subr.bf16.mxu0 0
      %2326 = vmatpush1.bf16.msra.mxu0 0
      %2327 = vmatprep.subr.bf16.mxu0 0
      %2328 = vmatpush1.bf16.msra.mxu0 0
      %2329 = vmatprep.subr.bf16.mxu0 0
      %2330 = vmatpush1.bf16.msra.mxu0 0
      %2331 = vmatprep.subr.bf16.mxu0 0
      %2332 = vmatpush1.bf16.msra.mxu0 0
      %2333 = vmatprep.mubr.bf16.mxu0 0
      %2334 = vmatmul.mubr.bf16.gmra.mrb[0].mxu0 %v2044
      %v2335 = vpop.f32.mrb[0].mxu0
      %v2336 = vadd.f32 %v1188, %v2335
      %v2337 = vpop.f32.mrb[0].mxu0
      %v2338 = vpop.f32.mrb[0].mxu0
      %v2339 = vadd.f32 %v1192, %v2338
      %v2340 = vpop.f32.mrb[0].mxu0
      %2341 = vmatprep.mubr.bf16.mxu0 0
      %2342 = vmatmul.mubr.bf16.gmra.mrb[0].mxu0 %v2045
      %v2343 = vpop.f32.mrb[0].mxu0
      %v2344 = vadd.f32 %v1198, %v2343
      %v2345 = vpop.f32.mrb[0].mxu0
      %v2346 = vpop.f32.mrb[0].mxu0
      %v2347 = vadd.f32 %v1202, %v2346
      %v2348 = vpop.f32.mrb[0].mxu0
      %2349 = vmatprep.mubr.bf16.mxu0 0
      %2350 = vmatmul.mubr.bf16.gmra.mrb[0].mxu0 %v2046
      %v2351 = vpop.f32.mrb[0].mxu0
      %v2352 = vadd.f32 %v1208, %v2351
      %v2353 = vpop.f32.mrb[0].mxu0
      %v2354 = vpop.f32.mrb[0].mxu0
      %v2355 = vadd.f32 %v1212, %v2354
      %v2356 = vpop.f32.mrb[0].mxu0
      %2357 = vmatprep.mubr.bf16.mxu0 0
      %2358 = vmatmul.mubr.bf16.gmra.mrb[0].mxu0 %v2047
      %v2359 = vpop.f32.mrb[0].mxu0
      %v2360 = vadd.f32 %v1218, %v2359
      %v2361 = vpop.f32.mrb[0].mxu0
      %v2362 = vpop.f32.mrb[0].mxu0
      %v2363 = vadd.f32 %v1222, %v2362
      %v2364 = vpop.f32.mrb[0].mxu0
      %2365 = vmatprep.mubr.bf16.mxu0 0
      %2366 = vmatmul.mubr.bf16.gmra.mrb[0].mxu0 %v2048
      %v2367 = vpop.f32.mrb[0].mxu0
      %v2368 = vadd.f32 %v1228, %v2367
      %v2369 = vpop.f32.mrb[0].mxu0
      %v2370 = vpop.f32.mrb[0].mxu0
      %v2371 = vadd.f32 %v1232, %v2370
      %v2372 = vpop.f32.mrb[0].mxu0
      %2373 = vmatprep.mubr.bf16.mxu0 0
      %2374 = vmatmul.mubr.bf16.gmra.mrb[0].mxu0 %v2049
      %v2375 = vpop.f32.mrb[0].mxu0
      %v2376 = vadd.f32 %v1238, %v2375
      %v2377 = vpop.f32.mrb[0].mxu0
      %v2378 = vpop.f32.mrb[0].mxu0
      %v2379 = vadd.f32 %v1242, %v2378
      %v2380 = vpop.f32.mrb[0].mxu0
      %2381 = vmatprep.mubr.bf16.mxu0 0
      %2382 = vmatmul.mubr.bf16.gmra.mrb[0].mxu0 %v2050
      %v2383 = vpop.f32.mrb[0].mxu0
      %v2384 = vadd.f32 %v1248, %v2383
      %v2385 = vpop.f32.mrb[0].mxu0
      %v2386 = vpop.f32.mrb[0].mxu0
      %v2387 = vadd.f32 %v1252, %v2386
      %v2388 = vpop.f32.mrb[0].mxu0
      %2389 = vmatprep.mubr.bf16.mxu0 0
      %2390 = vmatmul.mubr.bf16.gmra.mrb[0].mxu0 %v2051
      %v2391 = vpop.f32.mrb[0].mxu0
      %v2392 = vadd.f32 %v1258, %v2391
      %v2393 = vpop.f32.mrb[0].mxu0
      %v2394 = vpop.f32.mrb[0].mxu0
      %v2395 = vadd.f32 %v1262, %v2394
      %v2396 = vpop.f32.mrb[0].mxu0
      %2397 = vdwg.mxu0
      %v2398 = vmax.f32 %v2336, 0.0
      %v2399 = vmax.f32 %v2339, 0.0
      %v2400 = vmax.f32 %v2344, 0.0
      %v2401 = vmax.f32 %v2347, 0.0
      %v2402 = vmax.f32 %v2352, 0.0
      %v2403 = vmax.f32 %v2355, 0.0
      %v2404 = vmax.f32 %v2360, 0.0
      %v2405 = vmax.f32 %v2363, 0.0
      %v2406 = vmax.f32 %v2368, 0.0
      %v2407 = vmax.f32 %v2371, 0.0
      %v2408 = vmax.f32 %v2376, 0.0
      %v2409 = vmax.f32 %v2379, 0.0
      %v2410 = vmax.f32 %v2384, 0.0
      %v2411 = vmax.f32 %v2387, 0.0
      %v2412 = vmax.f32 %v2392, 0.0
      %v2413 = vmax.f32 %v2395, 0.0
      %v2414 = vpack.c.bf16 %v2399, %v2398
      %v2415 = vpack.c.bf16 %v2401, %v2400
      %v2416 = vpack.c.bf16 %v2403, %v2402
      %v2417 = vpack.c.bf16 %v2405, %v2404
      %v2418 = vpack.c.bf16 %v2407, %v2406
      %v2419 = vpack.c.bf16 %v2409, %v2408
      %v2420 = vpack.c.bf16 %v2411, %v2410
      %v2421 = vpack.c.bf16 %v2413, %v2412
      %v2422 = vld [vmem:[%s8] sm:$0xf]
      %v2423 = vld [vmem:[%s8 + $0x4] sm:$0xf]
      %v2424 = vld [vmem:[%s8 + $0x8] sm:$0xf]
      %v2425 = vld [vmem:[%s8 + $0xc] sm:$0xf]
      %v2426 = vld [vmem:[%s8 + $0x10] sm:$0xf]
      %v2427 = vld [vmem:[%s8 + $0x14] sm:$0xf]
      %v2428 = vld [vmem:[%s8 + $0x18] sm:$0xf]
      %v2429 = vld [vmem:[%s8 + $0x1c] sm:$0xf]
      %v2430 = vld [vmem:[%s8 + $0x20] sm:$0xf]
      %v2431 = vld [vmem:[%s8 + $0x24] sm:$0xf]
      %v2432 = vld [vmem:[%s8 + $0x28] sm:$0xf]
      %v2433 = vld [vmem:[%s8 + $0x2c] sm:$0xf]
      %v2434 = vld [vmem:[%s8 + $0x30] sm:$0xf]
      %v2435 = vld [vmem:[%s8 + $0x34] sm:$0xf]
      %v2436 = vld [vmem:[%s8 + $0x38] sm:$0xf]
      %v2437 = vld [vmem:[%s8 + $0x3c] sm:$0xf]
      %v2438 = vld [vmem:[%s8 + $0x40] sm:$0xf]
      %v2439 = vld [vmem:[%s8 + $0x44] sm:$0xf]
      %v2440 = vld [vmem:[%s8 + $0x48] sm:$0xf]
      %v2441 = vld [vmem:[%s8 + $0x4c] sm:$0xf]
      %v2442 = vld [vmem:[%s8 + $0x50] sm:$0xf]
      %v2443 = vld [vmem:[%s8 + $0x54] sm:$0xf]
      %v2444 = vld [vmem:[%s8 + $0x58] sm:$0xf]
      %v2445 = vld [vmem:[%s8 + $0x5c] sm:$0xf]
      %v2446 = vld [vmem:[%s8 + $0x60] sm:$0xf]
      %v2447 = vld [vmem:[%s8 + $0x64] sm:$0xf]
      %v2448 = vld [vmem:[%s8 + $0x68] sm:$0xf]
      %v2449 = vld [vmem:[%s8 + $0x6c] sm:$0xf]
      %v2450 = vld [vmem:[%s8 + $0x70] sm:$0xf]
      %v2451 = vld [vmem:[%s8 + $0x74] sm:$0xf]
      %v2452 = vld [vmem:[%s8 + $0x78] sm:$0xf]
      %v2453 = vld [vmem:[%s8 + $0x7c] sm:$0xf]
      %v2454 = vld [vmem:[%s9] sm:$0x1]
      %v2456 = vlaneseq
      %v2457 = vshrl.u32 %v2456, 7
      %v2458 = vsub.s32 0, %v2457
      %v2459 = vrot.slane %v2454, %v2458
      %v2493 = vunpack.c.l.b16 %v2422
      %v2494 = vunpack.c.l.b16 %v2423
      %v2495 = vunpack.c.l.b16 %v2424
      %v2496 = vunpack.c.l.b16 %v2425
      %v2497 = vunpack.c.l.b16 %v2426
      %v2498 = vunpack.c.l.b16 %v2427
      %v2499 = vunpack.c.l.b16 %v2428
      %v2500 = vunpack.c.l.b16 %v2429
      %v2501 = vunpack.c.l.b16 %v2430
      %v2502 = vunpack.c.l.b16 %v2431
      %v2503 = vunpack.c.l.b16 %v2432
      %v2504 = vunpack.c.l.b16 %v2433
      %v2505 = vunpack.c.l.b16 %v2434
      %v2506 = vunpack.c.l.b16 %v2435
      %v2507 = vunpack.c.l.b16 %v2436
      %v2508 = vunpack.c.l.b16 %v2437
      %v2509 = vunpack.c.l.b16 %v2438
      %v2510 = vunpack.c.l.b16 %v2439
      %v2511 = vunpack.c.l.b16 %v2440
      %v2512 = vunpack.c.l.b16 %v2441
      %v2513 = vunpack.c.l.b16 %v2442
      %v2514 = vunpack.c.l.b16 %v2443
      %v2515 = vunpack.c.l.b16 %v2444
      %v2516 = vunpack.c.l.b16 %v2445
      %v2517 = vunpack.c.l.b16 %v2446
      %v2518 = vunpack.c.l.b16 %v2447
      %v2519 = vunpack.c.l.b16 %v2448
      %v2520 = vunpack.c.l.b16 %v2449
      %v2521 = vunpack.c.l.b16 %v2450
      %v2522 = vunpack.c.l.b16 %v2451
      %v2523 = vunpack.c.l.b16 %v2452
      %v2524 = vunpack.c.l.b16 %v2453
      %v2525 = vpack.c.b16 %v2494, %v2493
      %v2526 = vpack.c.b16 %v2496, %v2495
      %v2527 = vpack.c.b16 %v2498, %v2497
      %v2528 = vpack.c.b16 %v2500, %v2499
      %v2529 = vpack.c.b16 %v2502, %v2501
      %v2530 = vpack.c.b16 %v2504, %v2503
      %v2531 = vpack.c.b16 %v2506, %v2505
      %v2532 = vpack.c.b16 %v2508, %v2507
      %v2533 = vpack.c.b16 %v2510, %v2509
      %v2534 = vpack.c.b16 %v2512, %v2511
      %v2535 = vpack.c.b16 %v2514, %v2513
      %v2536 = vpack.c.b16 %v2516, %v2515
      %v2537 = vpack.c.b16 %v2518, %v2517
      %v2538 = vpack.c.b16 %v2520, %v2519
      %v2539 = vpack.c.b16 %v2522, %v2521
      %v2540 = vpack.c.b16 %v2524, %v2523
      %2557 = vmatprep.subr.bf16.mxu0 0
      %2558 = vmatpush1.bf16.msra.mxu0 %v2525
      %2559 = vmatprep.subr.bf16.mxu0 0
      %2560 = vmatpush1.bf16.msra.mxu0 %v2526
      %2561 = vmatprep.subr.bf16.mxu0 0
      %2562 = vmatpush1.bf16.msra.mxu0 %v2527
      %2563 = vmatprep.subr.bf16.mxu0 0
      %2564 = vmatpush1.bf16.msra.mxu0 %v2528
      %2565 = vmatprep.subr.bf16.mxu0 0
      %2566 = vmatpush1.bf16.msra.mxu0 %v2529
      %2567 = vmatprep.subr.bf16.mxu0 0
      %2568 = vmatpush1.bf16.msra.mxu0 %v2530
      %2569 = vmatprep.subr.bf16.mxu0 0
      %2570 = vmatpush1.bf16.msra.mxu0 %v2531
      %2571 = vmatprep.subr.bf16.mxu0 0
      %2572 = vmatpush1.bf16.msra.mxu0 %v2532
      %2573 = vmatprep.subr.bf16.mxu0 0
      %2574 = vmatpush1.bf16.msra.mxu0 %v2533
      %2575 = vmatprep.subr.bf16.mxu0 0
      %2576 = vmatpush1.bf16.msra.mxu0 %v2534
      %2577 = vmatprep.subr.bf16.mxu0 0
      %2578 = vmatpush1.bf16.msra.mxu0 %v2535
      %2579 = vmatprep.subr.bf16.mxu0 0
      %2580 = vmatpush1.bf16.msra.mxu0 %v2536
      %2581 = vmatprep.subr.bf16.mxu0 0
      %2582 = vmatpush1.bf16.msra.mxu0 %v2537
      %2583 = vmatprep.subr.bf16.mxu0 0
      %2584 = vmatpush1.bf16.msra.mxu0 %v2538
      %2585 = vmatprep.subr.bf16.mxu0 0
      %2586 = vmatpush1.bf16.msra.mxu0 %v2539
      %2587 = vmatprep.subr.bf16.mxu0 0
      %2588 = vmatpush1.bf16.msra.mxu0 %v2540
      %2589 = vmatprep.mubr.bf16.mxu0 %v2414
      %2590 = vmatmul.mubr.bf16.gmra.mrb[0].mxu0 %v2229
      %v2591 = vpop.f32.mrb[0].mxu0
      %v2592 = vadd.f32 %v2459, %v2591
      %v2593 = vpop.f32.mrb[0].mxu0
      %v2594 = vpop.f32.mrb[0].mxu0
      %v2595 = vadd.f32 %v2459, %v2594
      %v2596 = vpop.f32.mrb[0].mxu0
      %2597 = vmatprep.mubr.bf16.mxu0 %v2415
      %2598 = vmatmul.mubr.bf16.gmra.mrb[0].mxu0 %v2230
      %v2599 = vpop.f32.mrb[0].mxu0
      %v2600 = vadd.f32 %v2459, %v2599
      %v2601 = vpop.f32.mrb[0].mxu0
      %v2602 = vpop.f32.mrb[0].mxu0
      %v2603 = vadd.f32 %v2459, %v2602
      %v2604 = vpop.f32.mrb[0].mxu0
      %2605 = vmatprep.mubr.bf16.mxu0 %v2416
      %2606 = vmatmul.mubr.bf16.gmra.mrb[0].mxu0 %v2231
      %v2607 = vpop.f32.mrb[0].mxu0
      %v2608 = vadd.f32 %v2459, %v2607
      %v2609 = vpop.f32.mrb[0].mxu0
      %v2610 = vpop.f32.mrb[0].mxu0
      %v2611 = vadd.f32 %v2459, %v2610
      %v2612 = vpop.f32.mrb[0].mxu0
      %2613 = vmatprep.mubr.bf16.mxu0 %v2417
      %2614 = vmatmul.mubr.bf16.gmra.mrb[0].mxu0 %v2232
      %v2615 = vpop.f32.mrb[0].mxu0
      %v2616 = vadd.f32 %v2459, %v2615
      %v2617 = vpop.f32.mrb[0].mxu0
      %v2618 = vpop.f32.mrb[0].mxu0
      %v2619 = vadd.f32 %v2459, %v2618
      %v2620 = vpop.f32.mrb[0].mxu0
      %2621 = vmatprep.mubr.bf16.mxu0 %v2418
      %2622 = vmatmul.mubr.bf16.gmra.mrb[0].mxu0 %v2233
      %v2623 = vpop.f32.mrb[0].mxu0
      %v2624 = vadd.f32 %v2459, %v2623
      %v2625 = vpop.f32.mrb[0].mxu0
      %v2626 = vpop.f32.mrb[0].mxu0
      %v2627 = vadd.f32 %v2459, %v2626
      %v2628 = vpop.f32.mrb[0].mxu0
      %2629 = vmatprep.mubr.bf16.mxu0 %v2419
      %2630 = vmatmul.mubr.bf16.gmra.mrb[0].mxu0 %v2234
      %v2631 = vpop.f32.mrb[0].mxu0
      %v2632 = vadd.f32 %v2459, %v2631
      %v2633 = vpop.f32.mrb[0].mxu0
      %v2634 = vpop.f32.mrb[0].mxu0
      %v2635 = vadd.f32 %v2459, %v2634
      %v2636 = vpop.f32.mrb[0].mxu0
      %2637 = vmatprep.mubr.bf16.mxu0 %v2420
      %2638 = vmatmul.mubr.bf16.gmra.mrb[0].mxu0 %v2235
      %v2639 = vpop.f32.mrb[0].mxu0
      %v2640 = vadd.f32 %v2459, %v2639
      %v2641 = vpop.f32.mrb[0].mxu0
      %v2642 = vpop.f32.mrb[0].mxu0
      %v2643 = vadd.f32 %v2459, %v2642
      %v2644 = vpop.f32.mrb[0].mxu0
      %2645 = vmatprep.mubr.bf16.mxu0 %v2421
      %2646 = vmatmul.mubr.bf16.gmra.mrb[0].mxu0 %v2236
      %v2647 = vpop.f32.mrb[0].mxu0
      %v2648 = vadd.f32 %v2459, %v2647
      %v2649 = vpop.f32.mrb[0].mxu0
      %v2650 = vpop.f32.mrb[0].mxu0
      %v2651 = vadd.f32 %v2459, %v2650
      %v2652 = vpop.f32.mrb[0].mxu0
      %2653 = vdwg.mxu0
      %2654 = vst [vmem:[%s361] sm:$0xff] %v2592
      %2655 = vst [vmem:[%s361 + $0x8] sm:$0xff] %v2595
      %2656 = vst [vmem:[%s361 + $0x10] sm:$0xff] %v2600
      %2657 = vst [vmem:[%s361 + $0x18] sm:$0xff] %v2603
      %2658 = vst [vmem:[%s361 + $0x20] sm:$0xff] %v2608
      %2659 = vst [vmem:[%s361 + $0x28] sm:$0xff] %v2611
      %2660 = vst [vmem:[%s361 + $0x30] sm:$0xff] %v2616
      %2661 = vst [vmem:[%s361 + $0x38] sm:$0xff] %v2619
      %2662 = vst [vmem:[%s361 + $0x40] sm:$0xff] %v2624
      %2663 = vst [vmem:[%s361 + $0x48] sm:$0xff] %v2627
      %2664 = vst [vmem:[%s361 + $0x50] sm:$0xff] %v2632
      %2665 = vst [vmem:[%s361 + $0x58] sm:$0xff] %v2635
      %2666 = vst [vmem:[%s361 + $0x60] sm:$0xff] %v2640
      %2667 = vst [vmem:[%s361 + $0x68] sm:$0xff] %v2643
      %2668 = vst [vmem:[%s361 + $0x70] sm:$0xff] %v2648
      %2669 = vst [vmem:[%s361 + $0x78] sm:$0xff] %v2651
      %s2670 = smul.u32 16, %s21
      %p2671 = scmp.lt.s32.totalorder %s2670, 31
      %s2672 = scalar_select %p2671, %s2670, 31
      %s2673 = smul.addr %s2672, 8
      %s2674 = scalar_lea.vmem %s10, %s2673
      // Predicated region
      $region61: #{d2rl_forward.1} parent=59 // pred_check
        %p2675 = pneg %p254
      $region62: #{d2rl_forward.1} parent=59 // pred_check_branch
        %2677 = sbr.rel (%p2675) target = $region64
      $region63: #{d2rl_forward.1} parent=59 // pred_region
        %s2678 = smul.u32 16, %s21
      $region64: #{d2rl_forward.1} parent=59 // pred_fallthru
        _
    $region60: #{d2rl_forward.1} parent=5 // pred_fallthru
      _
    %p2679 = scmp.le.s32.totalorder 2, %s16
    // Predicated region
    $region65: #{d2rl_forward.1} parent=5 // pred_check
      %p2680 = pneg %p2679
    $region66: #{d2rl_forward.1} parent=5 // pred_check_branch
      %2682 = sbr.rel (%p2680) target = $region68
    $region67: #{d2rl_forward.1} parent=5 // pred_region
      %s2683 = ssub.s32 %s16, 2
      // Predicated region
      $region69: #{d2rl_forward.1} parent=67 // pred_check
        %p2684 = pneg %p260
      $region70: #{d2rl_forward.1} parent=67 // pred_check_branch
        %2686 = sbr.rel (%p2684) target = $region72
      $region71: #{d2rl_forward.1} parent=67 // pred_region
        %s2687 = smul.u32 16, %s22
        %p2688 = scmp.lt.s32.totalorder %s2687, 31
        %s2689 = scalar_select %p2688, %s2687, 31
        %s2690 = smul.addr %s2689, 8
        %s2691 = scalar_lea.vmem %s10, %s2690
      $region72: #{d2rl_forward.1} parent=67 // pred_fallthru
        _
    $region68: #{d2rl_forward.1} parent=5 // pred_fallthru
      _
  $region6: #{d2rl_forward.1} parent=0 // loop_footer
    %s20 = sadd.s32 1, %s16
  $region7: #{d2rl_forward.1} parent=0 // loop_footer_branch
    %15 = sbr.rel target = $region3
  $region8: #{d2rl_forward.1} parent=0 // loop_exit
    _

// kernel: d2rl_forward.1
$region0: #{d2rl_forward.1}
  #allocation0 [shape = 'u32[]', space=smem, size = 0x4, offset = 0x4, fixed_abs, tag = 'smem constant byte address 0x4 - core index']
  #allocation1 [shape = 'u32[144,128]{1,0:T(1,128)}', space=vmem, size = 0x12000, scoped, tag = 'internal scratch']
  %s0 = inlined_call_operand.vmem [shape: bf16[256,128], index: 0, kind: input, shape index: {}]
  %s1 = inlined_call_operand.vmem [shape: bf16[128,1024], index: 1, kind: input, shape index: {}]
  %s2 = inlined_call_operand.vmem [shape: bf16[128,128], index: 2, kind: input, shape index: {}]
  %s3 = inlined_call_operand.vmem [shape: bf16[128,128], index: 3, kind: input, shape index: {}]
  %s4 = inlined_call_operand.vmem [shape: bf16[128,128], index: 4, kind: input, shape index: {}]
  %s5 = inlined_call_operand.vmem [shape: bf16[128,128], index: 5, kind: input, shape index: {}]
  %s6 = inlined_call_operand.vmem [shape: bf16[128,128], index: 6, kind: input, shape index: {}]
  %s7 = inlined_call_operand.vmem [shape: bf16[128,128], index: 7, kind: input, shape index: {}]
  %s8 = inlined_call_operand.vmem [shape: bf16[256,128], index: 8, kind: input, shape index: {}]
  %s9 = inlined_call_operand.vmem [shape: f32[1,128], index: 9, kind: input, shape index: {}]
  %s10 = inlined_call_operand.vmem [shape: f32[256,128], index: 10, kind: output, shape index: {}]
  %s11 = sld [smem:[#allocation0]]
  $region73: #{d2rl_forward.1} parent=0
    _
  %s13 = ssub.s32 1, %s11
  %s14 = scalar_select 0, %s13, %s11
  loop: start=0, step=1, limit=4
  $region2: #{d2rl_forward.1} parent=0 // loop_pre_header
    _
  $region3: #{d2rl_forward.1} parent=0 // loop_header
    %s16 = sphi 0, %s20
    %p17 = scmp.ge.s32.totalorder %s16, 4
    %s26 = sphi 0, %s28
    %s29 = sphi 0, %s26
    %s30 = sphi 0, %s29
    %s46 = sphi 0, %s30
    %s50 = sphi 0, %s50
    %s52 = sphi 0, %s50
    %s53 = sphi 0, %s52
    %s67 = sphi 0, %s53
    %s71 = sphi 0, %s71
    %s73 = sphi 0, %s71
    %s74 = sphi 0, %s73
    %s88 = sphi 0, %s74
    %s92 = sphi 0, %s92
    %s94 = sphi 0, %s92
    %s95 = sphi 0, %s94
    %s109 = sphi 0, %s95
    %s113 = sphi 0, %s113
    %s115 = sphi 0, %s113
    %s116 = sphi 0, %s115
    %s130 = sphi 0, %s116
    %s134 = sphi 0, %s134
    %s136 = sphi 0, %s134
    %s137 = sphi 0, %s136
    %s151 = sphi 0, %s137
    %s155 = sphi 0, %s155
    %s157 = sphi 0, %s155
    %s158 = sphi 0, %s157
    %s172 = sphi 0, %s158
    %s176 = sphi 0, %s176
    %s178 = sphi 0, %s176
    %s179 = sphi 0, %s178
    %s193 = sphi 0, %s179
    %s197 = sphi 0, %s197
    %s199 = sphi 0, %s197
    %s200 = sphi 0, %s199
    %s214 = sphi 0, %s200
    %s218 = sphi 0, %s218
    %s220 = sphi 0, %s218
    %s221 = sphi 0, %s220
    %s235 = sphi 0, %s221
    %s241 = sphi 0, %s243
    %s244 = sphi 0, %s241
    %s245 = sphi 0, %s244
    %s261 = sphi 0, %s245
  $region4: #{d2rl_forward.1} parent=0 // loop_header_branch
    %19 = sbr.rel (%p17) target = $region8
  $region5: #{d2rl_forward.1} parent=0 // loop_body
    %s21 = ssub.s32 %s16, 1
    %s22 = ssub.s32 %s16, 2
    %s23 = sadd.s32 %s16, 1
    %s24 = ssub.s32 %s16, %s23
    %p25 = scmp.eq.s32.totalorder %s24, 0
    %s27 = sadd.s32 %s26, 1
    %s28 = scalar_select %p25, %s26, %s27
    %p31 = pneg %p25
    %p32 = scmp.eq.s32.totalorder %s16, 1
    %p33 = por %p31, %p32
    %p34 = scmp.ne.s32.totalorder %s26, %s29
    %p35 = scmp.eq.s32.totalorder %s16, 0
    %p36 = por %p34, %p35
    %p37 = scmp.ne.s32.totalorder %s26, %s29
    %p38 = scmp.eq.s32.totalorder %s21, 1
    %p39 = por %p37, %p38
    %p40 = scmp.ne.s32.totalorder %s29, %s30
    %p41 = scmp.eq.s32.totalorder %s21, 0
    %p42 = por %p40, %p41
    %p43 = scmp.ne.s32.totalorder %s29, %s30
    %p44 = scmp.eq.s32.totalorder %s22, 1
    %p45 = por %p43, %p44
    %p47 = scmp.ne.s32.totalorder %s30, %s46
    %p48 = scmp.eq.s32.totalorder %s22, 0
    %p49 = por %p47, %p48
    %s51 = sadd.s32 %s50, 1
    %p54 = scmp.eq.s32.totalorder %s16, 1
    %p55 = scmp.ne.s32.totalorder %s50, %s52
    %p56 = scmp.eq.s32.totalorder %s16, 0
    %p57 = por %p55, %p56
    %p58 = scmp.ne.s32.totalorder %s50, %s52
    %p59 = scmp.eq.s32.totalorder %s21, 1
    %p60 = por %p58, %p59
    %p61 = scmp.ne.s32.totalorder %s52, %s53
    %p62 = scmp.eq.s32.totalorder %s21, 0
    %p63 = por %p61, %p62
    %p64 = scmp.ne.s32.totalorder %s52, %s53
    %p65 = scmp.eq.s32.totalorder %s22, 1
    %p66 = por %p64, %p65
    %p68 = scmp.ne.s32.totalorder %s53, %s67
    %p69 = scmp.eq.s32.totalorder %s22, 0
    %p70 = por %p68, %p69
    %s72 = sadd.s32 %s71, 1
    %p75 = scmp.eq.s32.totalorder %s16, 1
    %p76 = scmp.ne.s32.totalorder %s71, %s73
    %p77 = scmp.eq.s32.totalorder %s16, 0
    %p78 = por %p76, %p77
    %p79 = scmp.ne.s32.totalorder %s71, %s73
    %p80 = scmp.eq.s32.totalorder %s21, 1
    %p81 = por %p79, %p80
    %p82 = scmp.ne.s32.totalorder %s73, %s74
    %p83 = scmp.eq.s32.totalorder %s21, 0
    %p84 = por %p82, %p83
    %p85 = scmp.ne.s32.totalorder %s73, %s74
    %p86 = scmp.eq.s32.totalorder %s22, 1
    %p87 = por %p85, %p86
    %p89 = scmp.ne.s32.totalorder %s74, %s88
    %p90 = scmp.eq.s32.totalorder %s22, 0
    %p91 = por %p89, %p90
    %s93 = sadd.s32 %s92, 1
    %p96 = scmp.eq.s32.totalorder %s16, 1
    %p97 = scmp.ne.s32.totalorder %s92, %s94
    %p98 = scmp.eq.s32.totalorder %s16, 0
    %p99 = por %p97, %p98
    %p100 = scmp.ne.s32.totalorder %s92, %s94
    %p101 = scmp.eq.s32.totalorder %s21, 1
    %p102 = por %p100, %p101
    %p103 = scmp.ne.s32.totalorder %s94, %s95
    %p104 = scmp.eq.s32.totalorder %s21, 0
    %p105 = por %p103, %p104
    %p106 = scmp.ne.s32.totalorder %s94, %s95
    %p107 = scmp.eq.s32.totalorder %s22, 1
    %p108 = por %p106, %p107
    %p110 = scmp.ne.s32.totalorder %s95, %s109
    %p111 = scmp.eq.s32.totalorder %s22, 0
    %p112 = por %p110, %p111
    %s114 = sadd.s32 %s113, 1
    %p117 = scmp.eq.s32.totalorder %s16, 1
    %p118 = scmp.ne.s32.totalorder %s113, %s115
    %p119 = scmp.eq.s32.totalorder %s16, 0
    %p120 = por %p118, %p119
    %p121 = scmp.ne.s32.totalorder %s113, %s115
    %p122 = scmp.eq.s32.totalorder %s21, 1
    %p123 = por %p121, %p122
    %p124 = scmp.ne.s32.totalorder %s115, %s116
    %p125 = scmp.eq.s32.totalorder %s21, 0
    %p126 = por %p124, %p125
    %p127 = scmp.ne.s32.totalorder %s115, %s116
    %p128 = scmp.eq.s32.totalorder %s22, 1
    %p129 = por %p127, %p128
    %p131 = scmp.ne.s32.totalorder %s116, %s130
    %p132 = scmp.eq.s32.totalorder %s22, 0
    %p133 = por %p131, %p132
    %s135 = sadd.s32 %s134, 1
    %p138 = scmp.eq.s32.totalorder %s16, 1
    %p139 = scmp.ne.s32.totalorder %s134, %s136
    %p140 = scmp.eq.s32.totalorder %s16, 0
    %p141 = por %p139, %p140
    %p142 = scmp.ne.s32.totalorder %s134, %s136
    %p143 = scmp.eq.s32.totalorder %s21, 1
    %p144 = por %p142, %p143
    %p145 = scmp.ne.s32.totalorder %s136, %s137
    %p146 = scmp.eq.s32.totalorder %s21, 0
    %p147 = por %p145, %p146
    %p148 = scmp.ne.s32.totalorder %s136, %s137
    %p149 = scmp.eq.s32.totalorder %s22, 1
    %p150 = por %p148, %p149
    %p152 = scmp.ne.s32.totalorder %s137, %s151
    %p153 = scmp.eq.s32.totalorder %s22, 0
    %p154 = por %p152, %p153
    %s156 = sadd.s32 %s155, 1
    %p159 = scmp.eq.s32.totalorder %s16, 1
    %p160 = scmp.ne.s32.totalorder %s155, %s157
    %p161 = scmp.eq.s32.totalorder %s16, 0
    %p162 = por %p160, %p161
    %p163 = scmp.ne.s32.totalorder %s155, %s157
    %p164 = scmp.eq.s32.totalorder %s21, 1
    %p165 = por %p163, %p164
    %p166 = scmp.ne.s32.totalorder %s157, %s158
    %p167 = scmp.eq.s32.totalorder %s21, 0
    %p168 = por %p166, %p167
    %p169 = scmp.ne.s32.totalorder %s157, %s158
    %p170 = scmp.eq.s32.totalorder %s22, 1
    %p171 = por %p169, %p170
    %p173 = scmp.ne.s32.totalorder %s158, %s172
    %p174 = scmp.eq.s32.totalorder %s22, 0
    %p175 = por %p173, %p174
    %s177 = sadd.s32 %s176, 1
    %p180 = scmp.eq.s32.totalorder %s16, 1
    %p181 = scmp.ne.s32.totalorder %s176, %s178
    %p182 = scmp.eq.s32.totalorder %s16, 0
    %p183 = por %p181, %p182
    %p184 = scmp.ne.s32.totalorder %s176, %s178
    %p185 = scmp.eq.s32.totalorder %s21, 1
    %p186 = por %p184, %p185
    %p187 = scmp.ne.s32.totalorder %s178, %s179
    %p188 = scmp.eq.s32.totalorder %s21, 0
    %p189 = por %p187, %p188
    %p190 = scmp.ne.s32.totalorder %s178, %s179
    %p191 = scmp.eq.s32.totalorder %s22, 1
    %p192 = por %p190, %p191
    %p194 = scmp.ne.s32.totalorder %s179, %s193
    %p195 = scmp.eq.s32.totalorder %s22, 0
    %p196 = por %p194, %p195
    %s198 = sadd.s32 %s197, 1
    %p201 = scmp.eq.s32.totalorder %s16, 1
    %p202 = scmp.ne.s32.totalorder %s197, %s199
    %p203 = scmp.eq.s32.totalorder %s16, 0
    %p204 = por %p202, %p203
    %p205 = scmp.ne.s32.totalorder %s197, %s199
    %p206 = scmp.eq.s32.totalorder %s21, 1
    %p207 = por %p205, %p206
    %p208 = scmp.ne.s32.totalorder %s199, %s200
    %p209 = scmp.eq.s32.totalorder %s21, 0
    %p210 = por %p208, %p209
    %p211 = scmp.ne.s32.totalorder %s199, %s200
    %p212 = scmp.eq.s32.totalorder %s22, 1
    %p213 = por %p211, %p212
    %p215 = scmp.ne.s32.totalorder %s200, %s214
    %p216 = scmp.eq.s32.totalorder %s22, 0
    %p217 = por %p215, %p216
    %s219 = sadd.s32 %s218, 1
    %p222 = scmp.eq.s32.totalorder %s16, 1
    %p223 = scmp.ne.s32.totalorder %s218, %s220
    %p224 = scmp.eq.s32.totalorder %s16, 0
    %p225 = por %p223, %p224
    %p226 = scmp.ne.s32.totalorder %s218, %s220
    %p227 = scmp.eq.s32.totalorder %s21, 1
    %p228 = por %p226, %p227
    %p229 = scmp.ne.s32.totalorder %s220, %s221
    %p230 = scmp.eq.s32.totalorder %s21, 0
    %p231 = por %p229, %p230
    %p232 = scmp.ne.s32.totalorder %s220, %s221
    %p233 = scmp.eq.s32.totalorder %s22, 1
    %p234 = por %p232, %p233
    %p236 = scmp.ne.s32.totalorder %s221, %s235
    %p237 = scmp.eq.s32.totalorder %s22, 0
    %p238 = por %p236, %p237
    %s239 = ssub.s32 %s16, %s23
    %p240 = scmp.eq.s32.totalorder %s239, 0
    %s242 = sadd.s32 %s241, 1
    %s243 = scalar_select %p240, %s241, %s242
    %p246 = pneg %p240
    %p247 = scmp.eq.s32.totalorder %s16, 1
    %p248 = por %p246, %p247
    %p249 = scmp.ne.s32.totalorder %s241, %s244
    %p250 = scmp.eq.s32.totalorder %s16, 0
    %p251 = por %p249, %p250
    %p252 = scmp.ne.s32.totalorder %s241, %s244
    %p253 = scmp.eq.s32.totalorder %s21, 1
    %p254 = por %p252, %p253
    %p255 = scmp.ne.s32.totalorder %s244, %s245
    %p256 = scmp.eq.s32.totalorder %s21, 0
    %p257 = por %p255, %p256
    %p258 = scmp.ne.s32.totalorder %s244, %s245
    %p259 = scmp.eq.s32.totalorder %s22, 1
    %p260 = por %p258, %p259
    %p262 = scmp.ne.s32.totalorder %s245, %s261
    %p263 = scmp.eq.s32.totalorder %s22, 0
    %p264 = por %p262, %p263
    %p265 = scmp.le.s32.totalorder 1, %s16
    %p266 = scmp.lt.s32.totalorder %s16, 3
    %p267 = pnand %p265, %p266
    %p268 = pneg %p267
    // Predicated region
    $region9: #{d2rl_forward.1} parent=5 // pred_check
      _
    $region10: #{d2rl_forward.1} parent=5 // pred_check_branch
      %270 = sbr.rel (%p267) target = $region12
    $region11: #{d2rl_forward.1} parent=5 // pred_region
      %s271 = ssub.s32 %s16, 1
      // Predicated region
      $region13: #{d2rl_forward.1} parent=11 // pred_check
        %p272 = pneg %p63
      $region14: #{d2rl_forward.1} parent=11 // pred_check_branch
        %274 = sbr.rel (%p272) target = $region16
      $region15: #{d2rl_forward.1} parent=11 // pred_region
        _
      $region16: #{d2rl_forward.1} parent=11 // pred_fallthru
        _
      // Predicated region
      $region17: #{d2rl_forward.1} parent=11 // pred_check
        %p275 = pneg %p84
      $region18: #{d2rl_forward.1} parent=11 // pred_check_branch
        %277 = sbr.rel (%p275) target = $region20
      $region19: #{d2rl_forward.1} parent=11 // pred_region
        _
      $region20: #{d2rl_forward.1} parent=11 // pred_fallthru
        _
      // Predicated region
      $region21: #{d2rl_forward.1} parent=11 // pred_check
        %p278 = pneg %p105
      $region22: #{d2rl_forward.1} parent=11 // pred_check_branch
        %280 = sbr.rel (%p278) target = $region24
      $region23: #{d2rl_forward.1} parent=11 // pred_region
        _
      $region24: #{d2rl_forward.1} parent=11 // pred_fallthru
        _
      // Predicated region
      $region25: #{d2rl_forward.1} parent=11 // pred_check
        %p281 = pneg %p126
      $region26: #{d2rl_forward.1} parent=11 // pred_check_branch
        %283 = sbr.rel (%p281) target = $region28
      $region27: #{d2rl_forward.1} parent=11 // pred_region
        _
      $region28: #{d2rl_forward.1} parent=11 // pred_fallthru
        _
      // Predicated region
      $region29: #{d2rl_forward.1} parent=11 // pred_check
        %p284 = pneg %p147
      $region30: #{d2rl_forward.1} parent=11 // pred_check_branch
        %286 = sbr.rel (%p284) target = $region32
      $region31: #{d2rl_forward.1} parent=11 // pred_region
        _
      $region32: #{d2rl_forward.1} parent=11 // pred_fallthru
        _
      // Predicated region
      $region33: #{d2rl_forward.1} parent=11 // pred_check
        %p287 = pneg %p168
      $region34: #{d2rl_forward.1} parent=11 // pred_check_branch
        %289 = sbr.rel (%p287) target = $region36
      $region35: #{d2rl_forward.1} parent=11 // pred_region
        _
      $region36: #{d2rl_forward.1} parent=11 // pred_fallthru
        _
      // Predicated region
      $region37: #{d2rl_forward.1} parent=11 // pred_check
        %p290 = pneg %p189
      $region38: #{d2rl_forward.1} parent=11 // pred_check_branch
        %292 = sbr.rel (%p290) target = $region40
      $region39: #{d2rl_forward.1} parent=11 // pred_region
        _
      $region40: #{d2rl_forward.1} parent=11 // pred_fallthru
        _
      // Predicated region
      $region41: #{d2rl_forward.1} parent=11 // pred_check
        %p293 = pneg %p210
      $region42: #{d2rl_forward.1} parent=11 // pred_check_branch
        %295 = sbr.rel (%p293) target = $region44
      $region43: #{d2rl_forward.1} parent=11 // pred_region
        _
      $region44: #{d2rl_forward.1} parent=11 // pred_fallthru
        _
      // Predicated region
      $region45: #{d2rl_forward.1} parent=11 // pred_check
        %p296 = pneg %p231
      $region46: #{d2rl_forward.1} parent=11 // pred_check_branch
        %298 = sbr.rel (%p296) target = $region48
      $region47: #{d2rl_forward.1} parent=11 // pred_region
        _
      $region48: #{d2rl_forward.1} parent=11 // pred_fallthru
        _
    $region12: #{d2rl_forward.1} parent=5 // pred_fallthru
      _
    %p299 = scmp.lt.s32.totalorder %s16, 2
    // Predicated region
    $region49: #{d2rl_forward.1} parent=5 // pred_check
      %p300 = pneg %p299
    $region50: #{d2rl_forward.1} parent=5 // pred_check_branch
      %302 = sbr.rel (%p300) target = $region52
    $region51: #{d2rl_forward.1} parent=5 // pred_region
      // Predicated region
      $region53: #{d2rl_forward.1} parent=51 // pred_check
        %p303 = pneg %p36
      $region54: #{d2rl_forward.1} parent=51 // pred_check_branch
        %305 = sbr.rel (%p303) target = $region56
      $region55: #{d2rl_forward.1} parent=51 // pred_region
        %s306 = smul.u32 16, %s16
        %p307 = scmp.lt.s32.totalorder %s306, 31
        %s308 = scalar_select %p307, %s306, 31
        %s309 = smul.addr %s308, 4
        %s310 = scalar_lea.vmem %s0, %s309
        %s311 = smul.u32 16, %s16
      $region56: #{d2rl_forward.1} parent=51 // pred_fallthru
        _
    $region52: #{d2rl_forward.1} parent=5 // pred_fallthru
      _
    %p312 = scmp.le.s32.totalorder 1, %s16
    %p313 = scmp.lt.s32.totalorder %s16, 3
    %p314 = pnand %p312, %p313
    %p315 = pneg %p314
    // Predicated region
    $region57: #{d2rl_forward.1} parent=5 // pred_check
      _
    $region58: #{d2rl_forward.1} parent=5 // pred_check_branch
      %317 = sbr.rel (%p314) target = $region60
    $region59: #{d2rl_forward.1} parent=5 // pred_region
      %s318 = ssub.s32 %s16, 1
      %s319 = smul.u32 16, %s21
      %p320 = scmp.lt.s32.totalorder %s319, 31
      %s321 = scalar_select %p320, %s319, 31
      %s322 = smul.addr %s321, 4
      %s323 = scalar_lea.vmem %s0, %s322
      %p324 = pneg %p42
      %p325 = pneg %p39
      %p326 = pneg %p63
      %p327 = pneg %p60
      %p328 = pneg %p84
      %p329 = pneg %p81
      %p330 = pneg %p105
      %p331 = pneg %p102
      %p332 = pneg %p126
      %p333 = pneg %p123
      %p334 = pneg %p147
      %p335 = pneg %p144
      %p336 = pneg %p168
      %p337 = pneg %p165
      %p338 = pneg %p189
      %p339 = pneg %p186
      %p340 = pneg %p210
      %p341 = pneg %p207
      %p342 = pneg %p231
      %p343 = pneg %p228
      %p344 = pneg %p257
      %p345 = pneg %p254
      %s346 = smul.u32 16, %s21
      %p347 = scmp.lt.s32.totalorder %s346, 31
      %s348 = scalar_select %p347, %s346, 31
      %s349 = smul.addr %s348, 8
      %s350 = scalar_lea.vmem %s10, %s349
      %s351 = smul.u32 16, %s21
      %p352 = scmp.lt.s32.totalorder %s351, 31
      %s353 = scalar_select %p352, %s351, 31
      %s354 = smul.addr %s353, 4
      %s355 = scalar_lea.vmem %s0, %s354
      %s356 = smul.u32 16, %s21
      %s357 = smul.u32 16, %s21
      %p358 = scmp.lt.s32.totalorder %s357, 31
      %s359 = scalar_select %p358, %s357, 31
      %s360 = smul.addr %s359, 8
      %s361 = scalar_lea.vmem %s10, %s360
      %s362 = smul.u32 16, %s21
      %v364 = vld [vmem:[%s355] sm:$0xf]
      %v365 = vld [vmem:[%s355 + $0x4] sm:$0xf]
      %v366 = vld [vmem:[%s355 + $0x8] sm:$0xf]
      %v367 = vld [vmem:[%s355 + $0xc] sm:$0xf]
      %v368 = vld [vmem:[%s355 + $0x10] sm:$0xf]
      %v369 = vld [vmem:[%s355 + $0x14] sm:$0xf]
      %v370 = vld [vmem:[%s355 + $0x18] sm:$0xf]
      %v371 = vld [vmem:[%s355 + $0x1c] sm:$0xf]
      %v372 = vld [vmem:[%s355 + $0x20] sm:$0xf]
      %v373 = vld [vmem:[%s355 + $0x24] sm:$0xf]
      %v374 = vld [vmem:[%s355 + $0x28] sm:$0xf]
      %v375 = vld [vmem:[%s355 + $0x2c] sm:$0xf]
      %v376 = vld [vmem:[%s355 + $0x30] sm:$0xf]
      %v377 = vld [vmem:[%s355 + $0x34] sm:$0xf]
      %v378 = vld [vmem:[%s355 + $0x38] sm:$0xf]
      %v379 = vld [vmem:[%s355 + $0x3c] sm:$0xf]
      %v380 = vld [vmem:[%s1] sm:$0xff]
      %v381 = vld [vmem:[%s1 + $0x8] sm:$0xff]
      %v382 = vld [vmem:[%s1 + $0x10] sm:$0xff]
      %v383 = vld [vmem:[%s1 + $0x18] sm:$0xff]
      %v384 = vld [vmem:[%s1 + $0x20] sm:$0xff]
      %v385 = vld [vmem:[%s1 + $0x28] sm:$0xff]
      %v386 = vld [vmem:[%s1 + $0x30] sm:$0xff]
      %v387 = vld [vmem:[%s1 + $0x38] sm:$0xff]
      %v388 = vld [vmem:[%s1 + $0x40] sm:$0xff]
      %v389 = vld [vmem:[%s1 + $0x48] sm:$0xff]
      %v390 = vld [vmem:[%s1 + $0x50] sm:$0xff]
      %v391 = vld [vmem:[%s1 + $0x58] sm:$0xff]
      %v392 = vld [vmem:[%s1 + $0x60] sm:$0xff]
      %v393 = vld [vmem:[%s1 + $0x68] sm:$0xff]
      %v394 = vld [vmem:[%s1 + $0x70] sm:$0xff]
      %v395 = vld [vmem:[%s1 + $0x78] sm:$0xff]
      %v396 = vld [vmem:[%s1 + $0x80] sm:$0xff]
      %v397 = vld [vmem:[%s1 + $0x88] sm:$0xff]
      %v398 = vld [vmem:[%s1 + $0x90] sm:$0xff]
      %v399 = vld [vmem:[%s1 + $0x98] sm:$0xff]
      %v400 = vld [vmem:[%s1 + $0xa0] sm:$0xff]
      %v401 = vld [vmem:[%s1 + $0xa8] sm:$0xff]
      %v402 = vld [vmem:[%s1 + $0xb0] sm:$0xff]
      %v403 = vld [vmem:[%s1 + $0xb8] sm:$0xff]
      %v404 = vld [vmem:[%s1 + $0xc0] sm:$0xff]
      %v405 = vld [vmem:[%s1 + $0xc8] sm:$0xff]
      %v406 = vld [vmem:[%s1 + $0xd0] sm:$0xff]
      %v407 = vld [vmem:[%s1 + $0xd8] sm:$0xff]
      %v408 = vld [vmem:[%s1 + $0xe0] sm:$0xff]
      %v409 = vld [vmem:[%s1 + $0xe8] sm:$0xff]
      %v410 = vld [vmem:[%s1 + $0xf0] sm:$0xff]
      %v411 = vld [vmem:[%s1 + $0xf8] sm:$0xff]
      %v412 = vld [vmem:[%s1 + $0x100] sm:$0xff]
      %v413 = vld [vmem:[%s1 + $0x108] sm:$0xff]
      %v414 = vld [vmem:[%s1 + $0x110] sm:$0xff]
      %v415 = vld [vmem:[%s1 + $0x118] sm:$0xff]
      %v416 = vld [vmem:[%s1 + $0x120] sm:$0xff]
      %v417 = vld [vmem:[%s1 + $0x128] sm:$0xff]
      %v418 = vld [vmem:[%s1 + $0x130] sm:$0xff]
      %v419 = vld [vmem:[%s1 + $0x138] sm:$0xff]
      %v420 = vld [vmem:[%s1 + $0x140] sm:$0xff]
      %v421 = vld [vmem:[%s1 + $0x148] sm:$0xff]
      %v422 = vld [vmem:[%s1 + $0x150] sm:$0xff]
      %v423 = vld [vmem:[%s1 + $0x158] sm:$0xff]
      %v424 = vld [vmem:[%s1 + $0x160] sm:$0xff]
      %v425 = vld [vmem:[%s1 + $0x168] sm:$0xff]
      %v426 = vld [vmem:[%s1 + $0x170] sm:$0xff]
      %v427 = vld [vmem:[%s1 + $0x178] sm:$0xff]
      %v428 = vld [vmem:[%s1 + $0x180] sm:$0xff]
      %v429 = vld [vmem:[%s1 + $0x188] sm:$0xff]
      %v430 = vld [vmem:[%s1 + $0x190] sm:$0xff]
      %v431 = vld [vmem:[%s1 + $0x198] sm:$0xff]
      %v432 = vld [vmem:[%s1 + $0x1a0] sm:$0xff]
      %v433 = vld [vmem:[%s1 + $0x1a8] sm:$0xff]
      %v434 = vld [vmem:[%s1 + $0x1b0] sm:$0xff]
      %v435 = vld [vmem:[%s1 + $0x1b8] sm:$0xff]
      %v436 = vld [vmem:[%s1 + $0x1c0] sm:$0xff]
      %v437 = vld [vmem:[%s1 + $0x1c8] sm:$0xff]
      %v438 = vld [vmem:[%s1 + $0x1d0] sm:$0xff]
      %v439 = vld [vmem:[%s1 + $0x1d8] sm:$0xff]
      %v440 = vld [vmem:[%s1 + $0x1e0] sm:$0xff]
      %v441 = vld [vmem:[%s1 + $0x1e8] sm:$0xff]
      %v442 = vld [vmem:[%s1 + $0x1f0] sm:$0xff]
      %v443 = vld [vmem:[%s1 + $0x1f8] sm:$0xff]
      %v460 = vunpack.c.l.b16 %v364
      %v461 = vunpack.c.l.b16 %v365
      %v462 = vunpack.c.l.b16 %v366
      %v463 = vunpack.c.l.b16 %v367
      %v464 = vunpack.c.l.b16 %v368
      %v465 = vunpack.c.l.b16 %v369
      %v466 = vunpack.c.l.b16 %v370
      %v467 = vunpack.c.l.b16 %v371
      %v468 = vunpack.c.l.b16 %v372
      %v469 = vunpack.c.l.b16 %v373
      %v470 = vunpack.c.l.b16 %v374
      %v471 = vunpack.c.l.b16 %v375
      %v472 = vunpack.c.l.b16 %v376
      %v473 = vunpack.c.l.b16 %v377
      %v474 = vunpack.c.l.b16 %v378
      %v475 = vunpack.c.l.b16 %v379
      %v476 = vpack.c.b16 %v461, %v460
      %v477 = vpack.c.b16 %v463, %v462
      %v478 = vpack.c.b16 %v465, %v464
      %v479 = vpack.c.b16 %v467, %v466
      %v480 = vpack.c.b16 %v469, %v468
      %v481 = vpack.c.b16 %v471, %v470
      %v482 = vpack.c.b16 %v473, %v472
      %v483 = vpack.c.b16 %v475, %v474
      %v556 = vunpack.c.l.b16 %v380
      %v557 = vunpack.c.h.b16 %v380
      %v558 = vunpack.c.l.b16 %v381
      %v559 = vunpack.c.h.b16 %v381
      %v560 = vunpack.c.l.b16 %v382
      %v561 = vunpack.c.h.b16 %v382
      %v562 = vunpack.c.l.b16 %v383
      %v563 = vunpack.c.h.b16 %v383
      %v564 = vunpack.c.l.b16 %v384
      %v565 = vunpack.c.h.b16 %v384
      %v566 = vunpack.c.l.b16 %v385
      %v567 = vunpack.c.h.b16 %v385
      %v568 = vunpack.c.l.b16 %v386
      %v569 = vunpack.c.h.b16 %v386
      %v570 = vunpack.c.l.b16 %v387
      %v571 = vunpack.c.h.b16 %v387
      %v572 = vunpack.c.l.b16 %v388
      %v573 = vunpack.c.h.b16 %v388
      %v574 = vunpack.c.l.b16 %v389
      %v575 = vunpack.c.h.b16 %v389
      %v576 = vunpack.c.l.b16 %v390
      %v577 = vunpack.c.h.b16 %v390
      %v578 = vunpack.c.l.b16 %v391
      %v579 = vunpack.c.h.b16 %v391
      %v580 = vunpack.c.l.b16 %v392
      %v581 = vunpack.c.h.b16 %v392
      %v582 = vunpack.c.l.b16 %v393
      %v583 = vunpack.c.h.b16 %v393
      %v584 = vunpack.c.l.b16 %v394
      %v585 = vunpack.c.h.b16 %v394
      %v586 = vunpack.c.l.b16 %v395
      %v587 = vunpack.c.h.b16 %v395
      %v588 = vunpack.c.l.b16 %v396
      %v589 = vunpack.c.h.b16 %v396
      %v590 = vunpack.c.l.b16 %v397
      %v591 = vunpack.c.h.b16 %v397
      %v592 = vunpack.c.l.b16 %v398
      %v593 = vunpack.c.h.b16 %v398
      %v594 = vunpack.c.l.b16 %v399
      %v595 = vunpack.c.h.b16 %v399
      %v596 = vunpack.c.l.b16 %v400
      %v597 = vunpack.c.h.b16 %v400
      %v598 = vunpack.c.l.b16 %v401
      %v599 = vunpack.c.h.b16 %v401
      %v600 = vunpack.c.l.b16 %v402
      %v601 = vunpack.c.h.b16 %v402
      %v602 = vunpack.c.l.b16 %v403
      %v603 = vunpack.c.h.b16 %v403
      %v604 = vunpack.c.l.b16 %v404
      %v605 = vunpack.c.h.b16 %v404
      %v606 = vunpack.c.l.b16 %v405
      %v607 = vunpack.c.h.b16 %v405
      %v608 = vunpack.c.l.b16 %v406
      %v609 = vunpack.c.h.b16 %v406
      %v610 = vunpack.c.l.b16 %v407
      %v611 = vunpack.c.h.b16 %v407
      %v612 = vunpack.c.l.b16 %v408
      %v613 = vunpack.c.h.b16 %v408
      %v614 = vunpack.c.l.b16 %v409
      %v615 = vunpack.c.h.b16 %v409
      %v616 = vunpack.c.l.b16 %v410
      %v617 = vunpack.c.h.b16 %v410
      %v618 = vunpack.c.l.b16 %v411
      %v619 = vunpack.c.h.b16 %v411
      %v620 = vunpack.c.l.b16 %v412
      %v621 = vunpack.c.h.b16 %v412
      %v622 = vunpack.c.l.b16 %v413
      %v623 = vunpack.c.h.b16 %v413
      %v624 = vunpack.c.l.b16 %v414
      %v625 = vunpack.c.h.b16 %v414
      %v626 = vunpack.c.l.b16 %v415
      %v627 = vunpack.c.h.b16 %v415
      %v628 = vunpack.c.l.b16 %v416
      %v629 = vunpack.c.h.b16 %v416
      %v630 = vunpack.c.l.b16 %v417
      %v631 = vunpack.c.h.b16 %v417
      %v632 = vunpack.c.l.b16 %v418
      %v633 = vunpack.c.h.b16 %v418
      %v634 = vunpack.c.l.b16 %v419
      %v635 = vunpack.c.h.b16 %v419
      %v636 = vunpack.c.l.b16 %v420
      %v637 = vunpack.c.h.b16 %v420
      %v638 = vunpack.c.l.b16 %v421
      %v639 = vunpack.c.h.b16 %v421
      %v640 = vunpack.c.l.b16 %v422
      %v641 = vunpack.c.h.b16 %v422
      %v642 = vunpack.c.l.b16 %v423
      %v643 = vunpack.c.h.b16 %v423
      %v644 = vunpack.c.l.b16 %v424
      %v645 = vunpack.c.h.b16 %v424
      %v646 = vunpack.c.l.b16 %v425
      %v647 = vunpack.c.h.b16 %v425
      %v648 = vunpack.c.l.b16 %v426
      %v649 = vunpack.c.h.b16 %v426
      %v650 = vunpack.c.l.b16 %v427
      %v651 = vunpack.c.h.b16 %v427
      %v652 = vunpack.c.l.b16 %v428
      %v653 = vunpack.c.h.b16 %v428
      %v654 = vunpack.c.l.b16 %v429
      %v655 = vunpack.c.h.b16 %v429
      %v656 = vunpack.c.l.b16 %v430
      %v657 = vunpack.c.h.b16 %v430
      %v658 = vunpack.c.l.b16 %v431
      %v659 = vunpack.c.h.b16 %v431
      %v660 = vunpack.c.l.b16 %v432
      %v661 = vunpack.c.h.b16 %v432
      %v662 = vunpack.c.l.b16 %v433
      %v663 = vunpack.c.h.b16 %v433
      %v664 = vunpack.c.l.b16 %v434
      %v665 = vunpack.c.h.b16 %v434
      %v666 = vunpack.c.l.b16 %v435
      %v667 = vunpack.c.h.b16 %v435
      %v668 = vunpack.c.l.b16 %v436
      %v669 = vunpack.c.h.b16 %v436
      %v670 = vunpack.c.l.b16 %v437
      %v671 = vunpack.c.h.b16 %v437
      %v672 = vunpack.c.l.b16 %v438
      %v673 = vunpack.c.h.b16 %v438
      %v674 = vunpack.c.l.b16 %v439
      %v675 = vunpack.c.h.b16 %v439
      %v676 = vunpack.c.l.b16 %v440
      %v677 = vunpack.c.h.b16 %v440
      %v678 = vunpack.c.l.b16 %v441
      %v679 = vunpack.c.h.b16 %v441
      %v680 = vunpack.c.l.b16 %v442
      %v681 = vunpack.c.h.b16 %v442
      %v682 = vunpack.c.l.b16 %v443
      %v683 = vunpack.c.h.b16 %v443
      %v684 = vpack.c.b16 %v564, %v556
      %v685 = vpack.c.b16 %v565, %v557
      %v686 = vpack.c.b16 %v566, %v558
      %v687 = vpack.c.b16 %v567, %v559
      %v688 = vpack.c.b16 %v568, %v560
      %v689 = vpack.c.b16 %v569, %v561
      %v690 = vpack.c.b16 %v570, %v562
      %v691 = vpack.c.b16 %v571, %v563
      %v692 = vpack.c.b16 %v580, %v572
      %v693 = vpack.c.b16 %v581, %v573
      %v694 = vpack.c.b16 %v582, %v574
      %v695 = vpack.c.b16 %v583, %v575
      %v696 = vpack.c.b16 %v584, %v576
      %v697 = vpack.c.b16 %v585, %v577
      %v698 = vpack.c.b16 %v586, %v578
      %v699 = vpack.c.b16 %v587, %v579
      %v700 = vpack.c.b16 %v596, %v588
      %v701 = vpack.c.b16 %v597, %v589
      %v702 = vpack.c.b16 %v598, %v590
      %v703 = vpack.c.b16 %v599, %v591
      %v704 = vpack.c.b16 %v600, %v592
      %v705 = vpack.c.b16 %v601, %v593
      %v706 = vpack.c.b16 %v602, %v594
      %v707 = vpack.c.b16 %v603, %v595
      %v708 = vpack.c.b16 %v612, %v604
      %v709 = vpack.c.b16 %v613, %v605
      %v710 = vpack.c.b16 %v614, %v606
      %v711 = vpack.c.b16 %v615, %v607
      %v712 = vpack.c.b16 %v616, %v608
      %v713 = vpack.c.b16 %v617, %v609
      %v714 = vpack.c.b16 %v618, %v610
      %v715 = vpack.c.b16 %v619, %v611
      %v716 = vpack.c.b16 %v628, %v620
      %v717 = vpack.c.b16 %v629, %v621
      %v718 = vpack.c.b16 %v630, %v622
      %v719 = vpack.c.b16 %v631, %v623
      %v720 = vpack.c.b16 %v632, %v624
      %v721 = vpack.c.b16 %v633, %v625
      %v722 = vpack.c.b16 %v634, %v626
      %v723 = vpack.c.b16 %v635, %v627
      %v724 = vpack.c.b16 %v644, %v636
      %v725 = vpack.c.b16 %v645, %v637
      %v726 = vpack.c.b16 %v646, %v638
      %v727 = vpack.c.b16 %v647, %v639
      %v728 = vpack.c.b16 %v648, %v640
      %v729 = vpack.c.b16 %v649, %v641
      %v730 = vpack.c.b16 %v650, %v642
      %v731 = vpack.c.b16 %v651, %v643
      %v732 = vpack.c.b16 %v660, %v652
      %v733 = vpack.c.b16 %v661, %v653
      %v734 = vpack.c.b16 %v662, %v654
      %v735 = vpack.c.b16 %v663, %v655
      %v736 = vpack.c.b16 %v664, %v656
      %v737 = vpack.c.b16 %v665, %v657
      %v738 = vpack.c.b16 %v666, %v658
      %v739 = vpack.c.b16 %v667, %v659
      %v740 = vpack.c.b16 %v676, %v668
      %v741 = vpack.c.b16 %v677, %v669
      %v742 = vpack.c.b16 %v678, %v670
      %v743 = vpack.c.b16 %v679, %v671
      %v744 = vpack.c.b16 %v680, %v672
      %v745 = vpack.c.b16 %v681, %v673
      %v746 = vpack.c.b16 %v682, %v674
      %v747 = vpack.c.b16 %v683, %v675
      %812 = vmatprep.subr.bf16.mxu0 %v685
      %813 = vmatpush1.bf16.msra.mxu0 %v684
      %814 = vmatprep.subr.bf16.mxu0 %v693
      %815 = vmatpush1.bf16.msra.mxu0 %v692
      %816 = vmatprep.subr.bf16.mxu0 %v701
      %817 = vmatpush1.bf16.msra.mxu0 %v700
      %818 = vmatprep.subr.bf16.mxu0 %v709
      %819 = vmatpush1.bf16.msra.mxu0 %v708
      %820 = vmatprep.subr.bf16.mxu0 %v717
      %821 = vmatpush1.bf16.msra.mxu0 %v716
      %822 = vmatprep.subr.bf16.mxu0 %v725
      %823 = vmatpush1.bf16.msra.mxu0 %v724
      %824 = vmatprep.subr.bf16.mxu0 %v733
      %825 = vmatpush1.bf16.msra.mxu0 %v732
      %826 = vmatprep.subr.bf16.mxu0 %v741
      %827 = vmatpush1.bf16.msra.mxu0 %v740
      %828 = vmatprep.subr.bf16.mxu0 0
      %829 = vmatpush1.bf16.msra.mxu0 0
      %830 = vmatprep.subr.bf16.mxu0 0
      %831 = vmatpush1.bf16.msra.mxu0 0
      %832 = vmatprep.subr.bf16.mxu0 0
      %833 = vmatpush1.bf16.msra.mxu0 0
      %834 = vmatprep.subr.bf16.mxu0 0
      %835 = vmatpush1.bf16.msra.mxu0 0
      %836 = vmatprep.subr.bf16.mxu0 0
      %837 = vmatpush1.bf16.msra.mxu0 0
      %838 = vmatprep.subr.bf16.mxu0 0
      %839 = vmatpush1.bf16.msra.mxu0 0
      %840 = vmatprep.subr.bf16.mxu0 0
      %841 = vmatpush1.bf16.msra.mxu0 0
      %842 = vmatprep.subr.bf16.mxu0 0
      %843 = vmatpush1.bf16.msra.mxu0 0
      %844 = vmatprep.mubr.bf16.mxu0 0
      %845 = vmatmul.mubr.bf16.gmra.mrb[0].mxu0 %v476
      %v846 = vpop.f32.mrb[0].mxu0
      %v847 = vadd.f32 0.0, %v846
      %v848 = vpop.f32.mrb[0].mxu0
      %v849 = vadd.f32 0.0, %v848
      %v850 = vpop.f32.mrb[0].mxu0
      %v851 = vadd.f32 0.0, %v850
      %v852 = vpop.f32.mrb[0].mxu0
      %v853 = vadd.f32 0.0, %v852
      %854 = vmatprep.mubr.bf16.mxu0 0
      %855 = vmatmul.mubr.bf16.gmra.mrb[0].mxu0 %v477
      %v856 = vpop.f32.mrb[0].mxu0
      %v857 = vadd.f32 0.0, %v856
      %v858 = vpop.f32.mrb[0].mxu0
      %v859 = vadd.f32 0.0, %v858
      %v860 = vpop.f32.mrb[0].mxu0
      %v861 = vadd.f32 0.0, %v860
      %v862 = vpop.f32.mrb[0].mxu0
      %v863 = vadd.f32 0.0, %v862
      %864 = vmatprep.mubr.bf16.mxu0 0
      %865 = vmatmul.mubr.bf16.gmra.mrb[0].mxu0 %v478
      %v866 = vpop.f32.mrb[0].mxu0
      %v867 = vadd.f32 0.0, %v866
      %v868 = vpop.f32.mrb[0].mxu0
      %v869 = vadd.f32 0.0, %v868
      %v870 = vpop.f32.mrb[0].mxu0
      %v871 = vadd.f32 0.0, %v870
      %v872 = vpop.f32.mrb[0].mxu0
      %v873 = vadd.f32 0.0, %v872
      %874 = vmatprep.mubr.bf16.mxu0 0
      %875 = vmatmul.mubr.bf16.gmra.mrb[0].mxu0 %v479
      %v876 = vpop.f32.mrb[0].mxu0
      %v877 = vadd.f32 0.0, %v876
      %v878 = vpop.f32.mrb[0].mxu0
      %v879 = vadd.f32 0.0, %v878
      %v880 = vpop.f32.mrb[0].mxu0
      %v881 = vadd.f32 0.0, %v880
      %v882 = vpop.f32.mrb[0].mxu0
      %v883 = vadd.f32 0.0, %v882
      %884 = vmatprep.mubr.bf16.mxu0 0
      %885 = vmatmul.mubr.bf16.gmra.mrb[0].mxu0 %v480
      %v886 = vpop.f32.mrb[0].mxu0
      %v887 = vadd.f32 0.0, %v886
      %v888 = vpop.f32.mrb[0].mxu0
      %v889 = vadd.f32 0.0, %v888
      %v890 = vpop.f32.mrb[0].mxu0
      %v891 = vadd.f32 0.0, %v890
      %v892 = vpop.f32.mrb[0].mxu0
      %v893 = vadd.f32 0.0, %v892
      %894 = vmatprep.mubr.bf16.mxu0 0
      %895 = vmatmul.mubr.bf16.gmra.mrb[0].mxu0 %v481
      %v896 = vpop.f32.mrb[0].mxu0
      %v897 = vadd.f32 0.0, %v896
      %v898 = vpop.f32.mrb[0].mxu0
      %v899 = vadd.f32 0.0, %v898
      %v900 = vpop.f32.mrb[0].mxu0
      %v901 = vadd.f32 0.0, %v900
      %v902 = vpop.f32.mrb[0].mxu0
      %v903 = vadd.f32 0.0, %v902
      %904 = vmatprep.mubr.bf16.mxu0 0
      %905 = vmatmul.mubr.bf16.gmra.mrb[0].mxu0 %v482
      %v906 = vpop.f32.mrb[0].mxu0
      %v907 = vadd.f32 0.0, %v906
      %v908 = vpop.f32.mrb[0].mxu0
      %v909 = vadd.f32 0.0, %v908
      %v910 = vpop.f32.mrb[0].mxu0
      %v911 = vadd.f32 0.0, %v910
      %v912 = vpop.f32.mrb[0].mxu0
      %v913 = vadd.f32 0.0, %v912
      %914 = vmatprep.mubr.bf16.mxu0 0
      %915 = vmatmul.mubr.bf16.gmra.mrb[0].mxu0 %v483
      %v916 = vpop.f32.mrb[0].mxu0
      %v917 = vadd.f32 0.0, %v916
      %v918 = vpop.f32.mrb[0].mxu0
      %v919 = vadd.f32 0.0, %v918
      %v920 = vpop.f32.mrb[0].mxu0
      %v921 = vadd.f32 0.0, %v920
      %v922 = vpop.f32.mrb[0].mxu0
      %v923 = vadd.f32 0.0, %v922
      %924 = vdwg.mxu0
      %925 = vmatprep.subr.bf16.mxu0 %v687
      %926 = vmatpush1.bf16.msra.mxu0 %v686
      %927 = vmatprep.subr.bf16.mxu0 %v695
      %928 = vmatpush1.bf16.msra.mxu0 %v694
      %929 = vmatprep.subr.bf16.mxu0 %v703
      %930 = vmatpush1.bf16.msra.mxu0 %v702
      %931 = vmatprep.subr.bf16.mxu0 %v711
      %932 = vmatpush1.bf16.msra.mxu0 %v710
      %933 = vmatprep.subr.bf16.mxu0 %v719
      %934 = vmatpush1.bf16.msra.mxu0 %v718
      %935 = vmatprep.subr.bf16.mxu0 %v727
      %936 = vmatpush1.bf16.msra.mxu0 %v726
      %937 = vmatprep.subr.bf16.mxu0 %v735
      %938 = vmatpush1.bf16.msra.mxu0 %v734
      %939 = vmatprep.subr.bf16.mxu0 %v743
      %940 = vmatpush1.bf16.msra.mxu0 %v742
      %941 = vmatprep.subr.bf16.mxu0 0
      %942 = vmatpush1.bf16.msra.mxu0 0
      %943 = vmatprep.subr.bf16.mxu0 0
      %944 = vmatpush1.bf16.msra.mxu0 0
      %945 = vmatprep.subr.bf16.mxu0 0
      %946 = vmatpush1.bf16.msra.mxu0 0
      %947 = vmatprep.subr.bf16.mxu0 0
      %948 = vmatpush1.bf16.msra.mxu0 0
      %949 = vmatprep.subr.bf16.mxu0 0
      %950 = vmatpush1.bf16.msra.mxu0 0
      %951 = vmatprep.subr.bf16.mxu0 0
      %952 = vmatpush1.bf16.msra.mxu0 0
      %953 = vmatprep.subr.bf16.mxu0 0
      %954 = vmatpush1.bf16.msra.mxu0 0
      %955 = vmatprep.subr.bf16.mxu0 0
      %956 = vmatpush1.bf16.msra.mxu0 0
      %957 = vmatprep.mubr.bf16.mxu0 0
      %958 = vmatmul.mubr.bf16.gmra.mrb[0].mxu0 %v476
      %v959 = vpop.f32.mrb[0].mxu0
      %v960 = vadd.f32 0.0, %v959
      %v961 = vpop.f32.mrb[0].mxu0
      %v962 = vadd.f32 0.0, %v961
      %v963 = vpop.f32.mrb[0].mxu0
      %v964 = vadd.f32 0.0, %v963
      %v965 = vpop.f32.mrb[0].mxu0
      %v966 = vadd.f32 0.0, %v965
      %967 = vmatprep.mubr.bf16.mxu0 0
      %968 = vmatmul.mubr.bf16.gmra.mrb[0].mxu0 %v477
      %v969 = vpop.f32.mrb[0].mxu0
      %v970 = vadd.f32 0.0, %v969
      %v971 = vpop.f32.mrb[0].mxu0
      %v972 = vadd.f32 0.0, %v971
      %v973 = vpop.f32.mrb[0].mxu0
      %v974 = vadd.f32 0.0, %v973
      %v975 = vpop.f32.mrb[0].mxu0
      %v976 = vadd.f32 0.0, %v975
      %977 = vmatprep.mubr.bf16.mxu0 0
      %978 = vmatmul.mubr.bf16.gmra.mrb[0].mxu0 %v478
      %v979 = vpop.f32.mrb[0].mxu0
      %v980 = vadd.f32 0.0, %v979
      %v981 = vpop.f32.mrb[0].mxu0
      %v982 = vadd.f32 0.0, %v981
      %v983 = vpop.f32.mrb[0].mxu0
      %v984 = vadd.f32 0.0, %v983
      %v985 = vpop.f32.mrb[0].mxu0
      %v986 = vadd.f32 0.0, %v985
      %987 = vmatprep.mubr.bf16.mxu0 0
      %988 = vmatmul.mubr.bf16.gmra.mrb[0].mxu0 %v479
      %v989 = vpop.f32.mrb[0].mxu0
      %v990 = vadd.f32 0.0, %v989
      %v991 = vpop.f32.mrb[0].mxu0
      %v992 = vadd.f32 0.0, %v991
      %v993 = vpop.f32.mrb[0].mxu0
      %v994 = vadd.f32 0.0, %v993
      %v995 = vpop.f32.mrb[0].mxu0
      %v996 = vadd.f32 0.0, %v995
      %997 = vmatprep.mubr.bf16.mxu0 0
      %998 = vmatmul.mubr.bf16.gmra.mrb[0].mxu0 %v480
      %v999 = vpop.f32.mrb[0].mxu0
      %v1000 = vadd.f32 0.0, %v999
      %v1001 = vpop.f32.mrb[0].mxu0
      %v1002 = vadd.f32 0.0, %v1001
      %v1003 = vpop.f32.mrb[0].mxu0
      %v1004 = vadd.f32 0.0, %v1003
      %v1005 = vpop.f32.mrb[0].mxu0
      %v1006 = vadd.f32 0.0, %v1005
      %1007 = vmatprep.mubr.bf16.mxu0 0
      %1008 = vmatmul.mubr.bf16.gmra.mrb[0].mxu0 %v481
      %v1009 = vpop.f32.mrb[0].mxu0
      %v1010 = vadd.f32 0.0, %v1009
      %v1011 = vpop.f32.mrb[0].mxu0
      %v1012 = vadd.f32 0.0, %v1011
      %v1013 = vpop.f32.mrb[0].mxu0
      %v1014 = vadd.f32 0.0, %v1013
      %v1015 = vpop.f32.mrb[0].mxu0
      %v1016 = vadd.f32 0.0, %v1015
      %1017 = vmatprep.mubr.bf16.mxu0 0
      %1018 = vmatmul.mubr.bf16.gmra.mrb[0].mxu0 %v482
      %v1019 = vpop.f32.mrb[0].mxu0
      %v1020 = vadd.f32 0.0, %v1019
      %v1021 = vpop.f32.mrb[0].mxu0
      %v1022 = vadd.f32 0.0, %v1021
      %v1023 = vpop.f32.mrb[0].mxu0
      %v1024 = vadd.f32 0.0, %v1023
      %v1025 = vpop.f32.mrb[0].mxu0
      %v1026 = vadd.f32 0.0, %v1025
      %1027 = vmatprep.mubr.bf16.mxu0 0
      %1028 = vmatmul.mubr.bf16.gmra.mrb[0].mxu0 %v483
      %v1029 = vpop.f32.mrb[0].mxu0
      %v1030 = vadd.f32 0.0, %v1029
      %v1031 = vpop.f32.mrb[0].mxu0
      %v1032 = vadd.f32 0.0, %v1031
      %v1033 = vpop.f32.mrb[0].mxu0
      %v1034 = vadd.f32 0.0, %v1033
      %v1035 = vpop.f32.mrb[0].mxu0
      %v1036 = vadd.f32 0.0, %v1035
      %1037 = vdwg.mxu0
      %1038 = vmatprep.subr.bf16.mxu0 %v689
      %1039 = vmatpush1.bf16.msra.mxu0 %v688
      %1040 = vmatprep.subr.bf16.mxu0 %v697
      %1041 = vmatpush1.bf16.msra.mxu0 %v696
      %1042 = vmatprep.subr.bf16.mxu0 %v705
      %1043 = vmatpush1.bf16.msra.mxu0 %v704
      %1044 = vmatprep.subr.bf16.mxu0 %v713
      %1045 = vmatpush1.bf16.msra.mxu0 %v712
      %1046 = vmatprep.subr.bf16.mxu0 %v721
      %1047 = vmatpush1.bf16.msra.mxu0 %v720
      %1048 = vmatprep.subr.bf16.mxu0 %v729
      %1049 = vmatpush1.bf16.msra.mxu0 %v728
      %1050 = vmatprep.subr.bf16.mxu0 %v737
      %1051 = vmatpush1.bf16.msra.mxu0 %v736
      %1052 = vmatprep.subr.bf16.mxu0 %v745
      %1053 = vmatpush1.bf16.msra.mxu0 %v744
      %1054 = vmatprep.subr.bf16.mxu0 0
      %1055 = vmatpush1.bf16.msra.mxu0 0
      %1056 = vmatprep.subr.bf16.mxu0 0
      %1057 = vmatpush1.bf16.msra.mxu0 0
      %1058 = vmatprep.subr.bf16.mxu0 0
      %1059 = vmatpush1.bf16.msra.mxu0 0
      %1060 = vmatprep.subr.bf16.mxu0 0
      %1061 = vmatpush1.bf16.msra.mxu0 0
      %1062 = vmatprep.subr.bf16.mxu0 0
      %1063 = vmatpush1.bf16.msra.mxu0 0
      %1064 = vmatprep.subr.bf16.mxu0 0
      %1065 = vmatpush1.bf16.msra.mxu0 0
      %1066 = vmatprep.subr.bf16.mxu0 0
      %1067 = vmatpush1.bf16.msra.mxu0 0
      %1068 = vmatprep.subr.bf16.mxu0 0
      %1069 = vmatpush1.bf16.msra.mxu0 0
      %1070 = vmatprep.mubr.bf16.mxu0 0
      %1071 = vmatmul.mubr.bf16.gmra.mrb[0].mxu0 %v476
      %v1072 = vpop.f32.mrb[0].mxu0
      %v1073 = vadd.f32 0.0, %v1072
      %v1074 = vpop.f32.mrb[0].mxu0
      %v1075 = vadd.f32 0.0, %v1074
      %v1076 = vpop.f32.mrb[0].mxu0
      %v1077 = vadd.f32 0.0, %v1076
      %v1078 = vpop.f32.mrb[0].mxu0
      %v1079 = vadd.f32 0.0, %v1078
      %1080 = vmatprep.mubr.bf16.mxu0 0
      %1081 = vmatmul.mubr.bf16.gmra.mrb[0].mxu0 %v477
      %v1082 = vpop.f32.mrb[0].mxu0
      %v1083 = vadd.f32 0.0, %v1082
      %v1084 = vpop.f32.mrb[0].mxu0
      %v1085 = vadd.f32 0.0, %v1084
      %v1086 = vpop.f32.mrb[0].mxu0
      %v1087 = vadd.f32 0.0, %v1086
      %v1088 = vpop.f32.mrb[0].mxu0
      %v1089 = vadd.f32 0.0, %v1088
      %1090 = vmatprep.mubr.bf16.mxu0 0
      %1091 = vmatmul.mubr.bf16.gmra.mrb[0].mxu0 %v478
      %v1092 = vpop.f32.mrb[0].mxu0
      %v1093 = vadd.f32 0.0, %v1092
      %v1094 = vpop.f32.mrb[0].mxu0
      %v1095 = vadd.f32 0.0, %v1094
      %v1096 = vpop.f32.mrb[0].mxu0
      %v1097 = vadd.f32 0.0, %v1096
      %v1098 = vpop.f32.mrb[0].mxu0
      %v1099 = vadd.f32 0.0, %v1098
      %1100 = vmatprep.mubr.bf16.mxu0 0
      %1101 = vmatmul.mubr.bf16.gmra.mrb[0].mxu0 %v479
      %v1102 = vpop.f32.mrb[0].mxu0
      %v1103 = vadd.f32 0.0, %v1102
      %v1104 = vpop.f32.mrb[0].mxu0
      %v1105 = vadd.f32 0.0, %v1104
      %v1106 = vpop.f32.mrb[0].mxu0
      %v1107 = vadd.f32 0.0, %v1106
      %v1108 = vpop.f32.mrb[0].mxu0
      %v1109 = vadd.f32 0.0, %v1108
      %1110 = vmatprep.mubr.bf16.mxu0 0
      %1111 = vmatmul.mubr.bf16.gmra.mrb[0].mxu0 %v480
      %v1112 = vpop.f32.mrb[0].mxu0
      %v1113 = vadd.f32 0.0, %v1112
      %v1114 = vpop.f32.mrb[0].mxu0
      %v1115 = vadd.f32 0.0, %v1114
      %v1116 = vpop.f32.mrb[0].mxu0
      %v1117 = vadd.f32 0.0, %v1116
      %v1118 = vpop.f32.mrb[0].mxu0
      %v1119 = vadd.f32 0.0, %v1118
      %1120 = vmatprep.mubr.bf16.mxu0 0
      %1121 = vmatmul.mubr.bf16.gmra.mrb[0].mxu0 %v481
      %v1122 = vpop.f32.mrb[0].mxu0
      %v1123 = vadd.f32 0.0, %v1122
      %v1124 = vpop.f32.mrb[0].mxu0
      %v1125 = vadd.f32 0.0, %v1124
      %v1126 = vpop.f32.mrb[0].mxu0
      %v1127 = vadd.f32 0.0, %v1126
      %v1128 = vpop.f32.mrb[0].mxu0
      %v1129 = vadd.f32 0.0, %v1128
      %1130 = vmatprep.mubr.bf16.mxu0 0
      %1131 = vmatmul.mubr.bf16.gmra.mrb[0].mxu0 %v482
      %v1132 = vpop.f32.mrb[0].mxu0
      %v1133 = vadd.f32 0.0, %v1132
      %v1134 = vpop.f32.mrb[0].mxu0
      %v1135 = vadd.f32 0.0, %v1134
      %v1136 = vpop.f32.mrb[0].mxu0
      %v1137 = vadd.f32 0.0, %v1136
      %v1138 = vpop.f32.mrb[0].mxu0
      %v1139 = vadd.f32 0.0, %v1138
      %1140 = vmatprep.mubr.bf16.mxu0 0
      %1141 = vmatmul.mubr.bf16.gmra.mrb[0].mxu0 %v483
      %v1142 = vpop.f32.mrb[0].mxu0
      %v1143 = vadd.f32 0.0, %v1142
      %v1144 = vpop.f32.mrb[0].mxu0
      %v1145 = vadd.f32 0.0, %v1144
      %v1146 = vpop.f32.mrb[0].mxu0
      %v1147 = vadd.f32 0.0, %v1146
      %v1148 = vpop.f32.mrb[0].mxu0
      %v1149 = vadd.f32 0.0, %v1148
      %1150 = vdwg.mxu0
      %1151 = vmatprep.subr.bf16.mxu0 %v691
      %1152 = vmatpush1.bf16.msra.mxu0 %v690
      %1153 = vmatprep.subr.bf16.mxu0 %v699
      %1154 = vmatpush1.bf16.msra.mxu0 %v698
      %1155 = vmatprep.subr.bf16.mxu0 %v707
      %1156 = vmatpush1.bf16.msra.mxu0 %v706
      %1157 = vmatprep.subr.bf16.mxu0 %v715
      %1158 = vmatpush1.bf16.msra.mxu0 %v714
      %1159 = vmatprep.subr.bf16.mxu0 %v723
      %1160 = vmatpush1.bf16.msra.mxu0 %v722
      %1161 = vmatprep.subr.bf16.mxu0 %v731
      %1162 = vmatpush1.bf16.msra.mxu0 %v730
      %1163 = vmatprep.subr.bf16.mxu0 %v739
      %1164 = vmatpush1.bf16.msra.mxu0 %v738
      %1165 = vmatprep.subr.bf16.mxu0 %v747
      %1166 = vmatpush1.bf16.msra.mxu0 %v746
      %1167 = vmatprep.subr.bf16.mxu0 0
      %1168 = vmatpush1.bf16.msra.mxu0 0
      %1169 = vmatprep.subr.bf16.mxu0 0
      %1170 = vmatpush1.bf16.msra.mxu0 0
      %1171 = vmatprep.subr.bf16.mxu0 0
      %1172 = vmatpush1.bf16.msra.mxu0 0
      %1173 = vmatprep.subr.bf16.mxu0 0
      %1174 = vmatpush1.bf16.msra.mxu0 0
      %1175 = vmatprep.subr.bf16.mxu0 0
      %1176 = vmatpush1.bf16.msra.mxu0 0
      %1177 = vmatprep.subr.bf16.mxu0 0
      %1178 = vmatpush1.bf16.msra.mxu0 0
      %1179 = vmatprep.subr.bf16.mxu0 0
      %1180 = vmatpush1.bf16.msra.mxu0 0
      %1181 = vmatprep.subr.bf16.mxu0 0
      %1182 = vmatpush1.bf16.msra.mxu0 0
      %1183 = vmatprep.mubr.bf16.mxu0 0
      %1184 = vmatmul.mubr.bf16.gmra.mrb[0].mxu0 %v476
      %v1185 = vpop.f32.mrb[0].mxu0
      %v1186 = vadd.f32 0.0, %v1185
      %v1187 = vpop.f32.mrb[0].mxu0
      %v1188 = vadd.f32 0.0, %v1187
      %v1189 = vpop.f32.mrb[0].mxu0
      %v1190 = vadd.f32 0.0, %v1189
      %v1191 = vpop.f32.mrb[0].mxu0
      %v1192 = vadd.f32 0.0, %v1191
      %1193 = vmatprep.mubr.bf16.mxu0 0
      %1194 = vmatmul.mubr.bf16.gmra.mrb[0].mxu0 %v477
      %v1195 = vpop.f32.mrb[0].mxu0
      %v1196 = vadd.f32 0.0, %v1195
      %v1197 = vpop.f32.mrb[0].mxu0
      %v1198 = vadd.f32 0.0, %v1197
      %v1199 = vpop.f32.mrb[0].mxu0
      %v1200 = vadd.f32 0.0, %v1199
      %v1201 = vpop.f32.mrb[0].mxu0
      %v1202 = vadd.f32 0.0, %v1201
      %1203 = vmatprep.mubr.bf16.mxu0 0
      %1204 = vmatmul.mubr.bf16.gmra.mrb[0].mxu0 %v478
      %v1205 = vpop.f32.mrb[0].mxu0
      %v1206 = vadd.f32 0.0, %v1205
      %v1207 = vpop.f32.mrb[0].mxu0
      %v1208 = vadd.f32 0.0, %v1207
      %v1209 = vpop.f32.mrb[0].mxu0
      %v1210 = vadd.f32 0.0, %v1209
      %v1211 = vpop.f32.mrb[0].mxu0
      %v1212 = vadd.f32 0.0, %v1211
      %1213 = vmatprep.mubr.bf16.mxu0 0
      %1214 = vmatmul.mubr.bf16.gmra.mrb[0].mxu0 %v479
      %v1215 = vpop.f32.mrb[0].mxu0
      %v1216 = vadd.f32 0.0, %v1215
      %v1217 = vpop.f32.mrb[0].mxu0
      %v1218 = vadd.f32 0.0, %v1217
      %v1219 = vpop.f32.mrb[0].mxu0
      %v1220 = vadd.f32 0.0, %v1219
      %v1221 = vpop.f32.mrb[0].mxu0
      %v1222 = vadd.f32 0.0, %v1221
      %1223 = vmatprep.mubr.bf16.mxu0 0
      %1224 = vmatmul.mubr.bf16.gmra.mrb[0].mxu0 %v480
      %v1225 = vpop.f32.mrb[0].mxu0
      %v1226 = vadd.f32 0.0, %v1225
      %v1227 = vpop.f32.mrb[0].mxu0
      %v1228 = vadd.f32 0.0, %v1227
      %v1229 = vpop.f32.mrb[0].mxu0
      %v1230 = vadd.f32 0.0, %v1229
      %v1231 = vpop.f32.mrb[0].mxu0
      %v1232 = vadd.f32 0.0, %v1231
      %1233 = vmatprep.mubr.bf16.mxu0 0
      %1234 = vmatmul.mubr.bf16.gmra.mrb[0].mxu0 %v481
      %v1235 = vpop.f32.mrb[0].mxu0
      %v1236 = vadd.f32 0.0, %v1235
      %v1237 = vpop.f32.mrb[0].mxu0
      %v1238 = vadd.f32 0.0, %v1237
      %v1239 = vpop.f32.mrb[0].mxu0
      %v1240 = vadd.f32 0.0, %v1239
      %v1241 = vpop.f32.mrb[0].mxu0
      %v1242 = vadd.f32 0.0, %v1241
      %1243 = vmatprep.mubr.bf16.mxu0 0
      %1244 = vmatmul.mubr.bf16.gmra.mrb[0].mxu0 %v482
      %v1245 = vpop.f32.mrb[0].mxu0
      %v1246 = vadd.f32 0.0, %v1245
      %v1247 = vpop.f32.mrb[0].mxu0
      %v1248 = vadd.f32 0.0, %v1247
      %v1249 = vpop.f32.mrb[0].mxu0
      %v1250 = vadd.f32 0.0, %v1249
      %v1251 = vpop.f32.mrb[0].mxu0
      %v1252 = vadd.f32 0.0, %v1251
      %1253 = vmatprep.mubr.bf16.mxu0 0
      %1254 = vmatmul.mubr.bf16.gmra.mrb[0].mxu0 %v483
      %v1255 = vpop.f32.mrb[0].mxu0
      %v1256 = vadd.f32 0.0, %v1255
      %v1257 = vpop.f32.mrb[0].mxu0
      %v1258 = vadd.f32 0.0, %v1257
      %v1259 = vpop.f32.mrb[0].mxu0
      %v1260 = vadd.f32 0.0, %v1259
      %v1261 = vpop.f32.mrb[0].mxu0
      %v1262 = vadd.f32 0.0, %v1261
      %1263 = vdwg.mxu0
      %v1264 = vmax.f32 %v847, 0.0
      %v1265 = vmax.f32 %v851, 0.0
      %v1266 = vmax.f32 %v857, 0.0
      %v1267 = vmax.f32 %v861, 0.0
      %v1268 = vmax.f32 %v867, 0.0
      %v1269 = vmax.f32 %v871, 0.0
      %v1270 = vmax.f32 %v877, 0.0
      %v1271 = vmax.f32 %v881, 0.0
      %v1272 = vmax.f32 %v887, 0.0
      %v1273 = vmax.f32 %v891, 0.0
      %v1274 = vmax.f32 %v897, 0.0
      %v1275 = vmax.f32 %v901, 0.0
      %v1276 = vmax.f32 %v907, 0.0
      %v1277 = vmax.f32 %v911, 0.0
      %v1278 = vmax.f32 %v917, 0.0
      %v1279 = vmax.f32 %v921, 0.0
      %v1280 = vpack.c.bf16 %v1265, %v1264
      %v1281 = vpack.c.bf16 %v1267, %v1266
      %v1282 = vpack.c.bf16 %v1269, %v1268
      %v1283 = vpack.c.bf16 %v1271, %v1270
      %v1284 = vpack.c.bf16 %v1273, %v1272
      %v1285 = vpack.c.bf16 %v1275, %v1274
      %v1286 = vpack.c.bf16 %v1277, %v1276
      %v1287 = vpack.c.bf16 %v1279, %v1278
      %v1288 = vmax.f32 %v849, 0.0
      %v1289 = vmax.f32 %v853, 0.0
      %v1290 = vmax.f32 %v859, 0.0
      %v1291 = vmax.f32 %v863, 0.0
      %v1292 = vmax.f32 %v869, 0.0
      %v1293 = vmax.f32 %v873, 0.0
      %v1294 = vmax.f32 %v879, 0.0
      %v1295 = vmax.f32 %v883, 0.0
      %v1296 = vmax.f32 %v889, 0.0
      %v1297 = vmax.f32 %v893, 0.0
      %v1298 = vmax.f32 %v899, 0.0
      %v1299 = vmax.f32 %v903, 0.0
      %v1300 = vmax.f32 %v909, 0.0
      %v1301 = vmax.f32 %v913, 0.0
      %v1302 = vmax.f32 %v919, 0.0
      %v1303 = vmax.f32 %v923, 0.0
      %v1304 = vpack.c.bf16 %v1289, %v1288
      %v1305 = vpack.c.bf16 %v1291, %v1290
      %v1306 = vpack.c.bf16 %v1293, %v1292
      %v1307 = vpack.c.bf16 %v1295, %v1294
      %v1308 = vpack.c.bf16 %v1297, %v1296
      %v1309 = vpack.c.bf16 %v1299, %v1298
      %v1310 = vpack.c.bf16 %v1301, %v1300
      %v1311 = vpack.c.bf16 %v1303, %v1302
      %v1312 = vld [vmem:[%s2] sm:$0xf]
      %v1313 = vld [vmem:[%s2 + $0x4] sm:$0xf]
      %v1314 = vld [vmem:[%s2 + $0x8] sm:$0xf]
      %v1315 = vld [vmem:[%s2 + $0xc] sm:$0xf]
      %v1316 = vld [vmem:[%s2 + $0x10] sm:$0xf]
      %v1317 = vld [vmem:[%s2 + $0x14] sm:$0xf]
      %v1318 = vld [vmem:[%s2 + $0x18] sm:$0xf]
      %v1319 = vld [vmem:[%s2 + $0x1c] sm:$0xf]
      %v1320 = vld [vmem:[%s2 + $0x20] sm:$0xf]
      %v1321 = vld [vmem:[%s2 + $0x24] sm:$0xf]
      %v1322 = vld [vmem:[%s2 + $0x28] sm:$0xf]
      %v1323 = vld [vmem:[%s2 + $0x2c] sm:$0xf]
      %v1324 = vld [vmem:[%s2 + $0x30] sm:$0xf]
      %v1325 = vld [vmem:[%s2 + $0x34] sm:$0xf]
      %v1326 = vld [vmem:[%s2 + $0x38] sm:$0xf]
      %v1327 = vld [vmem:[%s2 + $0x3c] sm:$0xf]
      %v1344 = vunpack.c.l.b16 %v1312
      %v1345 = vunpack.c.l.b16 %v1313
      %v1346 = vunpack.c.l.b16 %v1314
      %v1347 = vunpack.c.l.b16 %v1315
      %v1348 = vunpack.c.l.b16 %v1316
      %v1349 = vunpack.c.l.b16 %v1317
      %v1350 = vunpack.c.l.b16 %v1318
      %v1351 = vunpack.c.l.b16 %v1319
      %v1352 = vunpack.c.l.b16 %v1320
      %v1353 = vunpack.c.l.b16 %v1321
      %v1354 = vunpack.c.l.b16 %v1322
      %v1355 = vunpack.c.l.b16 %v1323
      %v1356 = vunpack.c.l.b16 %v1324
      %v1357 = vunpack.c.l.b16 %v1325
      %v1358 = vunpack.c.l.b16 %v1326
      %v1359 = vunpack.c.l.b16 %v1327
      %v1360 = vpack.c.b16 %v1345, %v1344
      %v1361 = vpack.c.b16 %v1347, %v1346
      %v1362 = vpack.c.b16 %v1349, %v1348
      %v1363 = vpack.c.b16 %v1351, %v1350
      %v1364 = vpack.c.b16 %v1353, %v1352
      %v1365 = vpack.c.b16 %v1355, %v1354
      %v1366 = vpack.c.b16 %v1357, %v1356
      %v1367 = vpack.c.b16 %v1359, %v1358
      %1376 = vmatprep.subr.bf16.mxu0 0
      %1377 = vmatpush1.bf16.msra.mxu0 %v1360
      %1378 = vmatprep.subr.bf16.mxu0 0
      %1379 = vmatpush1.bf16.msra.mxu0 %v1361
      %1380 = vmatprep.subr.bf16.mxu0 0
      %1381 = vmatpush1.bf16.msra.mxu0 %v1362
      %1382 = vmatprep.subr.bf16.mxu0 0
      %1383 = vmatpush1.bf16.msra.mxu0 %v1363
      %1384 = vmatprep.subr.bf16.mxu0 0
      %1385 = vmatpush1.bf16.msra.mxu0 %v1364
      %1386 = vmatprep.subr.bf16.mxu0 0
      %1387 = vmatpush1.bf16.msra.mxu0 %v1365
      %1388 = vmatprep.subr.bf16.mxu0 0
      %1389 = vmatpush1.bf16.msra.mxu0 %v1366
      %1390 = vmatprep.subr.bf16.mxu0 0
      %1391 = vmatpush1.bf16.msra.mxu0 %v1367
      %1392 = vmatprep.subr.bf16.mxu0 0
      %1393 = vmatpush1.bf16.msra.mxu0 0
      %1394 = vmatprep.subr.bf16.mxu0 0
      %1395 = vmatpush1.bf16.msra.mxu0 0
      %1396 = vmatprep.subr.bf16.mxu0 0
      %1397 = vmatpush1.bf16.msra.mxu0 0
      %1398 = vmatprep.subr.bf16.mxu0 0
      %1399 = vmatpush1.bf16.msra.mxu0 0
      %1400 = vmatprep.subr.bf16.mxu0 0
      %1401 = vmatpush1.bf16.msra.mxu0 0
      %1402 = vmatprep.subr.bf16.mxu0 0
      %1403 = vmatpush1.bf16.msra.mxu0 0
      %1404 = vmatprep.subr.bf16.mxu0 0
      %1405 = vmatpush1.bf16.msra.mxu0 0
      %1406 = vmatprep.subr.bf16.mxu0 0
      %1407 = vmatpush1.bf16.msra.mxu0 0
      %1408 = vmatprep.mubr.bf16.mxu0 0
      %1409 = vmatmul.mubr.bf16.gmra.mrb[0].mxu0 %v1280
      %v1410 = vpop.f32.mrb[0].mxu0
      %v1411 = vadd.f32 %v960, %v1410
      %v1412 = vpop.f32.mrb[0].mxu0
      %v1413 = vpop.f32.mrb[0].mxu0
      %v1414 = vadd.f32 %v964, %v1413
      %v1415 = vpop.f32.mrb[0].mxu0
      %1416 = vmatprep.mubr.bf16.mxu0 0
      %1417 = vmatmul.mubr.bf16.gmra.mrb[0].mxu0 %v1281
      %v1418 = vpop.f32.mrb[0].mxu0
      %v1419 = vadd.f32 %v970, %v1418
      %v1420 = vpop.f32.mrb[0].mxu0
      %v1421 = vpop.f32.mrb[0].mxu0
      %v1422 = vadd.f32 %v974, %v1421
      %v1423 = vpop.f32.mrb[0].mxu0
      %1424 = vmatprep.mubr.bf16.mxu0 0
      %1425 = vmatmul.mubr.bf16.gmra.mrb[0].mxu0 %v1282
      %v1426 = vpop.f32.mrb[0].mxu0
      %v1427 = vadd.f32 %v980, %v1426
      %v1428 = vpop.f32.mrb[0].mxu0
      %v1429 = vpop.f32.mrb[0].mxu0
      %v1430 = vadd.f32 %v984, %v1429
      %v1431 = vpop.f32.mrb[0].mxu0
      %1432 = vmatprep.mubr.bf16.mxu0 0
      %1433 = vmatmul.mubr.bf16.gmra.mrb[0].mxu0 %v1283
      %v1434 = vpop.f32.mrb[0].mxu0
      %v1435 = vadd.f32 %v990, %v1434
      %v1436 = vpop.f32.mrb[0].mxu0
      %v1437 = vpop.f32.mrb[0].mxu0
      %v1438 = vadd.f32 %v994, %v1437
      %v1439 = vpop.f32.mrb[0].mxu0
      %1440 = vmatprep.mubr.bf16.mxu0 0
      %1441 = vmatmul.mubr.bf16.gmra.mrb[0].mxu0 %v1284
      %v1442 = vpop.f32.mrb[0].mxu0
      %v1443 = vadd.f32 %v1000, %v1442
      %v1444 = vpop.f32.mrb[0].mxu0
      %v1445 = vpop.f32.mrb[0].mxu0
      %v1446 = vadd.f32 %v1004, %v1445
      %v1447 = vpop.f32.mrb[0].mxu0
      %1448 = vmatprep.mubr.bf16.mxu0 0
      %1449 = vmatmul.mubr.bf16.gmra.mrb[0].mxu0 %v1285
      %v1450 = vpop.f32.mrb[0].mxu0
      %v1451 = vadd.f32 %v1010, %v1450
      %v1452 = vpop.f32.mrb[0].mxu0
      %v1453 = vpop.f32.mrb[0].mxu0
      %v1454 = vadd.f32 %v1014, %v1453
      %v1455 = vpop.f32.mrb[0].mxu0
      %1456 = vmatprep.mubr.bf16.mxu0 0
      %1457 = vmatmul.mubr.bf16.gmra.mrb[0].mxu0 %v1286
      %v1458 = vpop.f32.mrb[0].mxu0
      %v1459 = vadd.f32 %v1020, %v1458
      %v1460 = vpop.f32.mrb[0].mxu0
      %v1461 = vpop.f32.mrb[0].mxu0
      %v1462 = vadd.f32 %v1024, %v1461
      %v1463 = vpop.f32.mrb[0].mxu0
      %1464 = vmatprep.mubr.bf16.mxu0 0
      %1465 = vmatmul.mubr.bf16.gmra.mrb[0].mxu0 %v1287
      %v1466 = vpop.f32.mrb[0].mxu0
      %v1467 = vadd.f32 %v1030, %v1466
      %v1468 = vpop.f32.mrb[0].mxu0
      %v1469 = vpop.f32.mrb[0].mxu0
      %v1470 = vadd.f32 %v1034, %v1469
      %v1471 = vpop.f32.mrb[0].mxu0
      %1472 = vdwg.mxu0
      %v1473 = vmax.f32 %v1411, 0.0
      %v1474 = vmax.f32 %v1414, 0.0
      %v1475 = vmax.f32 %v1419, 0.0
      %v1476 = vmax.f32 %v1422, 0.0
      %v1477 = vmax.f32 %v1427, 0.0
      %v1478 = vmax.f32 %v1430, 0.0
      %v1479 = vmax.f32 %v1435, 0.0
      %v1480 = vmax.f32 %v1438, 0.0
      %v1481 = vmax.f32 %v1443, 0.0
      %v1482 = vmax.f32 %v1446, 0.0
      %v1483 = vmax.f32 %v1451, 0.0
      %v1484 = vmax.f32 %v1454, 0.0
      %v1485 = vmax.f32 %v1459, 0.0
      %v1486 = vmax.f32 %v1462, 0.0
      %v1487 = vmax.f32 %v1467, 0.0
      %v1488 = vmax.f32 %v1470, 0.0
      %v1489 = vpack.c.bf16 %v1474, %v1473
      %v1490 = vpack.c.bf16 %v1476, %v1475
      %v1491 = vpack.c.bf16 %v1478, %v1477
      %v1492 = vpack.c.bf16 %v1480, %v1479
      %v1493 = vpack.c.bf16 %v1482, %v1481
      %v1494 = vpack.c.bf16 %v1484, %v1483
      %v1495 = vpack.c.bf16 %v1486, %v1485
      %v1496 = vpack.c.bf16 %v1488, %v1487
      %v1497 = vld [vmem:[%s3] sm:$0xf]
      %v1498 = vld [vmem:[%s3 + $0x4] sm:$0xf]
      %v1499 = vld [vmem:[%s3 + $0x8] sm:$0xf]
      %v1500 = vld [vmem:[%s3 + $0xc] sm:$0xf]
      %v1501 = vld [vmem:[%s3 + $0x10] sm:$0xf]
      %v1502 = vld [vmem:[%s3 + $0x14] sm:$0xf]
      %v1503 = vld [vmem:[%s3 + $0x18] sm:$0xf]
      %v1504 = vld [vmem:[%s3 + $0x1c] sm:$0xf]
      %v1505 = vld [vmem:[%s3 + $0x20] sm:$0xf]
      %v1506 = vld [vmem:[%s3 + $0x24] sm:$0xf]
      %v1507 = vld [vmem:[%s3 + $0x28] sm:$0xf]
      %v1508 = vld [vmem:[%s3 + $0x2c] sm:$0xf]
      %v1509 = vld [vmem:[%s3 + $0x30] sm:$0xf]
      %v1510 = vld [vmem:[%s3 + $0x34] sm:$0xf]
      %v1511 = vld [vmem:[%s3 + $0x38] sm:$0xf]
      %v1512 = vld [vmem:[%s3 + $0x3c] sm:$0xf]
      %v1529 = vunpack.c.l.b16 %v1497
      %v1530 = vunpack.c.l.b16 %v1498
      %v1531 = vunpack.c.l.b16 %v1499
      %v1532 = vunpack.c.l.b16 %v1500
      %v1533 = vunpack.c.l.b16 %v1501
      %v1534 = vunpack.c.l.b16 %v1502
      %v1535 = vunpack.c.l.b16 %v1503
      %v1536 = vunpack.c.l.b16 %v1504
      %v1537 = vunpack.c.l.b16 %v1505
      %v1538 = vunpack.c.l.b16 %v1506
      %v1539 = vunpack.c.l.b16 %v1507
      %v1540 = vunpack.c.l.b16 %v1508
      %v1541 = vunpack.c.l.b16 %v1509
      %v1542 = vunpack.c.l.b16 %v1510
      %v1543 = vunpack.c.l.b16 %v1511
      %v1544 = vunpack.c.l.b16 %v1512
      %v1545 = vpack.c.b16 %v1530, %v1529
      %v1546 = vpack.c.b16 %v1532, %v1531
      %v1547 = vpack.c.b16 %v1534, %v1533
      %v1548 = vpack.c.b16 %v1536, %v1535
      %v1549 = vpack.c.b16 %v1538, %v1537
      %v1550 = vpack.c.b16 %v1540, %v1539
      %v1551 = vpack.c.b16 %v1542, %v1541
      %v1552 = vpack.c.b16 %v1544, %v1543
      %1561 = vmatprep.subr.bf16.mxu0 0
      %1562 = vmatpush1.bf16.msra.mxu0 %v1545
      %1563 = vmatprep.subr.bf16.mxu0 0
      %1564 = vmatpush1.bf16.msra.mxu0 %v1546
      %1565 = vmatprep.subr.bf16.mxu0 0
      %1566 = vmatpush1.bf16.msra.mxu0 %v1547
      %1567 = vmatprep.subr.bf16.mxu0 0
      %1568 = vmatpush1.bf16.msra.mxu0 %v1548
      %1569 = vmatprep.subr.bf16.mxu0 0
      %1570 = vmatpush1.bf16.msra.mxu0 %v1549
      %1571 = vmatprep.subr.bf16.mxu0 0
      %1572 = vmatpush1.bf16.msra.mxu0 %v1550
      %1573 = vmatprep.subr.bf16.mxu0 0
      %1574 = vmatpush1.bf16.msra.mxu0 %v1551
      %1575 = vmatprep.subr.bf16.mxu0 0
      %1576 = vmatpush1.bf16.msra.mxu0 %v1552
      %1577 = vmatprep.subr.bf16.mxu0 0
      %1578 = vmatpush1.bf16.msra.mxu0 0
      %1579 = vmatprep.subr.bf16.mxu0 0
      %1580 = vmatpush1.bf16.msra.mxu0 0
      %1581 = vmatprep.subr.bf16.mxu0 0
      %1582 = vmatpush1.bf16.msra.mxu0 0
      %1583 = vmatprep.subr.bf16.mxu0 0
      %1584 = vmatpush1.bf16.msra.mxu0 0
      %1585 = vmatprep.subr.bf16.mxu0 0
      %1586 = vmatpush1.bf16.msra.mxu0 0
      %1587 = vmatprep.subr.bf16.mxu0 0
      %1588 = vmatpush1.bf16.msra.mxu0 0
      %1589 = vmatprep.subr.bf16.mxu0 0
      %1590 = vmatpush1.bf16.msra.mxu0 0
      %1591 = vmatprep.subr.bf16.mxu0 0
      %1592 = vmatpush1.bf16.msra.mxu0 0
      %1593 = vmatprep.mubr.bf16.mxu0 0
      %1594 = vmatmul.mubr.bf16.gmra.mrb[0].mxu0 %v1304
      %v1595 = vpop.f32.mrb[0].mxu0
      %v1596 = vadd.f32 %v962, %v1595
      %v1597 = vpop.f32.mrb[0].mxu0
      %v1598 = vpop.f32.mrb[0].mxu0
      %v1599 = vadd.f32 %v966, %v1598
      %v1600 = vpop.f32.mrb[0].mxu0
      %1601 = vmatprep.mubr.bf16.mxu0 0
      %1602 = vmatmul.mubr.bf16.gmra.mrb[0].mxu0 %v1305
      %v1603 = vpop.f32.mrb[0].mxu0
      %v1604 = vadd.f32 %v972, %v1603
      %v1605 = vpop.f32.mrb[0].mxu0
      %v1606 = vpop.f32.mrb[0].mxu0
      %v1607 = vadd.f32 %v976, %v1606
      %v1608 = vpop.f32.mrb[0].mxu0
      %1609 = vmatprep.mubr.bf16.mxu0 0
      %1610 = vmatmul.mubr.bf16.gmra.mrb[0].mxu0 %v1306
      %v1611 = vpop.f32.mrb[0].mxu0
      %v1612 = vadd.f32 %v982, %v1611
      %v1613 = vpop.f32.mrb[0].mxu0
      %v1614 = vpop.f32.mrb[0].mxu0
      %v1615 = vadd.f32 %v986, %v1614
      %v1616 = vpop.f32.mrb[0].mxu0
      %1617 = vmatprep.mubr.bf16.mxu0 0
      %1618 = vmatmul.mubr.bf16.gmra.mrb[0].mxu0 %v1307
      %v1619 = vpop.f32.mrb[0].mxu0
      %v1620 = vadd.f32 %v992, %v1619
      %v1621 = vpop.f32.mrb[0].mxu0
      %v1622 = vpop.f32.mrb[0].mxu0
      %v1623 = vadd.f32 %v996, %v1622
      %v1624 = vpop.f32.mrb[0].mxu0
      %1625 = vmatprep.mubr.bf16.mxu0 0
      %1626 = vmatmul.mubr.bf16.gmra.mrb[0].mxu0 %v1308
      %v1627 = vpop.f32.mrb[0].mxu0
      %v1628 = vadd.f32 %v1002, %v1627
      %v1629 = vpop.f32.mrb[0].mxu0
      %v1630 = vpop.f32.mrb[0].mxu0
      %v1631 = vadd.f32 %v1006, %v1630
      %v1632 = vpop.f32.mrb[0].mxu0
      %1633 = vmatprep.mubr.bf16.mxu0 0
      %1634 = vmatmul.mubr.bf16.gmra.mrb[0].mxu0 %v1309
      %v1635 = vpop.f32.mrb[0].mxu0
      %v1636 = vadd.f32 %v1012, %v1635
      %v1637 = vpop.f32.mrb[0].mxu0
      %v1638 = vpop.f32.mrb[0].mxu0
      %v1639 = vadd.f32 %v1016, %v1638
      %v1640 = vpop.f32.mrb[0].mxu0
      %1641 = vmatprep.mubr.bf16.mxu0 0
      %1642 = vmatmul.mubr.bf16.gmra.mrb[0].mxu0 %v1310
      %v1643 = vpop.f32.mrb[0].mxu0
      %v1644 = vadd.f32 %v1022, %v1643
      %v1645 = vpop.f32.mrb[0].mxu0
      %v1646 = vpop.f32.mrb[0].mxu0
      %v1647 = vadd.f32 %v1026, %v1646
      %v1648 = vpop.f32.mrb[0].mxu0
      %1649 = vmatprep.mubr.bf16.mxu0 0
      %1650 = vmatmul.mubr.bf16.gmra.mrb[0].mxu0 %v1311
      %v1651 = vpop.f32.mrb[0].mxu0
      %v1652 = vadd.f32 %v1032, %v1651
      %v1653 = vpop.f32.mrb[0].mxu0
      %v1654 = vpop.f32.mrb[0].mxu0
      %v1655 = vadd.f32 %v1036, %v1654
      %v1656 = vpop.f32.mrb[0].mxu0
      %1657 = vdwg.mxu0
      %v1658 = vmax.f32 %v1596, 0.0
      %v1659 = vmax.f32 %v1599, 0.0
      %v1660 = vmax.f32 %v1604, 0.0
      %v1661 = vmax.f32 %v1607, 0.0
      %v1662 = vmax.f32 %v1612, 0.0
      %v1663 = vmax.f32 %v1615, 0.0
      %v1664 = vmax.f32 %v1620, 0.0
      %v1665 = vmax.f32 %v1623, 0.0
      %v1666 = vmax.f32 %v1628, 0.0
      %v1667 = vmax.f32 %v1631, 0.0
      %v1668 = vmax.f32 %v1636, 0.0
      %v1669 = vmax.f32 %v1639, 0.0
      %v1670 = vmax.f32 %v1644, 0.0
      %v1671 = vmax.f32 %v1647, 0.0
      %v1672 = vmax.f32 %v1652, 0.0
      %v1673 = vmax.f32 %v1655, 0.0
      %v1674 = vpack.c.bf16 %v1659, %v1658
      %v1675 = vpack.c.bf16 %v1661, %v1660
      %v1676 = vpack.c.bf16 %v1663, %v1662
      %v1677 = vpack.c.bf16 %v1665, %v1664
      %v1678 = vpack.c.bf16 %v1667, %v1666
      %v1679 = vpack.c.bf16 %v1669, %v1668
      %v1680 = vpack.c.bf16 %v1671, %v1670
      %v1681 = vpack.c.bf16 %v1673, %v1672
      %v1682 = vld [vmem:[%s4] sm:$0xf]
      %v1683 = vld [vmem:[%s4 + $0x4] sm:$0xf]
      %v1684 = vld [vmem:[%s4 + $0x8] sm:$0xf]
      %v1685 = vld [vmem:[%s4 + $0xc] sm:$0xf]
      %v1686 = vld [vmem:[%s4 + $0x10] sm:$0xf]
      %v1687 = vld [vmem:[%s4 + $0x14] sm:$0xf]
      %v1688 = vld [vmem:[%s4 + $0x18] sm:$0xf]
      %v1689 = vld [vmem:[%s4 + $0x1c] sm:$0xf]
      %v1690 = vld [vmem:[%s4 + $0x20] sm:$0xf]
      %v1691 = vld [vmem:[%s4 + $0x24] sm:$0xf]
      %v1692 = vld [vmem:[%s4 + $0x28] sm:$0xf]
      %v1693 = vld [vmem:[%s4 + $0x2c] sm:$0xf]
      %v1694 = vld [vmem:[%s4 + $0x30] sm:$0xf]
      %v1695 = vld [vmem:[%s4 + $0x34] sm:$0xf]
      %v1696 = vld [vmem:[%s4 + $0x38] sm:$0xf]
      %v1697 = vld [vmem:[%s4 + $0x3c] sm:$0xf]
      %v1714 = vunpack.c.l.b16 %v1682
      %v1715 = vunpack.c.l.b16 %v1683
      %v1716 = vunpack.c.l.b16 %v1684
      %v1717 = vunpack.c.l.b16 %v1685
      %v1718 = vunpack.c.l.b16 %v1686
      %v1719 = vunpack.c.l.b16 %v1687
      %v1720 = vunpack.c.l.b16 %v1688
      %v1721 = vunpack.c.l.b16 %v1689
      %v1722 = vunpack.c.l.b16 %v1690
      %v1723 = vunpack.c.l.b16 %v1691
      %v1724 = vunpack.c.l.b16 %v1692
      %v1725 = vunpack.c.l.b16 %v1693
      %v1726 = vunpack.c.l.b16 %v1694
      %v1727 = vunpack.c.l.b16 %v1695
      %v1728 = vunpack.c.l.b16 %v1696
      %v1729 = vunpack.c.l.b16 %v1697
      %v1730 = vpack.c.b16 %v1715, %v1714
      %v1731 = vpack.c.b16 %v1717, %v1716
      %v1732 = vpack.c.b16 %v1719, %v1718
      %v1733 = vpack.c.b16 %v1721, %v1720
      %v1734 = vpack.c.b16 %v1723, %v1722
      %v1735 = vpack.c.b16 %v1725, %v1724
      %v1736 = vpack.c.b16 %v1727, %v1726
      %v1737 = vpack.c.b16 %v1729, %v1728
      %1746 = vmatprep.subr.bf16.mxu0 0
      %1747 = vmatpush1.bf16.msra.mxu0 %v1730
      %1748 = vmatprep.subr.bf16.mxu0 0
      %1749 = vmatpush1.bf16.msra.mxu0 %v1731
      %1750 = vmatprep.subr.bf16.mxu0 0
      %1751 = vmatpush1.bf16.msra.mxu0 %v1732
      %1752 = vmatprep.subr.bf16.mxu0 0
      %1753 = vmatpush1.bf16.msra.mxu0 %v1733
      %1754 = vmatprep.subr.bf16.mxu0 0
      %1755 = vmatpush1.bf16.msra.mxu0 %v1734
      %1756 = vmatprep.subr.bf16.mxu0 0
      %1757 = vmatpush1.bf16.msra.mxu0 %v1735
      %1758 = vmatprep.subr.bf16.mxu0 0
      %1759 = vmatpush1.bf16.msra.mxu0 %v1736
      %1760 = vmatprep.subr.bf16.mxu0 0
      %1761 = vmatpush1.bf16.msra.mxu0 %v1737
      %1762 = vmatprep.subr.bf16.mxu0 0
      %1763 = vmatpush1.bf16.msra.mxu0 0
      %1764 = vmatprep.subr.bf16.mxu0 0
      %1765 = vmatpush1.bf16.msra.mxu0 0
      %1766 = vmatprep.subr.bf16.mxu0 0
      %1767 = vmatpush1.bf16.msra.mxu0 0
      %1768 = vmatprep.subr.bf16.mxu0 0
      %1769 = vmatpush1.bf16.msra.mxu0 0
      %1770 = vmatprep.subr.bf16.mxu0 0
      %1771 = vmatpush1.bf16.msra.mxu0 0
      %1772 = vmatprep.subr.bf16.mxu0 0
      %1773 = vmatpush1.bf16.msra.mxu0 0
      %1774 = vmatprep.subr.bf16.mxu0 0
      %1775 = vmatpush1.bf16.msra.mxu0 0
      %1776 = vmatprep.subr.bf16.mxu0 0
      %1777 = vmatpush1.bf16.msra.mxu0 0
      %1778 = vmatprep.mubr.bf16.mxu0 0
      %1779 = vmatmul.mubr.bf16.gmra.mrb[0].mxu0 %v1489
      %v1780 = vpop.f32.mrb[0].mxu0
      %v1781 = vadd.f32 %v1073, %v1780
      %v1782 = vpop.f32.mrb[0].mxu0
      %v1783 = vpop.f32.mrb[0].mxu0
      %v1784 = vadd.f32 %v1077, %v1783
      %v1785 = vpop.f32.mrb[0].mxu0
      %1786 = vmatprep.mubr.bf16.mxu0 0
      %1787 = vmatmul.mubr.bf16.gmra.mrb[0].mxu0 %v1490
      %v1788 = vpop.f32.mrb[0].mxu0
      %v1789 = vadd.f32 %v1083, %v1788
      %v1790 = vpop.f32.mrb[0].mxu0
      %v1791 = vpop.f32.mrb[0].mxu0
      %v1792 = vadd.f32 %v1087, %v1791
      %v1793 = vpop.f32.mrb[0].mxu0
      %1794 = vmatprep.mubr.bf16.mxu0 0
      %1795 = vmatmul.mubr.bf16.gmra.mrb[0].mxu0 %v1491
      %v1796 = vpop.f32.mrb[0].mxu0
      %v1797 = vadd.f32 %v1093, %v1796
      %v1798 = vpop.f32.mrb[0].mxu0
      %v1799 = vpop.f32.mrb[0].mxu0
      %v1800 = vadd.f32 %v1097, %v1799
      %v1801 = vpop.f32.mrb[0].mxu0
      %1802 = vmatprep.mubr.bf16.mxu0 0
      %1803 = vmatmul.mubr.bf16.gmra.mrb[0].mxu0 %v1492
      %v1804 = vpop.f32.mrb[0].mxu0
      %v1805 = vadd.f32 %v1103, %v1804
      %v1806 = vpop.f32.mrb[0].mxu0
      %v1807 = vpop.f32.mrb[0].mxu0
      %v1808 = vadd.f32 %v1107, %v1807
      %v1809 = vpop.f32.mrb[0].mxu0
      %1810 = vmatprep.mubr.bf16.mxu0 0
      %1811 = vmatmul.mubr.bf16.gmra.mrb[0].mxu0 %v1493
      %v1812 = vpop.f32.mrb[0].mxu0
      %v1813 = vadd.f32 %v1113, %v1812
      %v1814 = vpop.f32.mrb[0].mxu0
      %v1815 = vpop.f32.mrb[0].mxu0
      %v1816 = vadd.f32 %v1117, %v1815
      %v1817 = vpop.f32.mrb[0].mxu0
      %1818 = vmatprep.mubr.bf16.mxu0 0
      %1819 = vmatmul.mubr.bf16.gmra.mrb[0].mxu0 %v1494
      %v1820 = vpop.f32.mrb[0].mxu0
      %v1821 = vadd.f32 %v1123, %v1820
      %v1822 = vpop.f32.mrb[0].mxu0
      %v1823 = vpop.f32.mrb[0].mxu0
      %v1824 = vadd.f32 %v1127, %v1823
      %v1825 = vpop.f32.mrb[0].mxu0
      %1826 = vmatprep.mubr.bf16.mxu0 0
      %1827 = vmatmul.mubr.bf16.gmra.mrb[0].mxu0 %v1495
      %v1828 = vpop.f32.mrb[0].mxu0
      %v1829 = vadd.f32 %v1133, %v1828
      %v1830 = vpop.f32.mrb[0].mxu0
      %v1831 = vpop.f32.mrb[0].mxu0
      %v1832 = vadd.f32 %v1137, %v1831
      %v1833 = vpop.f32.mrb[0].mxu0
      %1834 = vmatprep.mubr.bf16.mxu0 0
      %1835 = vmatmul.mubr.bf16.gmra.mrb[0].mxu0 %v1496
      %v1836 = vpop.f32.mrb[0].mxu0
      %v1837 = vadd.f32 %v1143, %v1836
      %v1838 = vpop.f32.mrb[0].mxu0
      %v1839 = vpop.f32.mrb[0].mxu0
      %v1840 = vadd.f32 %v1147, %v1839
      %v1841 = vpop.f32.mrb[0].mxu0
      %1842 = vdwg.mxu0
      %v1843 = vmax.f32 %v1781, 0.0
      %v1844 = vmax.f32 %v1784, 0.0
      %v1845 = vmax.f32 %v1789, 0.0
      %v1846 = vmax.f32 %v1792, 0.0
      %v1847 = vmax.f32 %v1797, 0.0
      %v1848 = vmax.f32 %v1800, 0.0
      %v1849 = vmax.f32 %v1805, 0.0
      %v1850 = vmax.f32 %v1808, 0.0
      %v1851 = vmax.f32 %v1813, 0.0
      %v1852 = vmax.f32 %v1816, 0.0
      %v1853 = vmax.f32 %v1821, 0.0
      %v1854 = vmax.f32 %v1824, 0.0
      %v1855 = vmax.f32 %v1829, 0.0
      %v1856 = vmax.f32 %v1832, 0.0
      %v1857 = vmax.f32 %v1837, 0.0
      %v1858 = vmax.f32 %v1840, 0.0
      %v1859 = vpack.c.bf16 %v1844, %v1843
      %v1860 = vpack.c.bf16 %v1846, %v1845
      %v1861 = vpack.c.bf16 %v1848, %v1847
      %v1862 = vpack.c.bf16 %v1850, %v1849
      %v1863 = vpack.c.bf16 %v1852, %v1851
      %v1864 = vpack.c.bf16 %v1854, %v1853
      %v1865 = vpack.c.bf16 %v1856, %v1855
      %v1866 = vpack.c.bf16 %v1858, %v1857
      %v1867 = vld [vmem:[%s5] sm:$0xf]
      %v1868 = vld [vmem:[%s5 + $0x4] sm:$0xf]
      %v1869 = vld [vmem:[%s5 + $0x8] sm:$0xf]
      %v1870 = vld [vmem:[%s5 + $0xc] sm:$0xf]
      %v1871 = vld [vmem:[%s5 + $0x10] sm:$0xf]
      %v1872 = vld [vmem:[%s5 + $0x14] sm:$0xf]
      %v1873 = vld [vmem:[%s5 + $0x18] sm:$0xf]
      %v1874 = vld [vmem:[%s5 + $0x1c] sm:$0xf]
      %v1875 = vld [vmem:[%s5 + $0x20] sm:$0xf]
      %v1876 = vld [vmem:[%s5 + $0x24] sm:$0xf]
      %v1877 = vld [vmem:[%s5 + $0x28] sm:$0xf]
      %v1878 = vld [vmem:[%s5 + $0x2c] sm:$0xf]
      %v1879 = vld [vmem:[%s5 + $0x30] sm:$0xf]
      %v1880 = vld [vmem:[%s5 + $0x34] sm:$0xf]
      %v1881 = vld [vmem:[%s5 + $0x38] sm:$0xf]
      %v1882 = vld [vmem:[%s5 + $0x3c] sm:$0xf]
      %v1899 = vunpack.c.l.b16 %v1867
      %v1900 = vunpack.c.l.b16 %v1868
      %v1901 = vunpack.c.l.b16 %v1869
      %v1902 = vunpack.c.l.b16 %v1870
      %v1903 = vunpack.c.l.b16 %v1871
      %v1904 = vunpack.c.l.b16 %v1872
      %v1905 = vunpack.c.l.b16 %v1873
      %v1906 = vunpack.c.l.b16 %v1874
      %v1907 = vunpack.c.l.b16 %v1875
      %v1908 = vunpack.c.l.b16 %v1876
      %v1909 = vunpack.c.l.b16 %v1877
      %v1910 = vunpack.c.l.b16 %v1878
      %v1911 = vunpack.c.l.b16 %v1879
      %v1912 = vunpack.c.l.b16 %v1880
      %v1913 = vunpack.c.l.b16 %v1881
      %v1914 = vunpack.c.l.b16 %v1882
      %v1915 = vpack.c.b16 %v1900, %v1899
      %v1916 = vpack.c.b16 %v1902, %v1901
      %v1917 = vpack.c.b16 %v1904, %v1903
      %v1918 = vpack.c.b16 %v1906, %v1905
      %v1919 = vpack.c.b16 %v1908, %v1907
      %v1920 = vpack.c.b16 %v1910, %v1909
      %v1921 = vpack.c.b16 %v1912, %v1911
      %v1922 = vpack.c.b16 %v1914, %v1913
      %1931 = vmatprep.subr.bf16.mxu0 0
      %1932 = vmatpush1.bf16.msra.mxu0 %v1915
      %1933 = vmatprep.subr.bf16.mxu0 0
      %1934 = vmatpush1.bf16.msra.mxu0 %v1916
      %1935 = vmatprep.subr.bf16.mxu0 0
      %1936 = vmatpush1.bf16.msra.mxu0 %v1917
      %1937 = vmatprep.subr.bf16.mxu0 0
      %1938 = vmatpush1.bf16.msra.mxu0 %v1918
      %1939 = vmatprep.subr.bf16.mxu0 0
      %1940 = vmatpush1.bf16.msra.mxu0 %v1919
      %1941 = vmatprep.subr.bf16.mxu0 0
      %1942 = vmatpush1.bf16.msra.mxu0 %v1920
      %1943 = vmatprep.subr.bf16.mxu0 0
      %1944 = vmatpush1.bf16.msra.mxu0 %v1921
      %1945 = vmatprep.subr.bf16.mxu0 0
      %1946 = vmatpush1.bf16.msra.mxu0 %v1922
      %1947 = vmatprep.subr.bf16.mxu0 0
      %1948 = vmatpush1.bf16.msra.mxu0 0
      %1949 = vmatprep.subr.bf16.mxu0 0
      %1950 = vmatpush1.bf16.msra.mxu0 0
      %1951 = vmatprep.subr.bf16.mxu0 0
      %1952 = vmatpush1.bf16.msra.mxu0 0
      %1953 = vmatprep.subr.bf16.mxu0 0
      %1954 = vmatpush1.bf16.msra.mxu0 0
      %1955 = vmatprep.subr.bf16.mxu0 0
      %1956 = vmatpush1.bf16.msra.mxu0 0
      %1957 = vmatprep.subr.bf16.mxu0 0
      %1958 = vmatpush1.bf16.msra.mxu0 0
      %1959 = vmatprep.subr.bf16.mxu0 0
      %1960 = vmatpush1.bf16.msra.mxu0 0
      %1961 = vmatprep.subr.bf16.mxu0 0
      %1962 = vmatpush1.bf16.msra.mxu0 0
      %1963 = vmatprep.mubr.bf16.mxu0 0
      %1964 = vmatmul.mubr.bf16.gmra.mrb[0].mxu0 %v1674
      %v1965 = vpop.f32.mrb[0].mxu0
      %v1966 = vadd.f32 %v1075, %v1965
      %v1967 = vpop.f32.mrb[0].mxu0
      %v1968 = vpop.f32.mrb[0].mxu0
      %v1969 = vadd.f32 %v1079, %v1968
      %v1970 = vpop.f32.mrb[0].mxu0
      %1971 = vmatprep.mubr.bf16.mxu0 0
      %1972 = vmatmul.mubr.bf16.gmra.mrb[0].mxu0 %v1675
      %v1973 = vpop.f32.mrb[0].mxu0
      %v1974 = vadd.f32 %v1085, %v1973
      %v1975 = vpop.f32.mrb[0].mxu0
      %v1976 = vpop.f32.mrb[0].mxu0
      %v1977 = vadd.f32 %v1089, %v1976
      %v1978 = vpop.f32.mrb[0].mxu0
      %1979 = vmatprep.mubr.bf16.mxu0 0
      %1980 = vmatmul.mubr.bf16.gmra.mrb[0].mxu0 %v1676
      %v1981 = vpop.f32.mrb[0].mxu0
      %v1982 = vadd.f32 %v1095, %v1981
      %v1983 = vpop.f32.mrb[0].mxu0
      %v1984 = vpop.f32.mrb[0].mxu0
      %v1985 = vadd.f32 %v1099, %v1984
      %v1986 = vpop.f32.mrb[0].mxu0
      %1987 = vmatprep.mubr.bf16.mxu0 0
      %1988 = vmatmul.mubr.bf16.gmra.mrb[0].mxu0 %v1677
      %v1989 = vpop.f32.mrb[0].mxu0
      %v1990 = vadd.f32 %v1105, %v1989
      %v1991 = vpop.f32.mrb[0].mxu0
      %v1992 = vpop.f32.mrb[0].mxu0
      %v1993 = vadd.f32 %v1109, %v1992
      %v1994 = vpop.f32.mrb[0].mxu0
      %1995 = vmatprep.mubr.bf16.mxu0 0
      %1996 = vmatmul.mubr.bf16.gmra.mrb[0].mxu0 %v1678
      %v1997 = vpop.f32.mrb[0].mxu0
      %v1998 = vadd.f32 %v1115, %v1997
      %v1999 = vpop.f32.mrb[0].mxu0
      %v2000 = vpop.f32.mrb[0].mxu0
      %v2001 = vadd.f32 %v1119, %v2000
      %v2002 = vpop.f32.mrb[0].mxu0
      %2003 = vmatprep.mubr.bf16.mxu0 0
      %2004 = vmatmul.mubr.bf16.gmra.mrb[0].mxu0 %v1679
      %v2005 = vpop.f32.mrb[0].mxu0
      %v2006 = vadd.f32 %v1125, %v2005
      %v2007 = vpop.f32.mrb[0].mxu0
      %v2008 = vpop.f32.mrb[0].mxu0
      %v2009 = vadd.f32 %v1129, %v2008
      %v2010 = vpop.f32.mrb[0].mxu0
      %2011 = vmatprep.mubr.bf16.mxu0 0
      %2012 = vmatmul.mubr.bf16.gmra.mrb[0].mxu0 %v1680
      %v2013 = vpop.f32.mrb[0].mxu0
      %v2014 = vadd.f32 %v1135, %v2013
      %v2015 = vpop.f32.mrb[0].mxu0
      %v2016 = vpop.f32.mrb[0].mxu0
      %v2017 = vadd.f32 %v1139, %v2016
      %v2018 = vpop.f32.mrb[0].mxu0
      %2019 = vmatprep.mubr.bf16.mxu0 0
      %2020 = vmatmul.mubr.bf16.gmra.mrb[0].mxu0 %v1681
      %v2021 = vpop.f32.mrb[0].mxu0
      %v2022 = vadd.f32 %v1145, %v2021
      %v2023 = vpop.f32.mrb[0].mxu0
      %v2024 = vpop.f32.mrb[0].mxu0
      %v2025 = vadd.f32 %v1149, %v2024
      %v2026 = vpop.f32.mrb[0].mxu0
      %2027 = vdwg.mxu0
      %v2028 = vmax.f32 %v1966, 0.0
      %v2029 = vmax.f32 %v1969, 0.0
      %v2030 = vmax.f32 %v1974, 0.0
      %v2031 = vmax.f32 %v1977, 0.0
      %v2032 = vmax.f32 %v1982, 0.0
      %v2033 = vmax.f32 %v1985, 0.0
      %v2034 = vmax.f32 %v1990, 0.0
      %v2035 = vmax.f32 %v1993, 0.0
      %v2036 = vmax.f32 %v1998, 0.0
      %v2037 = vmax.f32 %v2001, 0.0
      %v2038 = vmax.f32 %v2006, 0.0
      %v2039 = vmax.f32 %v2009, 0.0
      %v2040 = vmax.f32 %v2014, 0.0
      %v2041 = vmax.f32 %v2017, 0.0
      %v2042 = vmax.f32 %v2022, 0.0
      %v2043 = vmax.f32 %v2025, 0.0
      %v2044 = vpack.c.bf16 %v2029, %v2028
      %v2045 = vpack.c.bf16 %v2031, %v2030
      %v2046 = vpack.c.bf16 %v2033, %v2032
      %v2047 = vpack.c.bf16 %v2035, %v2034
      %v2048 = vpack.c.bf16 %v2037, %v2036
      %v2049 = vpack.c.bf16 %v2039, %v2038
      %v2050 = vpack.c.bf16 %v2041, %v2040
      %v2051 = vpack.c.bf16 %v2043, %v2042
      %v2052 = vld [vmem:[%s6] sm:$0xf]
      %v2053 = vld [vmem:[%s6 + $0x4] sm:$0xf]
      %v2054 = vld [vmem:[%s6 + $0x8] sm:$0xf]
      %v2055 = vld [vmem:[%s6 + $0xc] sm:$0xf]
      %v2056 = vld [vmem:[%s6 + $0x10] sm:$0xf]
      %v2057 = vld [vmem:[%s6 + $0x14] sm:$0xf]
      %v2058 = vld [vmem:[%s6 + $0x18] sm:$0xf]
      %v2059 = vld [vmem:[%s6 + $0x1c] sm:$0xf]
      %v2060 = vld [vmem:[%s6 + $0x20] sm:$0xf]
      %v2061 = vld [vmem:[%s6 + $0x24] sm:$0xf]
      %v2062 = vld [vmem:[%s6 + $0x28] sm:$0xf]
      %v2063 = vld [vmem:[%s6 + $0x2c] sm:$0xf]
      %v2064 = vld [vmem:[%s6 + $0x30] sm:$0xf]
      %v2065 = vld [vmem:[%s6 + $0x34] sm:$0xf]
      %v2066 = vld [vmem:[%s6 + $0x38] sm:$0xf]
      %v2067 = vld [vmem:[%s6 + $0x3c] sm:$0xf]
      %v2084 = vunpack.c.l.b16 %v2052
      %v2085 = vunpack.c.l.b16 %v2053
      %v2086 = vunpack.c.l.b16 %v2054
      %v2087 = vunpack.c.l.b16 %v2055
      %v2088 = vunpack.c.l.b16 %v2056
      %v2089 = vunpack.c.l.b16 %v2057
      %v2090 = vunpack.c.l.b16 %v2058
      %v2091 = vunpack.c.l.b16 %v2059
      %v2092 = vunpack.c.l.b16 %v2060
      %v2093 = vunpack.c.l.b16 %v2061
      %v2094 = vunpack.c.l.b16 %v2062
      %v2095 = vunpack.c.l.b16 %v2063
      %v2096 = vunpack.c.l.b16 %v2064
      %v2097 = vunpack.c.l.b16 %v2065
      %v2098 = vunpack.c.l.b16 %v2066
      %v2099 = vunpack.c.l.b16 %v2067
      %v2100 = vpack.c.b16 %v2085, %v2084
      %v2101 = vpack.c.b16 %v2087, %v2086
      %v2102 = vpack.c.b16 %v2089, %v2088
      %v2103 = vpack.c.b16 %v2091, %v2090
      %v2104 = vpack.c.b16 %v2093, %v2092
      %v2105 = vpack.c.b16 %v2095, %v2094
      %v2106 = vpack.c.b16 %v2097, %v2096
      %v2107 = vpack.c.b16 %v2099, %v2098
      %2116 = vmatprep.subr.bf16.mxu0 0
      %2117 = vmatpush1.bf16.msra.mxu0 %v2100
      %2118 = vmatprep.subr.bf16.mxu0 0
      %2119 = vmatpush1.bf16.msra.mxu0 %v2101
      %2120 = vmatprep.subr.bf16.mxu0 0
      %2121 = vmatpush1.bf16.msra.mxu0 %v2102
      %2122 = vmatprep.subr.bf16.mxu0 0
      %2123 = vmatpush1.bf16.msra.mxu0 %v2103
      %2124 = vmatprep.subr.bf16.mxu0 0
      %2125 = vmatpush1.bf16.msra.mxu0 %v2104
      %2126 = vmatprep.subr.bf16.mxu0 0
      %2127 = vmatpush1.bf16.msra.mxu0 %v2105
      %2128 = vmatprep.subr.bf16.mxu0 0
      %2129 = vmatpush1.bf16.msra.mxu0 %v2106
      %2130 = vmatprep.subr.bf16.mxu0 0
      %2131 = vmatpush1.bf16.msra.mxu0 %v2107
      %2132 = vmatprep.subr.bf16.mxu0 0
      %2133 = vmatpush1.bf16.msra.mxu0 0
      %2134 = vmatprep.subr.bf16.mxu0 0
      %2135 = vmatpush1.bf16.msra.mxu0 0
      %2136 = vmatprep.subr.bf16.mxu0 0
      %2137 = vmatpush1.bf16.msra.mxu0 0
      %2138 = vmatprep.subr.bf16.mxu0 0
      %2139 = vmatpush1.bf16.msra.mxu0 0
      %2140 = vmatprep.subr.bf16.mxu0 0
      %2141 = vmatpush1.bf16.msra.mxu0 0
      %2142 = vmatprep.subr.bf16.mxu0 0
      %2143 = vmatpush1.bf16.msra.mxu0 0
      %2144 = vmatprep.subr.bf16.mxu0 0
      %2145 = vmatpush1.bf16.msra.mxu0 0
      %2146 = vmatprep.subr.bf16.mxu0 0
      %2147 = vmatpush1.bf16.msra.mxu0 0
      %2148 = vmatprep.mubr.bf16.mxu0 0
      %2149 = vmatmul.mubr.bf16.gmra.mrb[0].mxu0 %v1859
      %v2150 = vpop.f32.mrb[0].mxu0
      %v2151 = vadd.f32 %v1186, %v2150
      %v2152 = vpop.f32.mrb[0].mxu0
      %v2153 = vpop.f32.mrb[0].mxu0
      %v2154 = vadd.f32 %v1190, %v2153
      %v2155 = vpop.f32.mrb[0].mxu0
      %2156 = vmatprep.mubr.bf16.mxu0 0
      %2157 = vmatmul.mubr.bf16.gmra.mrb[0].mxu0 %v1860
      %v2158 = vpop.f32.mrb[0].mxu0
      %v2159 = vadd.f32 %v1196, %v2158
      %v2160 = vpop.f32.mrb[0].mxu0
      %v2161 = vpop.f32.mrb[0].mxu0
      %v2162 = vadd.f32 %v1200, %v2161
      %v2163 = vpop.f32.mrb[0].mxu0
      %2164 = vmatprep.mubr.bf16.mxu0 0
      %2165 = vmatmul.mubr.bf16.gmra.mrb[0].mxu0 %v1861
      %v2166 = vpop.f32.mrb[0].mxu0
      %v2167 = vadd.f32 %v1206, %v2166
      %v2168 = vpop.f32.mrb[0].mxu0
      %v2169 = vpop.f32.mrb[0].mxu0
      %v2170 = vadd.f32 %v1210, %v2169
      %v2171 = vpop.f32.mrb[0].mxu0
      %2172 = vmatprep.mubr.bf16.mxu0 0
      %2173 = vmatmul.mubr.bf16.gmra.mrb[0].mxu0 %v1862
      %v2174 = vpop.f32.mrb[0].mxu0
      %v2175 = vadd.f32 %v1216, %v2174
      %v2176 = vpop.f32.mrb[0].mxu0
      %v2177 = vpop.f32.mrb[0].mxu0
      %v2178 = vadd.f32 %v1220, %v2177
      %v2179 = vpop.f32.mrb[0].mxu0
      %2180 = vmatprep.mubr.bf16.mxu0 0
      %2181 = vmatmul.mubr.bf16.gmra.mrb[0].mxu0 %v1863
      %v2182 = vpop.f32.mrb[0].mxu0
      %v2183 = vadd.f32 %v1226, %v2182
      %v2184 = vpop.f32.mrb[0].mxu0
      %v2185 = vpop.f32.mrb[0].mxu0
      %v2186 = vadd.f32 %v1230, %v2185
      %v2187 = vpop.f32.mrb[0].mxu0
      %2188 = vmatprep.mubr.bf16.mxu0 0
      %2189 = vmatmul.mubr.bf16.gmra.mrb[0].mxu0 %v1864
      %v2190 = vpop.f32.mrb[0].mxu0
      %v2191 = vadd.f32 %v1236, %v2190
      %v2192 = vpop.f32.mrb[0].mxu0
      %v2193 = vpop.f32.mrb[0].mxu0
      %v2194 = vadd.f32 %v1240, %v2193
      %v2195 = vpop.f32.mrb[0].mxu0
      %2196 = vmatprep.mubr.bf16.mxu0 0
      %2197 = vmatmul.mubr.bf16.gmra.mrb[0].mxu0 %v1865
      %v2198 = vpop.f32.mrb[0].mxu0
      %v2199 = vadd.f32 %v1246, %v2198
      %v2200 = vpop.f32.mrb[0].mxu0
      %v2201 = vpop.f32.mrb[0].mxu0
      %v2202 = vadd.f32 %v1250, %v2201
      %v2203 = vpop.f32.mrb[0].mxu0
      %2204 = vmatprep.mubr.bf16.mxu0 0
      %2205 = vmatmul.mubr.bf16.gmra.mrb[0].mxu0 %v1866
      %v2206 = vpop.f32.mrb[0].mxu0
      %v2207 = vadd.f32 %v1256, %v2206
      %v2208 = vpop.f32.mrb[0].mxu0
      %v2209 = vpop.f32.mrb[0].mxu0
      %v2210 = vadd.f32 %v1260, %v2209
      %v2211 = vpop.f32.mrb[0].mxu0
      %2212 = vdwg.mxu0
      %v2213 = vmax.f32 %v2151, 0.0
      %v2214 = vmax.f32 %v2154, 0.0
      %v2215 = vmax.f32 %v2159, 0.0
      %v2216 = vmax.f32 %v2162, 0.0
      %v2217 = vmax.f32 %v2167, 0.0
      %v2218 = vmax.f32 %v2170, 0.0
      %v2219 = vmax.f32 %v2175, 0.0
      %v2220 = vmax.f32 %v2178, 0.0
      %v2221 = vmax.f32 %v2183, 0.0
      %v2222 = vmax.f32 %v2186, 0.0
      %v2223 = vmax.f32 %v2191, 0.0
      %v2224 = vmax.f32 %v2194, 0.0
      %v2225 = vmax.f32 %v2199, 0.0
      %v2226 = vmax.f32 %v2202, 0.0
      %v2227 = vmax.f32 %v2207, 0.0
      %v2228 = vmax.f32 %v2210, 0.0
      %v2229 = vpack.c.bf16 %v2214, %v2213
      %v2230 = vpack.c.bf16 %v2216, %v2215
      %v2231 = vpack.c.bf16 %v2218, %v2217
      %v2232 = vpack.c.bf16 %v2220, %v2219
      %v2233 = vpack.c.bf16 %v2222, %v2221
      %v2234 = vpack.c.bf16 %v2224, %v2223
      %v2235 = vpack.c.bf16 %v2226, %v2225
      %v2236 = vpack.c.bf16 %v2228, %v2227
      %v2237 = vld [vmem:[%s7] sm:$0xf]
      %v2238 = vld [vmem:[%s7 + $0x4] sm:$0xf]
      %v2239 = vld [vmem:[%s7 + $0x8] sm:$0xf]
      %v2240 = vld [vmem:[%s7 + $0xc] sm:$0xf]
      %v2241 = vld [vmem:[%s7 + $0x10] sm:$0xf]
      %v2242 = vld [vmem:[%s7 + $0x14] sm:$0xf]
      %v2243 = vld [vmem:[%s7 + $0x18] sm:$0xf]
      %v2244 = vld [vmem:[%s7 + $0x1c] sm:$0xf]
      %v2245 = vld [vmem:[%s7 + $0x20] sm:$0xf]
      %v2246 = vld [vmem:[%s7 + $0x24] sm:$0xf]
      %v2247 = vld [vmem:[%s7 + $0x28] sm:$0xf]
      %v2248 = vld [vmem:[%s7 + $0x2c] sm:$0xf]
      %v2249 = vld [vmem:[%s7 + $0x30] sm:$0xf]
      %v2250 = vld [vmem:[%s7 + $0x34] sm:$0xf]
      %v2251 = vld [vmem:[%s7 + $0x38] sm:$0xf]
      %v2252 = vld [vmem:[%s7 + $0x3c] sm:$0xf]
      %v2269 = vunpack.c.l.b16 %v2237
      %v2270 = vunpack.c.l.b16 %v2238
      %v2271 = vunpack.c.l.b16 %v2239
      %v2272 = vunpack.c.l.b16 %v2240
      %v2273 = vunpack.c.l.b16 %v2241
      %v2274 = vunpack.c.l.b16 %v2242
      %v2275 = vunpack.c.l.b16 %v2243
      %v2276 = vunpack.c.l.b16 %v2244
      %v2277 = vunpack.c.l.b16 %v2245
      %v2278 = vunpack.c.l.b16 %v2246
      %v2279 = vunpack.c.l.b16 %v2247
      %v2280 = vunpack.c.l.b16 %v2248
      %v2281 = vunpack.c.l.b16 %v2249
      %v2282 = vunpack.c.l.b16 %v2250
      %v2283 = vunpack.c.l.b16 %v2251
      %v2284 = vunpack.c.l.b16 %v2252
      %v2285 = vpack.c.b16 %v2270, %v2269
      %v2286 = vpack.c.b16 %v2272, %v2271
      %v2287 = vpack.c.b16 %v2274, %v2273
      %v2288 = vpack.c.b16 %v2276, %v2275
      %v2289 = vpack.c.b16 %v2278, %v2277
      %v2290 = vpack.c.b16 %v2280, %v2279
      %v2291 = vpack.c.b16 %v2282, %v2281
      %v2292 = vpack.c.b16 %v2284, %v2283
      %2301 = vmatprep.subr.bf16.mxu0 0
      %2302 = vmatpush1.bf16.msra.mxu0 %v2285
      %2303 = vmatprep.subr.bf16.mxu0 0
      %2304 = vmatpush1.bf16.msra.mxu0 %v2286
      %2305 = vmatprep.subr.bf16.mxu0 0
      %2306 = vmatpush1.bf16.msra.mxu0 %v2287
      %2307 = vmatprep.subr.bf16.mxu0 0
      %2308 = vmatpush1.bf16.msra.mxu0 %v2288
      %2309 = vmatprep.subr.bf16.mxu0 0
      %2310 = vmatpush1.bf16.msra.mxu0 %v2289
      %2311 = vmatprep.subr.bf16.mxu0 0
      %2312 = vmatpush1.bf16.msra.mxu0 %v2290
      %2313 = vmatprep.subr.bf16.mxu0 0
      %2314 = vmatpush1.bf16.msra.mxu0 %v2291
      %2315 = vmatprep.subr.bf16.mxu0 0
      %2316 = vmatpush1.bf16.msra.mxu0 %v2292
      %2317 = vmatprep.subr.bf16.mxu0 0
      %2318 = vmatpush1.bf16.msra.mxu0 0
      %2319 = vmatprep.subr.bf16.mxu0 0
      %2320 = vmatpush1.bf16.msra.mxu0 0
      %2321 = vmatprep.subr.bf16.mxu0 0
      %2322 = vmatpush1.bf16.msra.mxu0 0
      %2323 = vmatprep.subr.bf16.mxu0 0
      %2324 = vmatpush1.bf16.msra.mxu0 0
      %2325 = vmatprep.subr.bf16.mxu0 0
      %2326 = vmatpush1.bf16.msra.mxu0 0
      %2327 = vmatprep.subr.bf16.mxu0 0
      %2328 = vmatpush1.bf16.msra.mxu0 0
      %2329 = vmatprep.subr.bf16.mxu0 0
      %2330 = vmatpush1.bf16.msra.mxu0 0
      %2331 = vmatprep.subr.bf16.mxu0 0
      %2332 = vmatpush1.bf16.msra.mxu0 0
      %2333 = vmatprep.mubr.bf16.mxu0 0
      %2334 = vmatmul.mubr.bf16.gmra.mrb[0].mxu0 %v2044
      %v2335 = vpop.f32.mrb[0].mxu0
      %v2336 = vadd.f32 %v1188, %v2335
      %v2337 = vpop.f32.mrb[0].mxu0
      %v2338 = vpop.f32.mrb[0].mxu0
      %v2339 = vadd.f32 %v1192, %v2338
      %v2340 = vpop.f32.mrb[0].mxu0
      %2341 = vmatprep.mubr.bf16.mxu0 0
      %2342 = vmatmul.mubr.bf16.gmra.mrb[0].mxu0 %v2045
      %v2343 = vpop.f32.mrb[0].mxu0
      %v2344 = vadd.f32 %v1198, %v2343
      %v2345 = vpop.f32.mrb[0].mxu0
      %v2346 = vpop.f32.mrb[0].mxu0
      %v2347 = vadd.f32 %v1202, %v2346
      %v2348 = vpop.f32.mrb[0].mxu0
      %2349 = vmatprep.mubr.bf16.mxu0 0
      %2350 = vmatmul.mubr.bf16.gmra.mrb[0].mxu0 %v2046
      %v2351 = vpop.f32.mrb[0].mxu0
      %v2352 = vadd.f32 %v1208, %v2351
      %v2353 = vpop.f32.mrb[0].mxu0
      %v2354 = vpop.f32.mrb[0].mxu0
      %v2355 = vadd.f32 %v1212, %v2354
      %v2356 = vpop.f32.mrb[0].mxu0
      %2357 = vmatprep.mubr.bf16.mxu0 0
      %2358 = vmatmul.mubr.bf16.gmra.mrb[0].mxu0 %v2047
      %v2359 = vpop.f32.mrb[0].mxu0
      %v2360 = vadd.f32 %v1218, %v2359
      %v2361 = vpop.f32.mrb[0].mxu0
      %v2362 = vpop.f32.mrb[0].mxu0
      %v2363 = vadd.f32 %v1222, %v2362
      %v2364 = vpop.f32.mrb[0].mxu0
      %2365 = vmatprep.mubr.bf16.mxu0 0
      %2366 = vmatmul.mubr.bf16.gmra.mrb[0].mxu0 %v2048
      %v2367 = vpop.f32.mrb[0].mxu0
      %v2368 = vadd.f32 %v1228, %v2367
      %v2369 = vpop.f32.mrb[0].mxu0
      %v2370 = vpop.f32.mrb[0].mxu0
      %v2371 = vadd.f32 %v1232, %v2370
      %v2372 = vpop.f32.mrb[0].mxu0
      %2373 = vmatprep.mubr.bf16.mxu0 0
      %2374 = vmatmul.mubr.bf16.gmra.mrb[0].mxu0 %v2049
      %v2375 = vpop.f32.mrb[0].mxu0
      %v2376 = vadd.f32 %v1238, %v2375
      %v2377 = vpop.f32.mrb[0].mxu0
      %v2378 = vpop.f32.mrb[0].mxu0
      %v2379 = vadd.f32 %v1242, %v2378
      %v2380 = vpop.f32.mrb[0].mxu0
      %2381 = vmatprep.mubr.bf16.mxu0 0
      %2382 = vmatmul.mubr.bf16.gmra.mrb[0].mxu0 %v2050
      %v2383 = vpop.f32.mrb[0].mxu0
      %v2384 = vadd.f32 %v1248, %v2383
      %v2385 = vpop.f32.mrb[0].mxu0
      %v2386 = vpop.f32.mrb[0].mxu0
      %v2387 = vadd.f32 %v1252, %v2386
      %v2388 = vpop.f32.mrb[0].mxu0
      %2389 = vmatprep.mubr.bf16.mxu0 0
      %2390 = vmatmul.mubr.bf16.gmra.mrb[0].mxu0 %v2051
      %v2391 = vpop.f32.mrb[0].mxu0
      %v2392 = vadd.f32 %v1258, %v2391
      %v2393 = vpop.f32.mrb[0].mxu0
      %v2394 = vpop.f32.mrb[0].mxu0
      %v2395 = vadd.f32 %v1262, %v2394
      %v2396 = vpop.f32.mrb[0].mxu0
      %2397 = vdwg.mxu0
      %v2398 = vmax.f32 %v2336, 0.0
      %v2399 = vmax.f32 %v2339, 0.0
      %v2400 = vmax.f32 %v2344, 0.0
      %v2401 = vmax.f32 %v2347, 0.0
      %v2402 = vmax.f32 %v2352, 0.0
      %v2403 = vmax.f32 %v2355, 0.0
      %v2404 = vmax.f32 %v2360, 0.0
      %v2405 = vmax.f32 %v2363, 0.0
      %v2406 = vmax.f32 %v2368, 0.0
      %v2407 = vmax.f32 %v2371, 0.0
      %v2408 = vmax.f32 %v2376, 0.0
      %v2409 = vmax.f32 %v2379, 0.0
      %v2410 = vmax.f32 %v2384, 0.0
      %v2411 = vmax.f32 %v2387, 0.0
      %v2412 = vmax.f32 %v2392, 0.0
      %v2413 = vmax.f32 %v2395, 0.0
      %v2414 = vpack.c.bf16 %v2399, %v2398
      %v2415 = vpack.c.bf16 %v2401, %v2400
      %v2416 = vpack.c.bf16 %v2403, %v2402
      %v2417 = vpack.c.bf16 %v2405, %v2404
      %v2418 = vpack.c.bf16 %v2407, %v2406
      %v2419 = vpack.c.bf16 %v2409, %v2408
      %v2420 = vpack.c.bf16 %v2411, %v2410
      %v2421 = vpack.c.bf16 %v2413, %v2412
      %v2422 = vld [vmem:[%s8] sm:$0xf]
      %v2423 = vld [vmem:[%s8 + $0x4] sm:$0xf]
      %v2424 = vld [vmem:[%s8 + $0x8] sm:$0xf]
      %v2425 = vld [vmem:[%s8 + $0xc] sm:$0xf]
      %v2426 = vld [vmem:[%s8 + $0x10] sm:$0xf]
      %v2427 = vld [vmem:[%s8 + $0x14] sm:$0xf]
      %v2428 = vld [vmem:[%s8 + $0x18] sm:$0xf]
      %v2429 = vld [vmem:[%s8 + $0x1c] sm:$0xf]
      %v2430 = vld [vmem:[%s8 + $0x20] sm:$0xf]
      %v2431 = vld [vmem:[%s8 + $0x24] sm:$0xf]
      %v2432 = vld [vmem:[%s8 + $0x28] sm:$0xf]
      %v2433 = vld [vmem:[%s8 + $0x2c] sm:$0xf]
      %v2434 = vld [vmem:[%s8 + $0x30] sm:$0xf]
      %v2435 = vld [vmem:[%s8 + $0x34] sm:$0xf]
      %v2436 = vld [vmem:[%s8 + $0x38] sm:$0xf]
      %v2437 = vld [vmem:[%s8 + $0x3c] sm:$0xf]
      %v2438 = vld [vmem:[%s8 + $0x40] sm:$0xf]
      %v2439 = vld [vmem:[%s8 + $0x44] sm:$0xf]
      %v2440 = vld [vmem:[%s8 + $0x48] sm:$0xf]
      %v2441 = vld [vmem:[%s8 + $0x4c] sm:$0xf]
      %v2442 = vld [vmem:[%s8 + $0x50] sm:$0xf]
      %v2443 = vld [vmem:[%s8 + $0x54] sm:$0xf]
      %v2444 = vld [vmem:[%s8 + $0x58] sm:$0xf]
      %v2445 = vld [vmem:[%s8 + $0x5c] sm:$0xf]
      %v2446 = vld [vmem:[%s8 + $0x60] sm:$0xf]
      %v2447 = vld [vmem:[%s8 + $0x64] sm:$0xf]
      %v2448 = vld [vmem:[%s8 + $0x68] sm:$0xf]
      %v2449 = vld [vmem:[%s8 + $0x6c] sm:$0xf]
      %v2450 = vld [vmem:[%s8 + $0x70] sm:$0xf]
      %v2451 = vld [vmem:[%s8 + $0x74] sm:$0xf]
      %v2452 = vld [vmem:[%s8 + $0x78] sm:$0xf]
      %v2453 = vld [vmem:[%s8 + $0x7c] sm:$0xf]
      %v2454 = vld [vmem:[%s9] sm:$0x1]
      %v2456 = vlaneseq
      %v2457 = vshrl.u32 %v2456, 7
      %v2458 = vsub.s32 0, %v2457
      %v2459 = vrot.slane %v2454, %v2458
      %v2493 = vunpack.c.l.b16 %v2422
      %v2494 = vunpack.c.l.b16 %v2423
      %v2495 = vunpack.c.l.b16 %v2424
      %v2496 = vunpack.c.l.b16 %v2425
      %v2497 = vunpack.c.l.b16 %v2426
      %v2498 = vunpack.c.l.b16 %v2427
      %v2499 = vunpack.c.l.b16 %v2428
      %v2500 = vunpack.c.l.b16 %v2429
      %v2501 = vunpack.c.l.b16 %v2430
      %v2502 = vunpack.c.l.b16 %v2431
      %v2503 = vunpack.c.l.b16 %v2432
      %v2504 = vunpack.c.l.b16 %v2433
      %v2505 = vunpack.c.l.b16 %v2434
      %v2506 = vunpack.c.l.b16 %v2435
      %v2507 = vunpack.c.l.b16 %v2436
      %v2508 = vunpack.c.l.b16 %v2437
      %v2509 = vunpack.c.l.b16 %v2438
      %v2510 = vunpack.c.l.b16 %v2439
      %v2511 = vunpack.c.l.b16 %v2440
      %v2512 = vunpack.c.l.b16 %v2441
      %v2513 = vunpack.c.l.b16 %v2442
      %v2514 = vunpack.c.l.b16 %v2443
      %v2515 = vunpack.c.l.b16 %v2444
      %v2516 = vunpack.c.l.b16 %v2445
      %v2517 = vunpack.c.l.b16 %v2446
      %v2518 = vunpack.c.l.b16 %v2447
      %v2519 = vunpack.c.l.b16 %v2448
      %v2520 = vunpack.c.l.b16 %v2449
      %v2521 = vunpack.c.l.b16 %v2450
      %v2522 = vunpack.c.l.b16 %v2451
      %v2523 = vunpack.c.l.b16 %v2452
      %v2524 = vunpack.c.l.b16 %v2453
      %v2525 = vpack.c.b16 %v2494, %v2493
      %v2526 = vpack.c.b16 %v2496, %v2495
      %v2527 = vpack.c.b16 %v2498, %v2497
      %v2528 = vpack.c.b16 %v2500, %v2499
      %v2529 = vpack.c.b16 %v2502, %v2501
      %v2530 = vpack.c.b16 %v2504, %v2503
      %v2531 = vpack.c.b16 %v2506, %v2505
      %v2532 = vpack.c.b16 %v2508, %v2507
      %v2533 = vpack.c.b16 %v2510, %v2509
      %v2534 = vpack.c.b16 %v2512, %v2511
      %v2535 = vpack.c.b16 %v2514, %v2513
      %v2536 = vpack.c.b16 %v2516, %v2515
      %v2537 = vpack.c.b16 %v2518, %v2517
      %v2538 = vpack.c.b16 %v2520, %v2519
      %v2539 = vpack.c.b16 %v2522, %v2521
      %v2540 = vpack.c.b16 %v2524, %v2523
      %2557 = vmatprep.subr.bf16.mxu0 0
      %2558 = vmatpush1.bf16.msra.mxu0 %v2525
      %2559 = vmatprep.subr.bf16.mxu0 0
      %2560 = vmatpush1.bf16.msra.mxu0 %v2526
      %2561 = vmatprep.subr.bf16.mxu0 0
      %2562 = vmatpush1.bf16.msra.mxu0 %v2527
      %2563 = vmatprep.subr.bf16.mxu0 0
      %2564 = vmatpush1.bf16.msra.mxu0 %v2528
      %2565 = vmatprep.subr.bf16.mxu0 0
      %2566 = vmatpush1.bf16.msra.mxu0 %v2529
      %2567 = vmatprep.subr.bf16.mxu0 0
      %2568 = vmatpush1.bf16.msra.mxu0 %v2530
      %2569 = vmatprep.subr.bf16.mxu0 0
      %2570 = vmatpush1.bf16.msra.mxu0 %v2531
      %2571 = vmatprep.subr.bf16.mxu0 0
      %2572 = vmatpush1.bf16.msra.mxu0 %v2532
      %2573 = vmatprep.subr.bf16.mxu0 0
      %2574 = vmatpush1.bf16.msra.mxu0 %v2533
      %2575 = vmatprep.subr.bf16.mxu0 0
      %2576 = vmatpush1.bf16.msra.mxu0 %v2534
      %2577 = vmatprep.subr.bf16.mxu0 0
      %2578 = vmatpush1.bf16.msra.mxu0 %v2535
      %2579 = vmatprep.subr.bf16.mxu0 0
      %2580 = vmatpush1.bf16.msra.mxu0 %v2536
      %2581 = vmatprep.subr.bf16.mxu0 0
      %2582 = vmatpush1.bf16.msra.mxu0 %v2537
      %2583 = vmatprep.subr.bf16.mxu0 0
      %2584 = vmatpush1.bf16.msra.mxu0 %v2538
      %2585 = vmatprep.subr.bf16.mxu0 0
      %2586 = vmatpush1.bf16.msra.mxu0 %v2539
      %2587 = vmatprep.subr.bf16.mxu0 0
      %2588 = vmatpush1.bf16.msra.mxu0 %v2540
      %2589 = vmatprep.mubr.bf16.mxu0 %v2414
      %2590 = vmatmul.mubr.bf16.gmra.mrb[0].mxu0 %v2229
      %v2591 = vpop.f32.mrb[0].mxu0
      %v2592 = vadd.f32 %v2459, %v2591
      %v2593 = vpop.f32.mrb[0].mxu0
      %v2594 = vpop.f32.mrb[0].mxu0
      %v2595 = vadd.f32 %v2459, %v2594
      %v2596 = vpop.f32.mrb[0].mxu0
      %2597 = vmatprep.mubr.bf16.mxu0 %v2415
      %2598 = vmatmul.mubr.bf16.gmra.mrb[0].mxu0 %v2230
      %v2599 = vpop.f32.mrb[0].mxu0
      %v2600 = vadd.f32 %v2459, %v2599
      %v2601 = vpop.f32.mrb[0].mxu0
      %v2602 = vpop.f32.mrb[0].mxu0
      %v2603 = vadd.f32 %v2459, %v2602
      %v2604 = vpop.f32.mrb[0].mxu0
      %2605 = vmatprep.mubr.bf16.mxu0 %v2416
      %2606 = vmatmul.mubr.bf16.gmra.mrb[0].mxu0 %v2231
      %v2607 = vpop.f32.mrb[0].mxu0
      %v2608 = vadd.f32 %v2459, %v2607
      %v2609 = vpop.f32.mrb[0].mxu0
      %v2610 = vpop.f32.mrb[0].mxu0
      %v2611 = vadd.f32 %v2459, %v2610
      %v2612 = vpop.f32.mrb[0].mxu0
      %2613 = vmatprep.mubr.bf16.mxu0 %v2417
      %2614 = vmatmul.mubr.bf16.gmra.mrb[0].mxu0 %v2232
      %v2615 = vpop.f32.mrb[0].mxu0
      %v2616 = vadd.f32 %v2459, %v2615
      %v2617 = vpop.f32.mrb[0].mxu0
      %v2618 = vpop.f32.mrb[0].mxu0
      %v2619 = vadd.f32 %v2459, %v2618
      %v2620 = vpop.f32.mrb[0].mxu0
      %2621 = vmatprep.mubr.bf16.mxu0 %v2418
      %2622 = vmatmul.mubr.bf16.gmra.mrb[0].mxu0 %v2233
      %v2623 = vpop.f32.mrb[0].mxu0
      %v2624 = vadd.f32 %v2459, %v2623
      %v2625 = vpop.f32.mrb[0].mxu0
      %v2626 = vpop.f32.mrb[0].mxu0
      %v2627 = vadd.f32 %v2459, %v2626
      %v2628 = vpop.f32.mrb[0].mxu0
      %2629 = vmatprep.mubr.bf16.mxu0 %v2419
      %2630 = vmatmul.mubr.bf16.gmra.mrb[0].mxu0 %v2234
      %v2631 = vpop.f32.mrb[0].mxu0
      %v2632 = vadd.f32 %v2459, %v2631
      %v2633 = vpop.f32.mrb[0].mxu0
      %v2634 = vpop.f32.mrb[0].mxu0
      %v2635 = vadd.f32 %v2459, %v2634
      %v2636 = vpop.f32.mrb[0].mxu0
      %2637 = vmatprep.mubr.bf16.mxu0 %v2420
      %2638 = vmatmul.mubr.bf16.gmra.mrb[0].mxu0 %v2235
      %v2639 = vpop.f32.mrb[0].mxu0
      %v2640 = vadd.f32 %v2459, %v2639
      %v2641 = vpop.f32.mrb[0].mxu0
      %v2642 = vpop.f32.mrb[0].mxu0
      %v2643 = vadd.f32 %v2459, %v2642
      %v2644 = vpop.f32.mrb[0].mxu0
      %2645 = vmatprep.mubr.bf16.mxu0 %v2421
      %2646 = vmatmul.mubr.bf16.gmra.mrb[0].mxu0 %v2236
      %v2647 = vpop.f32.mrb[0].mxu0
      %v2648 = vadd.f32 %v2459, %v2647
      %v2649 = vpop.f32.mrb[0].mxu0
      %v2650 = vpop.f32.mrb[0].mxu0
      %v2651 = vadd.f32 %v2459, %v2650
      %v2652 = vpop.f32.mrb[0].mxu0
      %2653 = vdwg.mxu0
      %2654 = vst [vmem:[%s361] sm:$0xff] %v2592
      %2655 = vst [vmem:[%s361 + $0x8] sm:$0xff] %v2595
      %2656 = vst [vmem:[%s361 + $0x10] sm:$0xff] %v2600
      %2657 = vst [vmem:[%s361 + $0x18] sm:$0xff] %v2603
      %2658 = vst [vmem:[%s361 + $0x20] sm:$0xff] %v2608
      %2659 = vst [vmem:[%s361 + $0x28] sm:$0xff] %v2611
      %2660 = vst [vmem:[%s361 + $0x30] sm:$0xff] %v2616
      %2661 = vst [vmem:[%s361 + $0x38] sm:$0xff] %v2619
      %2662 = vst [vmem:[%s361 + $0x40] sm:$0xff] %v2624
      %2663 = vst [vmem:[%s361 + $0x48] sm:$0xff] %v2627
      %2664 = vst [vmem:[%s361 + $0x50] sm:$0xff] %v2632
      %2665 = vst [vmem:[%s361 + $0x58] sm:$0xff] %v2635
      %2666 = vst [vmem:[%s361 + $0x60] sm:$0xff] %v2640
      %2667 = vst [vmem:[%s361 + $0x68] sm:$0xff] %v2643
      %2668 = vst [vmem:[%s361 + $0x70] sm:$0xff] %v2648
      %2669 = vst [vmem:[%s361 + $0x78] sm:$0xff] %v2651
      %s2670 = smul.u32 16, %s21
      %p2671 = scmp.lt.s32.totalorder %s2670, 31
      %s2672 = scalar_select %p2671, %s2670, 31
      %s2673 = smul.addr %s2672, 8
      %s2674 = scalar_lea.vmem %s10, %s2673
      // Predicated region
      $region61: #{d2rl_forward.1} parent=59 // pred_check
        %p2675 = pneg %p254
      $region62: #{d2rl_forward.1} parent=59 // pred_check_branch
        %2677 = sbr.rel (%p2675) target = $region64
      $region63: #{d2rl_forward.1} parent=59 // pred_region
        %s2678 = smul.u32 16, %s21
      $region64: #{d2rl_forward.1} parent=59 // pred_fallthru
        _
    $region60: #{d2rl_forward.1} parent=5 // pred_fallthru
      _
    %p2679 = scmp.le.s32.totalorder 2, %s16
    // Predicated region
    $region65: #{d2rl_forward.1} parent=5 // pred_check
      %p2680 = pneg %p2679
    $region66: #{d2rl_forward.1} parent=5 // pred_check_branch
      %2682 = sbr.rel (%p2680) target = $region68
    $region67: #{d2rl_forward.1} parent=5 // pred_region
      %s2683 = ssub.s32 %s16, 2
      // Predicated region
      $region69: #{d2rl_forward.1} parent=67 // pred_check
        %p2684 = pneg %p260
      $region70: #{d2rl_forward.1} parent=67 // pred_check_branch
        %2686 = sbr.rel (%p2684) target = $region72
      $region71: #{d2rl_forward.1} parent=67 // pred_region
        %s2687 = smul.u32 16, %s22
        %p2688 = scmp.lt.s32.totalorder %s2687, 31
        %s2689 = scalar_select %p2688, %s2687, 31
        %s2690 = smul.addr %s2689, 8
        %s2691 = scalar_lea.vmem %s10, %s2690
      $region72: #{d2rl_forward.1} parent=67 // pred_fallthru
        _
    $region68: #{d2rl_forward.1} parent=5 // pred_fallthru
      _
  $region6: #{d2rl_forward.1} parent=0 // loop_footer
    %s20 = sadd.s32 1, %s16
  $region7: #{d2rl_forward.1} parent=0 // loop_footer_branch
    %15 = sbr.rel target = $region3
  $region8: #{d2rl_forward.1} parent=0 // loop_exit
    _

</llo_original>
